<compile_context>
chip_gen: v6e
topology: v6e:2x2x1
jax: 0.10.0
libtpu: 0.0.40
codegen_flags: <defaults>
</compile_context>

<pallas_src>
import functools

import numpy as np
import jax
import jax.numpy as jnp
from jax import lax
from jax.experimental import pallas as pl
from jax.experimental.pallas import tpu as pltpu

GN_EPS = 1e-5
RRELU_SLOPE = (1.0 / 8.0 + 1.0 / 3.0) / 2.0     # nn.RReLU eval-mode slope


# ------------------------------ Pallas kernel -------------------------------

def _double_conv_kernel(x_ref, t1_ref, t2_ref, g1_ref, be1_ref, g2_ref, be2_ref,
                        o_ref, act_ref, p_ref, *, d, h, w, co):
    """One grid step == one sample.

    x_ref   : (rows_x, w*cin) bf16   (D,H)-padded input, lanes = w*cin + ci
    t1_ref  : (9, w*cin, g)  bf16    per-(kd,kh) Toeplitz weights, conv1
    t2_ref  : (9, g, g)      bf16    per-(kd,kh) Toeplitz weights, conv2
    g*/be*  : (1, g) f32             GroupNorm affine, tiled to lane = w*co + c
    o_ref   : (d*h, g) f32           output rows (d,h), lanes = w*co + c
    act_ref : (rows_x, g) f32        (D,H)-padded conv2 input (scratch)
    p_ref   : (9, rows_x, g) f32     per-tap partial products (scratch)
    """
    hp = h + 2
    g = w * co
    rows = (d + 2) * hp
    rows_x = act_ref.shape[0]
    inv_n = 1.0 / float(d * h * w)

    # channel reduce+rebroadcast matrix: cmat[i, j] = (i % co == j % co)
    ii = lax.broadcasted_iota(jnp.int32, (g, g), 0)
    jj = lax.broadcasted_iota(jnp.int32, (g, g), 1)
    cmat = (ii % co == jj % co).astype(jnp.float32)

    zero_stat = jnp.zeros((h, g), jnp.float32)

    def taps(dz):
        """Sum the 9 (kd,kh) tap groups for output depth slice dz -> (h, g)."""
        acc = jnp.zeros((h, g), jnp.float32)
        for kd in range(3):
            for kh in range(3):
                row0 = (dz + kd) * hp + kh
                acc = acc + p_ref[kd * 3 + kh, pl.ds(row0, h), :]
        return acc

    def affine(s1, s2, gamma, beta):
        """Per-channel GroupNorm scale/shift replicated across w lane groups."""
        c1 = jnp.sum(jnp.dot(s1, cmat, preferred_element_type=jnp.float32),
                     axis=0, keepdims=True) * inv_n
        c2 = jnp.sum(jnp.dot(s2, cmat, preferred_element_type=jnp.float32),
                     axis=0, keepdims=True) * inv_n
        var = c2 - c1 * c1
        scale = gamma * lax.rsqrt(var + GN_EPS)
        return scale, beta - c1 * scale

    # ----- conv1: 9 Toeplitz tap matmuls (contraction over (kw, c_in)) -----
    x_bf = x_ref[...]
    for tap in range(9):
        p_ref[tap] = jnp.dot(x_bf, t1_ref[tap],
                             preferred_element_type=jnp.float32)

    # ----- zero only the halo rows of the padded activation volume -----
    act_ref[pl.ds(0, hp), :] = jnp.zeros((hp, g), jnp.float32)
    act_ref[pl.ds((d + 1) * hp, hp), :] = jnp.zeros((hp, g), jnp.float32)
    if rows_x > rows:
        act_ref[pl.ds(rows, rows_x - rows), :] = jnp.zeros((rows_x - rows, g),
                                                           jnp.float32)

    # ----- GN1 stats + store raw conv1 output into the padded volume -----
    def conv1_body(dz, carry):
        s1, s2 = carry
        y = taps(dz)                                   # (h, g) f32, no bias
        base = (dz + 1) * hp
        act_ref[pl.ds(base, 1), :] = jnp.zeros((1, g), jnp.float32)
        act_ref[pl.ds(base + h + 1, 1), :] = jnp.zeros((1, g), jnp.float32)
        act_ref[pl.ds(base + 1, h), :] = y
        return s1 + y, s2 + y * y

    s1, s2 = lax.fori_loop(0, d, conv1_body, (zero_stat, zero_stat))
    scale1, shift1 = affine(s1, s2, g1_ref[...], be1_ref[...])

    # ----- GN1 normalize + RReLU (eval-mode slope), in place -----
    def norm1_body(dz, carry):
        base = (dz + 1) * hp + 1
        y = act_ref[pl.ds(base, h), :] * scale1 + shift1
        act_ref[pl.ds(base, h), :] = jnp.where(y >= 0.0, y, RRELU_SLOPE * y)
        return carry

    lax.fori_loop(0, d, norm1_body, 0)

    # ----- conv2: 9 Toeplitz tap matmuls over the padded activation -----
    a_bf = act_ref[...].astype(jnp.bfloat16)           # single cast, reused 9x
    for tap in range(9):
        p_ref[tap] = jnp.dot(a_bf, t2_ref[tap],
                             preferred_element_type=jnp.float32)

    # ----- GN2 stats + store raw conv2 output -----
    def conv2_body(dz, carry):
        s1, s2 = carry
        y = taps(dz)
        r0 = pl.multiple_of(dz * h, h)
        o_ref[pl.ds(r0, h), :] = y
        return s1 + y, s2 + y * y

    s1, s2 = lax.fori_loop(0, d, conv2_body, (zero_stat, zero_stat))
    scale2, shift2 = affine(s1, s2, g2_ref[...], be2_ref[...])

    def norm2_body(dz, carry):
        r0 = pl.multiple_of(dz * h, h)
        o_ref[pl.ds(r0, h), :] = o_ref[pl.ds(r0, h), :] * scale2 + shift2
        return carry

    lax.fori_loop(0, d, norm2_body, 0)


# -------------------------------- JAX glue ----------------------------------

def double_conv_forward(x, kparams, *, out_ch):
    n, cin, d, h, w = x.shape
    g = w * out_ch
    assert w * cin <= 128 and g <= 128 and (d * h) % 8 == 0
    rows = (d + 2) * (h + 2)
    rows_x = -(-rows // 8) * 8                          # round rows up to 8

    # Pack input: lanes = w*cin + ci; zero-pad D and H halos (W halo is folded
    # into the Toeplitz weights, so no W padding is needed).
    xt = jnp.transpose(x, (0, 2, 3, 4, 1)).reshape(n, d, h, w * cin)
    xp = jnp.pad(xt, ((0, 0), (1, 1), (1, 1), (0, 0)))
    xp = xp.reshape(n, rows, w * cin)
    xp = jnp.pad(xp, ((0, 0), (0, rows_x - rows), (0, 0)))
    x_packed = xp.reshape(n * rows_x, w * cin).astype(jnp.bfloat16)

    out_flat = pl.pallas_call(
        functools.partial(_double_conv_kernel, d=d, h=h, w=w, co=out_ch),
        grid=(n,),
        out_shape=jax.ShapeDtypeStruct((n * d * h, g), jnp.float32),
        in_specs=[
            pl.BlockSpec((rows_x, w * cin), lambda i: (i, 0)),      # x (per sample)
            pl.BlockSpec((9, w * cin, g), lambda i: (0, 0, 0)),      # t1
            pl.BlockSpec((9, g, g), lambda i: (0, 0, 0)),            # t2
            pl.BlockSpec((1, g), lambda i: (0, 0)),                  # gamma1
            pl.BlockSpec((1, g), lambda i: (0, 0)),                  # beta1
            pl.BlockSpec((1, g), lambda i: (0, 0)),                  # gamma2
            pl.BlockSpec((1, g), lambda i: (0, 0)),                  # beta2
        ],
        out_specs=pl.BlockSpec((d * h, g), lambda i: (i, 0)),
        scratch_shapes=[
            pltpu.VMEM((rows_x, g), jnp.float32),         # padded conv2 input
            pltpu.VMEM((9, rows_x, g), jnp.float32),      # per-tap partials
        ],
        compiler_params=pltpu.CompilerParams(
            dimension_semantics=("parallel",)),
    )(x_packed, kparams["t1"], kparams["t2"],
      kparams["g1"], kparams["be1"], kparams["g2"], kparams["be2"])

    out = out_flat.reshape(n, d, h, w, out_ch)
    return out.transpose(0, 4, 1, 2, 3)                  # NCDHW (PyTorch layout)


# ----------------------------- parameter prep -------------------------------

def init_raw_params(key, in_ch, out_ch):
    """PyTorch-layout parameters for DoubleConvBlock(in_ch, out_ch)."""
    ks = jax.random.split(key, 8)
    conv1_w = jax.random.normal(ks[0], (out_ch, in_ch, 3, 3, 3), jnp.float32) / jnp.sqrt(in_ch * 27.0)
    conv1_b = 0.1 * jax.random.normal(ks[1], (out_ch,), jnp.float32)
    gn1_g = 1.0 + 0.1 * jax.random.normal(ks[2], (out_ch,), jnp.float32)
    gn1_b = 0.1 * jax.random.normal(ks[3], (out_ch,), jnp.float32)
    conv2_w = jax.random.normal(ks[4], (out_ch, out_ch, 3, 3, 3), jnp.float32) / jnp.sqrt(out_ch * 27.0)
    conv2_b = 0.1 * jax.random.normal(ks[5], (out_ch,), jnp.float32)
    gn2_g = 1.0 + 0.1 * jax.random.normal(ks[6], (out_ch,), jnp.float32)
    gn2_b = 0.1 * jax.random.normal(ks[7], (out_ch,), jnp.float32)
    return dict(conv1_w=conv1_w, conv1_b=conv1_b, gn1_g=gn1_g, gn1_b=gn1_b,
                conv2_w=conv2_w, conv2_b=conv2_b, gn2_g=gn2_g, gn2_b=gn2_b)


def prepare_kernel_params(raw, *, width):
    """One-time layout plumbing (host side).

    Builds per-(kd,kh) block-Toeplitz weights that fold the (kw, c_in)
    contraction and the W-boundary zero padding into the matmul K dimension:
        t[tap, wi*ci + c_i, wo*co + c_o] = W[c_o, c_i, kd, kh, wi - wo + 1]
    Conv biases are dropped: they cancel exactly in the following GroupNorm.
    """
    c1w = np.asarray(raw["conv1_w"], np.float32)        # (co, ci, 3, 3, 3)
    c2w = np.asarray(raw["conv2_w"], np.float32)        # (co, co, 3, 3, 3)
    co, ci = c1w.shape[:2]
    W = width
    G = W * co
    t1 = np.zeros((9, W * ci, G), np.float32)
    t2 = np.zeros((9, G, G), np.float32)
    for kd in range(3):
        for kh in range(3):
            tap = kd * 3 + kh
            for wo in range(W):
                for kw in range(3):
                    wi = wo + kw - 1
                    if 0 <= wi < W:
                        t1[tap, wi * ci:(wi + 1) * ci, wo * co:(wo + 1) * co] = c1w[:, :, kd, kh, kw].T
                        t2[tap, wi * co:(wi + 1) * co, wo * co:(wo + 1) * co] = c2w[:, :, kd, kh, kw].T

    def rep(v):                                          # lane = w*co + c -> v[c]
        return jnp.asarray(np.tile(np.asarray(v, np.float32), W).reshape(1, G))

    return dict(t1=jnp.asarray(t1, jnp.bfloat16),
                t2=jnp.asarray(t2, jnp.bfloat16),
                g1=rep(raw["gn1_g"]), be1=rep(raw["gn1_b"]),
                g2=rep(raw["gn2_g"]), be2=rep(raw["gn2_b"]))


# ----------------------------- plain-JAX reference --------------------------

def reference_forward(x, raw):
    """Reference with bf16-rounded matmul operands (mirrors the kernel's MXU inputs)."""
    def conv3d(a, wgt, b):
        y = lax.conv_general_dilated(
            a.astype(jnp.bfloat16).astype(jnp.float32),
            wgt.astype(jnp.bfloat16).astype(jnp.float32),
            window_strides=(1, 1, 1), padding=[(1, 1)] * 3,
            dimension_numbers=("NCDHW", "OIDHW", "NCDHW"))
        return y + b[None, :, None, None, None]

    def group_norm(a, g, be):            # num_groups == num_channels
        mu = jnp.mean(a, axis=(2, 3, 4), keepdims=True)
        var = jnp.mean(a * a, axis=(2, 3, 4), keepdims=True) - mu * mu
        an = (a - mu) * lax.rsqrt(var + GN_EPS)
        return an * g[None, :, None, None, None] + be[None, :, None, None, None]

    y = conv3d(x, raw["conv1_w"], raw["conv1_b"])
    y = group_norm(y, raw["gn1_g"], raw["gn1_b"])
    y = jnp.where(y >= 0.0, y, RRELU_SLOPE * y)          # RReLU (eval mode)
    y = conv3d(y, raw["conv2_w"], raw["conv2_b"])
    return group_norm(y, raw["gn2_g"], raw["gn2_b"])


# ---------------------------------- main -------------------------------------

if __name__ == "__main__":
    key = jax.random.PRNGKey(0)
    k_x, k_p = jax.random.split(key)

    N, CIN, COUT, D, H, W = 2, 4, 8, 8, 8, 8
    x = jax.random.normal(k_x, (N, CIN, D, H, W), jnp.float32)

    raw = init_raw_params(k_p, CIN, COUT)
    kp = prepare_kernel_params(raw, width=W)

    fwd = jax.jit(functools.partial(double_conv_forward, out_ch=COUT))
    out = jax.block_until_ready(fwd(x, kp))
    assert out.shape == (N, COUT, D, H, W), out.shape

    ref = jax.block_until_ready(jax.jit(reference_forward)(x, raw))
    max_diff = float(jnp.max(jnp.abs(out - ref)))
    assert max_diff < 5e-2, f"kernel/reference mismatch: max|diff|={max_diff}"

    print("KERNEL_OK")
</pallas_src>

<mosaic_0001>
module attributes {stable_mosaic.version = 11 : i64} {
  func.func @_double_conv_kernel(%arg0: i32, %arg1: memref<104x32xbf16, #tpu.memory_space<vmem>>, %arg2: memref<9x32x64xbf16, #tpu.memory_space<vmem>>, %arg3: memref<9x64x64xbf16, #tpu.memory_space<vmem>>, %arg4: memref<1x64xf32, #tpu.memory_space<vmem>>, %arg5: memref<1x64xf32, #tpu.memory_space<vmem>>, %arg6: memref<1x64xf32, #tpu.memory_space<vmem>>, %arg7: memref<1x64xf32, #tpu.memory_space<vmem>>, %arg8: memref<64x64xf32, #tpu.memory_space<vmem>>, %arg9: memref<104x64xf32, #tpu.memory_space<vmem>>, %arg10: memref<9x104x64xf32, #tpu.memory_space<vmem>>) attributes {dimension_semantics = [#tpu.dimension_semantics<parallel>], iteration_bounds = array<i64: 2>, scalar_prefetch = 0 : i64, scratch_operands = 2 : i64, tpu.core_type = #tpu.core_type<tc>, window_params = [{transform_indices = @transform_0, window_bounds = array<i64: 104, 32>}, {pipeline_mode = #tpu.pipeline_mode<synchronous>, transform_indices = @transform_1, window_bounds = array<i64: 9, 32, 64>}, {pipeline_mode = #tpu.pipeline_mode<synchronous>, transform_indices = @transform_2, window_bounds = array<i64: 9, 64, 64>}, {pipeline_mode = #tpu.pipeline_mode<synchronous>, transform_indices = @transform_3, window_bounds = array<i64: 1, 64>}, {pipeline_mode = #tpu.pipeline_mode<synchronous>, transform_indices = @transform_4, window_bounds = array<i64: 1, 64>}, {pipeline_mode = #tpu.pipeline_mode<synchronous>, transform_indices = @transform_5, window_bounds = array<i64: 1, 64>}, {pipeline_mode = #tpu.pipeline_mode<synchronous>, transform_indices = @transform_6, window_bounds = array<i64: 1, 64>}, {transform_indices = @transform_7, window_bounds = array<i64: 64, 64>}]} {
    %0 = tpu.iota {dimensions = array<i32: 0>} : vector<64x64xi32>
    %1 = tpu.iota {dimensions = array<i32: 1>} : vector<64x64xi32>
    %c8_i32 = arith.constant 8 : i32
    %c0_i32 = arith.constant 0 : i32
    %2 = arith.cmpi eq, %c8_i32, %c0_i32 : i32
    %c1_i32 = arith.constant 1 : i32
    %3 = arith.select %2, %c1_i32, %c8_i32 : i32
    %4 = vector.broadcast %3 : i32 to vector<64x64xi32>
    %5 = arith.remsi %0, %4 : vector<64x64xi32>
    %c0_i32_0 = arith.constant 0 : i32
    %6 = vector.broadcast %c0_i32_0 : i32 to vector<64x64xi32>
    %7 = arith.cmpi ne, %5, %6 : vector<64x64xi32>
    %c0_i32_1 = arith.constant 0 : i32
    %8 = vector.broadcast %c0_i32_1 : i32 to vector<64x64xi32>
    %9 = arith.cmpi slt, %5, %8 : vector<64x64xi32>
    %c0_i32_2 = arith.constant 0 : i32
    %10 = arith.cmpi slt, %3, %c0_i32_2 : i32
    %11 = vector.broadcast %10 : i1 to vector<64x64xi1>
    %12 = vector.broadcast %11 : vector<64x64xi1> to vector<64x64xi1>
    %13 = arith.xori %9, %12 : vector<64x64xi1>
    %14 = arith.andi %13, %7 : vector<64x64xi1>
    %15 = vector.broadcast %3 : i32 to vector<64x64xi32>
    %16 = arith.addi %5, %15 : vector<64x64xi32>
    %17 = arith.select %14, %16, %5 : vector<64x64xi1>, vector<64x64xi32>
    %c8_i32_3 = arith.constant 8 : i32
    %c0_i32_4 = arith.constant 0 : i32
    %18 = arith.cmpi eq, %c8_i32_3, %c0_i32_4 : i32
    %c1_i32_5 = arith.constant 1 : i32
    %19 = arith.select %18, %c1_i32_5, %c8_i32_3 : i32
    %20 = vector.broadcast %19 : i32 to vector<64x64xi32>
    %21 = arith.remsi %1, %20 : vector<64x64xi32>
    %c0_i32_6 = arith.constant 0 : i32
    %22 = vector.broadcast %c0_i32_6 : i32 to vector<64x64xi32>
    %23 = arith.cmpi ne, %21, %22 : vector<64x64xi32>
    %c0_i32_7 = arith.constant 0 : i32
    %24 = vector.broadcast %c0_i32_7 : i32 to vector<64x64xi32>
    %25 = arith.cmpi slt, %21, %24 : vector<64x64xi32>
    %c0_i32_8 = arith.constant 0 : i32
    %26 = arith.cmpi slt, %19, %c0_i32_8 : i32
    %27 = vector.broadcast %26 : i1 to vector<64x64xi1>
    %28 = vector.broadcast %27 : vector<64x64xi1> to vector<64x64xi1>
    %29 = arith.xori %25, %28 : vector<64x64xi1>
    %30 = arith.andi %29, %23 : vector<64x64xi1>
    %31 = vector.broadcast %19 : i32 to vector<64x64xi32>
    %32 = arith.addi %21, %31 : vector<64x64xi32>
    %33 = arith.select %30, %32, %21 : vector<64x64xi1>, vector<64x64xi32>
    %34 = arith.cmpi eq, %17, %33 : vector<64x64xi32>
    %35 = arith.extui %34 : vector<64x64xi1> to vector<64x64xi32>
    %36 = arith.sitofp %35 : vector<64x64xi32> to vector<64x64xf32>
    %cst = arith.constant 0.000000e+00 : f32
    %37 = vector.broadcast %cst : f32 to vector<8x64xf32>
    %c0 = arith.constant 0 : index
    %c0_9 = arith.constant 0 : index
    %38 = vector.load %arg1[%c0, %c0_9] : memref<104x32xbf16, #tpu.memory_space<vmem>>, vector<104x32xbf16>
    %c0_10 = arith.constant 0 : index
    %c0_11 = arith.constant 0 : index
    %c0_12 = arith.constant 0 : index
    %39 = vector.load %arg2[%c0_10, %c0_11, %c0_12] : memref<9x32x64xbf16, #tpu.memory_space<vmem>>, vector<1x32x64xbf16>
    %40 = vector.shape_cast %39 : vector<1x32x64xbf16> to vector<32x64xbf16>
    %cst_13 = arith.constant dense<0.000000e+00> : vector<104x64xf32>
    %41 = tpu.matmul %38, %40, %cst_13 {dimension_numbers = #tpu.dot_dimension_numbers<[1], [0], [0], [1], [0, 0, 1, 1], [], []>} : vector<104x32xbf16>, vector<32x64xbf16>, vector<104x64xf32> -> vector<104x64xf32>
    %c0_14 = arith.constant 0 : index
    %c0_15 = arith.constant 0 : index
    %c0_16 = arith.constant 0 : index
    %42 = vector.load %arg10[%c0_14, %c0_15, %c0_16] : memref<9x104x64xf32, #tpu.memory_space<vmem>>, vector<1x104x64xf32>
    %43 = vector.shape_cast %42 : vector<1x104x64xf32> to vector<104x64xf32>
    %44 = vector.shape_cast %41 : vector<104x64xf32> to vector<1x104x64xf32>
    tpu.vector_store %arg10[%c0_14, %c0_15, %c0_16], %44 {strides = array<i32>} : memref<9x104x64xf32, #tpu.memory_space<vmem>>, vector<1x104x64xf32>,
    %c1 = arith.constant 1 : index
    %c0_17 = arith.constant 0 : index
    %c0_18 = arith.constant 0 : index
    %45 = vector.load %arg2[%c1, %c0_17, %c0_18] : memref<9x32x64xbf16, #tpu.memory_space<vmem>>, vector<1x32x64xbf16>
    %46 = vector.shape_cast %45 : vector<1x32x64xbf16> to vector<32x64xbf16>
    %cst_19 = arith.constant dense<0.000000e+00> : vector<104x64xf32>
    %47 = tpu.matmul %38, %46, %cst_19 {dimension_numbers = #tpu.dot_dimension_numbers<[1], [0], [0], [1], [0, 0, 1, 1], [], []>} : vector<104x32xbf16>, vector<32x64xbf16>, vector<104x64xf32> -> vector<104x64xf32>
    %c1_20 = arith.constant 1 : index
    %c0_21 = arith.constant 0 : index
    %c0_22 = arith.constant 0 : index
    %48 = vector.load %arg10[%c1_20, %c0_21, %c0_22] : memref<9x104x64xf32, #tpu.memory_space<vmem>>, vector<1x104x64xf32>
    %49 = vector.shape_cast %48 : vector<1x104x64xf32> to vector<104x64xf32>
    %50 = vector.shape_cast %47 : vector<104x64xf32> to vector<1x104x64xf32>
    tpu.vector_store %arg10[%c1_20, %c0_21, %c0_22], %50 {strides = array<i32>} : memref<9x104x64xf32, #tpu.memory_space<vmem>>, vector<1x104x64xf32>,
    %c2 = arith.constant 2 : index
    %c0_23 = arith.constant 0 : index
    %c0_24 = arith.constant 0 : index
    %51 = vector.load %arg2[%c2, %c0_23, %c0_24] : memref<9x32x64xbf16, #tpu.memory_space<vmem>>, vector<1x32x64xbf16>
    %52 = vector.shape_cast %51 : vector<1x32x64xbf16> to vector<32x64xbf16>
    %cst_25 = arith.constant dense<0.000000e+00> : vector<104x64xf32>
    %53 = tpu.matmul %38, %52, %cst_25 {dimension_numbers = #tpu.dot_dimension_numbers<[1], [0], [0], [1], [0, 0, 1, 1], [], []>} : vector<104x32xbf16>, vector<32x64xbf16>, vector<104x64xf32> -> vector<104x64xf32>
    %c2_26 = arith.constant 2 : index
    %c0_27 = arith.constant 0 : index
    %c0_28 = arith.constant 0 : index
    %54 = vector.load %arg10[%c2_26, %c0_27, %c0_28] : memref<9x104x64xf32, #tpu.memory_space<vmem>>, vector<1x104x64xf32>
    %55 = vector.shape_cast %54 : vector<1x104x64xf32> to vector<104x64xf32>
    %56 = vector.shape_cast %53 : vector<104x64xf32> to vector<1x104x64xf32>
    tpu.vector_store %arg10[%c2_26, %c0_27, %c0_28], %56 {strides = array<i32>} : memref<9x104x64xf32, #tpu.memory_space<vmem>>, vector<1x104x64xf32>,
    %c3 = arith.constant 3 : index
    %c0_29 = arith.constant 0 : index
    %c0_30 = arith.constant 0 : index
    %57 = vector.load %arg2[%c3, %c0_29, %c0_30] : memref<9x32x64xbf16, #tpu.memory_space<vmem>>, vector<1x32x64xbf16>
    %58 = vector.shape_cast %57 : vector<1x32x64xbf16> to vector<32x64xbf16>
    %cst_31 = arith.constant dense<0.000000e+00> : vector<104x64xf32>
    %59 = tpu.matmul %38, %58, %cst_31 {dimension_numbers = #tpu.dot_dimension_numbers<[1], [0], [0], [1], [0, 0, 1, 1], [], []>} : vector<104x32xbf16>, vector<32x64xbf16>, vector<104x64xf32> -> vector<104x64xf32>
    %c3_32 = arith.constant 3 : index
    %c0_33 = arith.constant 0 : index
    %c0_34 = arith.constant 0 : index
    %60 = vector.load %arg10[%c3_32, %c0_33, %c0_34] : memref<9x104x64xf32, #tpu.memory_space<vmem>>, vector<1x104x64xf32>
    %61 = vector.shape_cast %60 : vector<1x104x64xf32> to vector<104x64xf32>
    %62 = vector.shape_cast %59 : vector<104x64xf32> to vector<1x104x64xf32>
    tpu.vector_store %arg10[%c3_32, %c0_33, %c0_34], %62 {strides = array<i32>} : memref<9x104x64xf32, #tpu.memory_space<vmem>>, vector<1x104x64xf32>,
    %c4 = arith.constant 4 : index
    %c0_35 = arith.constant 0 : index
    %c0_36 = arith.constant 0 : index
    %63 = vector.load %arg2[%c4, %c0_35, %c0_36] : memref<9x32x64xbf16, #tpu.memory_space<vmem>>, vector<1x32x64xbf16>
    %64 = vector.shape_cast %63 : vector<1x32x64xbf16> to vector<32x64xbf16>
    %cst_37 = arith.constant dense<0.000000e+00> : vector<104x64xf32>
    %65 = tpu.matmul %38, %64, %cst_37 {dimension_numbers = #tpu.dot_dimension_numbers<[1], [0], [0], [1], [0, 0, 1, 1], [], []>} : vector<104x32xbf16>, vector<32x64xbf16>, vector<104x64xf32> -> vector<104x64xf32>
    %c4_38 = arith.constant 4 : index
    %c0_39 = arith.constant 0 : index
    %c0_40 = arith.constant 0 : index
    %66 = vector.load %arg10[%c4_38, %c0_39, %c0_40] : memref<9x104x64xf32, #tpu.memory_space<vmem>>, vector<1x104x64xf32>
    %67 = vector.shape_cast %66 : vector<1x104x64xf32> to vector<104x64xf32>
    %68 = vector.shape_cast %65 : vector<104x64xf32> to vector<1x104x64xf32>
    tpu.vector_store %arg10[%c4_38, %c0_39, %c0_40], %68 {strides = array<i32>} : memref<9x104x64xf32, #tpu.memory_space<vmem>>, vector<1x104x64xf32>,
    %c5 = arith.constant 5 : index
    %c0_41 = arith.constant 0 : index
    %c0_42 = arith.constant 0 : index
    %69 = vector.load %arg2[%c5, %c0_41, %c0_42] : memref<9x32x64xbf16, #tpu.memory_space<vmem>>, vector<1x32x64xbf16>
    %70 = vector.shape_cast %69 : vector<1x32x64xbf16> to vector<32x64xbf16>
    %cst_43 = arith.constant dense<0.000000e+00> : vector<104x64xf32>
    %71 = tpu.matmul %38, %70, %cst_43 {dimension_numbers = #tpu.dot_dimension_numbers<[1], [0], [0], [1], [0, 0, 1, 1], [], []>} : vector<104x32xbf16>, vector<32x64xbf16>, vector<104x64xf32> -> vector<104x64xf32>
    %c5_44 = arith.constant 5 : index
    %c0_45 = arith.constant 0 : index
    %c0_46 = arith.constant 0 : index
    %72 = vector.load %arg10[%c5_44, %c0_45, %c0_46] : memref<9x104x64xf32, #tpu.memory_space<vmem>>, vector<1x104x64xf32>
    %73 = vector.shape_cast %72 : vector<1x104x64xf32> to vector<104x64xf32>
    %74 = vector.shape_cast %71 : vector<104x64xf32> to vector<1x104x64xf32>
    tpu.vector_store %arg10[%c5_44, %c0_45, %c0_46], %74 {strides = array<i32>} : memref<9x104x64xf32, #tpu.memory_space<vmem>>, vector<1x104x64xf32>,
    %c6 = arith.constant 6 : index
    %c0_47 = arith.constant 0 : index
    %c0_48 = arith.constant 0 : index
    %75 = vector.load %arg2[%c6, %c0_47, %c0_48] : memref<9x32x64xbf16, #tpu.memory_space<vmem>>, vector<1x32x64xbf16>
    %76 = vector.shape_cast %75 : vector<1x32x64xbf16> to vector<32x64xbf16>
    %cst_49 = arith.constant dense<0.000000e+00> : vector<104x64xf32>
    %77 = tpu.matmul %38, %76, %cst_49 {dimension_numbers = #tpu.dot_dimension_numbers<[1], [0], [0], [1], [0, 0, 1, 1], [], []>} : vector<104x32xbf16>, vector<32x64xbf16>, vector<104x64xf32> -> vector<104x64xf32>
    %c6_50 = arith.constant 6 : index
    %c0_51 = arith.constant 0 : index
    %c0_52 = arith.constant 0 : index
    %78 = vector.load %arg10[%c6_50, %c0_51, %c0_52] : memref<9x104x64xf32, #tpu.memory_space<vmem>>, vector<1x104x64xf32>
    %79 = vector.shape_cast %78 : vector<1x104x64xf32> to vector<104x64xf32>
    %80 = vector.shape_cast %77 : vector<104x64xf32> to vector<1x104x64xf32>
    tpu.vector_store %arg10[%c6_50, %c0_51, %c0_52], %80 {strides = array<i32>} : memref<9x104x64xf32, #tpu.memory_space<vmem>>, vector<1x104x64xf32>,
    %c7 = arith.constant 7 : index
    %c0_53 = arith.constant 0 : index
    %c0_54 = arith.constant 0 : index
    %81 = vector.load %arg2[%c7, %c0_53, %c0_54] : memref<9x32x64xbf16, #tpu.memory_space<vmem>>, vector<1x32x64xbf16>
    %82 = vector.shape_cast %81 : vector<1x32x64xbf16> to vector<32x64xbf16>
    %cst_55 = arith.constant dense<0.000000e+00> : vector<104x64xf32>
    %83 = tpu.matmul %38, %82, %cst_55 {dimension_numbers = #tpu.dot_dimension_numbers<[1], [0], [0], [1], [0, 0, 1, 1], [], []>} : vector<104x32xbf16>, vector<32x64xbf16>, vector<104x64xf32> -> vector<104x64xf32>
    %c7_56 = arith.constant 7 : index
    %c0_57 = arith.constant 0 : index
    %c0_58 = arith.constant 0 : index
    %84 = vector.load %arg10[%c7_56, %c0_57, %c0_58] : memref<9x104x64xf32, #tpu.memory_space<vmem>>, vector<1x104x64xf32>
    %85 = vector.shape_cast %84 : vector<1x104x64xf32> to vector<104x64xf32>
    %86 = vector.shape_cast %83 : vector<104x64xf32> to vector<1x104x64xf32>
    tpu.vector_store %arg10[%c7_56, %c0_57, %c0_58], %86 {strides = array<i32>} : memref<9x104x64xf32, #tpu.memory_space<vmem>>, vector<1x104x64xf32>,
    %c8 = arith.constant 8 : index
    %c0_59 = arith.constant 0 : index
    %c0_60 = arith.constant 0 : index
    %87 = vector.load %arg2[%c8, %c0_59, %c0_60] : memref<9x32x64xbf16, #tpu.memory_space<vmem>>, vector<1x32x64xbf16>
    %88 = vector.shape_cast %87 : vector<1x32x64xbf16> to vector<32x64xbf16>
    %cst_61 = arith.constant dense<0.000000e+00> : vector<104x64xf32>
    %89 = tpu.matmul %38, %88, %cst_61 {dimension_numbers = #tpu.dot_dimension_numbers<[1], [0], [0], [1], [0, 0, 1, 1], [], []>} : vector<104x32xbf16>, vector<32x64xbf16>, vector<104x64xf32> -> vector<104x64xf32>
    %c8_62 = arith.constant 8 : index
    %c0_63 = arith.constant 0 : index
    %c0_64 = arith.constant 0 : index
    %90 = vector.load %arg10[%c8_62, %c0_63, %c0_64] : memref<9x104x64xf32, #tpu.memory_space<vmem>>, vector<1x104x64xf32>
    %91 = vector.shape_cast %90 : vector<1x104x64xf32> to vector<104x64xf32>
    %92 = vector.shape_cast %89 : vector<104x64xf32> to vector<1x104x64xf32>
    tpu.vector_store %arg10[%c8_62, %c0_63, %c0_64], %92 {strides = array<i32>} : memref<9x104x64xf32, #tpu.memory_space<vmem>>, vector<1x104x64xf32>,
    %cst_65 = arith.constant 0.000000e+00 : f32
    %93 = vector.broadcast %cst_65 : f32 to vector<10x64xf32>
    %c0_66 = arith.constant 0 : index
    %c0_67 = arith.constant 0 : index
    %94 = vector.load %arg9[%c0_66, %c0_67] : memref<104x64xf32, #tpu.memory_space<vmem>>, vector<10x64xf32>
    tpu.vector_store %arg9[%c0_66, %c0_67], %93 {strides = array<i32>} : memref<104x64xf32, #tpu.memory_space<vmem>>, vector<10x64xf32>,
    %cst_68 = arith.constant 0.000000e+00 : f32
    %95 = vector.broadcast %cst_68 : f32 to vector<10x64xf32>
    %c90 = arith.constant 90 : index
    %c0_69 = arith.constant 0 : index
    %96 = vector.load %arg9[%c90, %c0_69] : memref<104x64xf32, #tpu.memory_space<vmem>>, vector<10x64xf32>
    tpu.vector_store %arg9[%c90, %c0_69], %95 {strides = array<i32>} : memref<104x64xf32, #tpu.memory_space<vmem>>, vector<10x64xf32>,
    %cst_70 = arith.constant 0.000000e+00 : f32
    %97 = vector.broadcast %cst_70 : f32 to vector<4x64xf32>
    %c100 = arith.constant 100 : index
    %c0_71 = arith.constant 0 : index
    %98 = vector.load %arg9[%c100, %c0_71] : memref<104x64xf32, #tpu.memory_space<vmem>>, vector<4x64xf32>
    tpu.vector_store %arg9[%c100, %c0_71], %97 {strides = array<i32>} : memref<104x64xf32, #tpu.memory_space<vmem>>, vector<4x64xf32>,
    %c0_i32_72 = arith.constant 0 : i32
    %c8_i32_73 = arith.constant 8 : i32
    %99 = arith.addi %c0_i32_72, %c8_i32_73 : i32
    %c1_i32_74 = arith.constant 1 : i32
    %100:2 = scf.for %arg11 = %c0_i32_72 to %99 step %c1_i32_74 iter_args(%arg12 = %37, %arg13 = %37) -> (vector<8x64xf32>, vector<8x64xf32>)  : i32 {
      %cst_175 = arith.constant 0.000000e+00 : f32
      %201 = vector.broadcast %cst_175 : f32 to vector<8x64xf32>
      %c0_i32_176 = arith.constant 0 : i32
      %202 = arith.addi %arg11, %c0_i32_176 : i32
      %c10_i32 = arith.constant 10 : i32
      %203 = arith.muli %202, %c10_i32 : i32
      %c0_i32_177 = arith.constant 0 : i32
      %204 = arith.addi %203, %c0_i32_177 : i32
      %c0_178 = arith.constant 0 : index
      %205 = arith.index_cast %204 : i32 to index
      %c0_179 = arith.constant 0 : index
      %206 = vector.load %arg10[%c0_178, %205, %c0_179] : memref<9x104x64xf32, #tpu.memory_space<vmem>>, vector<1x8x64xf32>
      %207 = vector.shape_cast %206 : vector<1x8x64xf32> to vector<8x64xf32>
      %208 = arith.addf %201, %207 : vector<8x64xf32>
      %c0_i32_180 = arith.constant 0 : i32
      %209 = arith.addi %arg11, %c0_i32_180 : i32
      %c10_i32_181 = arith.constant 10 : i32
      %210 = arith.muli %209, %c10_i32_181 : i32
      %c1_i32_182 = arith.constant 1 : i32
      %211 = arith.addi %210, %c1_i32_182 : i32
      %c1_183 = arith.constant 1 : index
      %212 = arith.index_cast %211 : i32 to index
      %c0_184 = arith.constant 0 : index
      %213 = vector.load %arg10[%c1_183, %212, %c0_184] : memref<9x104x64xf32, #tpu.memory_space<vmem>>, vector<1x8x64xf32>
      %214 = vector.shape_cast %213 : vector<1x8x64xf32> to vector<8x64xf32>
      %215 = arith.addf %208, %214 : vector<8x64xf32>
      %c0_i32_185 = arith.constant 0 : i32
      %216 = arith.addi %arg11, %c0_i32_185 : i32
      %c10_i32_186 = arith.constant 10 : i32
      %217 = arith.muli %216, %c10_i32_186 : i32
      %c2_i32 = arith.constant 2 : i32
      %218 = arith.addi %217, %c2_i32 : i32
      %c2_187 = arith.constant 2 : index
      %219 = arith.index_cast %218 : i32 to index
      %c0_188 = arith.constant 0 : index
      %220 = vector.load %arg10[%c2_187, %219, %c0_188] : memref<9x104x64xf32, #tpu.memory_space<vmem>>, vector<1x8x64xf32>
      %221 = vector.shape_cast %220 : vector<1x8x64xf32> to vector<8x64xf32>
      %222 = arith.addf %215, %221 : vector<8x64xf32>
      %c1_i32_189 = arith.constant 1 : i32
      %223 = arith.addi %arg11, %c1_i32_189 : i32
      %c10_i32_190 = arith.constant 10 : i32
      %224 = arith.muli %223, %c10_i32_190 : i32
      %c0_i32_191 = arith.constant 0 : i32
      %225 = arith.addi %224, %c0_i32_191 : i32
      %c3_192 = arith.constant 3 : index
      %226 = arith.index_cast %225 : i32 to index
      %c0_193 = arith.constant 0 : index
      %227 = vector.load %arg10[%c3_192, %226, %c0_193] : memref<9x104x64xf32, #tpu.memory_space<vmem>>, vector<1x8x64xf32>
      %228 = vector.shape_cast %227 : vector<1x8x64xf32> to vector<8x64xf32>
      %229 = arith.addf %222, %228 : vector<8x64xf32>
      %c1_i32_194 = arith.constant 1 : i32
      %230 = arith.addi %arg11, %c1_i32_194 : i32
      %c10_i32_195 = arith.constant 10 : i32
      %231 = arith.muli %230, %c10_i32_195 : i32
      %c1_i32_196 = arith.constant 1 : i32
      %232 = arith.addi %231, %c1_i32_196 : i32
      %c4_197 = arith.constant 4 : index
      %233 = arith.index_cast %232 : i32 to index
      %c0_198 = arith.constant 0 : index
      %234 = vector.load %arg10[%c4_197, %233, %c0_198] : memref<9x104x64xf32, #tpu.memory_space<vmem>>, vector<1x8x64xf32>
      %235 = vector.shape_cast %234 : vector<1x8x64xf32> to vector<8x64xf32>
      %236 = arith.addf %229, %235 : vector<8x64xf32>
      %c1_i32_199 = arith.constant 1 : i32
      %237 = arith.addi %arg11, %c1_i32_199 : i32
      %c10_i32_200 = arith.constant 10 : i32
      %238 = arith.muli %237, %c10_i32_200 : i32
      %c2_i32_201 = arith.constant 2 : i32
      %239 = arith.addi %238, %c2_i32_201 : i32
      %c5_202 = arith.constant 5 : index
      %240 = arith.index_cast %239 : i32 to index
      %c0_203 = arith.constant 0 : index
      %241 = vector.load %arg10[%c5_202, %240, %c0_203] : memref<9x104x64xf32, #tpu.memory_space<vmem>>, vector<1x8x64xf32>
      %242 = vector.shape_cast %241 : vector<1x8x64xf32> to vector<8x64xf32>
      %243 = arith.addf %236, %242 : vector<8x64xf32>
      %c2_i32_204 = arith.constant 2 : i32
      %244 = arith.addi %arg11, %c2_i32_204 : i32
      %c10_i32_205 = arith.constant 10 : i32
      %245 = arith.muli %244, %c10_i32_205 : i32
      %c0_i32_206 = arith.constant 0 : i32
      %246 = arith.addi %245, %c0_i32_206 : i32
      %c6_207 = arith.constant 6 : index
      %247 = arith.index_cast %246 : i32 to index
      %c0_208 = arith.constant 0 : index
      %248 = vector.load %arg10[%c6_207, %247, %c0_208] : memref<9x104x64xf32, #tpu.memory_space<vmem>>, vector<1x8x64xf32>
      %249 = vector.shape_cast %248 : vector<1x8x64xf32> to vector<8x64xf32>
      %250 = arith.addf %243, %249 : vector<8x64xf32>
      %c2_i32_209 = arith.constant 2 : i32
      %251 = arith.addi %arg11, %c2_i32_209 : i32
      %c10_i32_210 = arith.constant 10 : i32
      %252 = arith.muli %251, %c10_i32_210 : i32
      %c1_i32_211 = arith.constant 1 : i32
      %253 = arith.addi %252, %c1_i32_211 : i32
      %c7_212 = arith.constant 7 : index
      %254 = arith.index_cast %253 : i32 to index
      %c0_213 = arith.constant 0 : index
      %255 = vector.load %arg10[%c7_212, %254, %c0_213] : memref<9x104x64xf32, #tpu.memory_space<vmem>>, vector<1x8x64xf32>
      %256 = vector.shape_cast %255 : vector<1x8x64xf32> to vector<8x64xf32>
      %257 = arith.addf %250, %256 : vector<8x64xf32>
      %c2_i32_214 = arith.constant 2 : i32
      %258 = arith.addi %arg11, %c2_i32_214 : i32
      %c10_i32_215 = arith.constant 10 : i32
      %259 = arith.muli %258, %c10_i32_215 : i32
      %c2_i32_216 = arith.constant 2 : i32
      %260 = arith.addi %259, %c2_i32_216 : i32
      %c8_217 = arith.constant 8 : index
      %261 = arith.index_cast %260 : i32 to index
      %c0_218 = arith.constant 0 : index
      %262 = vector.load %arg10[%c8_217, %261, %c0_218] : memref<9x104x64xf32, #tpu.memory_space<vmem>>, vector<1x8x64xf32>
      %263 = vector.shape_cast %262 : vector<1x8x64xf32> to vector<8x64xf32>
      %264 = arith.addf %257, %263 : vector<8x64xf32>
      %c1_i32_219 = arith.constant 1 : i32
      %265 = arith.addi %arg11, %c1_i32_219 : i32
      %c10_i32_220 = arith.constant 10 : i32
      %266 = arith.muli %265, %c10_i32_220 : i32
      %cst_221 = arith.constant 0.000000e+00 : f32
      %267 = vector.broadcast %cst_221 : f32 to vector<1x64xf32>
      %268 = arith.index_cast %266 : i32 to index
      %c0_222 = arith.constant 0 : index
      %269 = vector.load %arg9[%268, %c0_222] : memref<104x64xf32, #tpu.memory_space<vmem>>, vector<1x64xf32>
      tpu.vector_store %arg9[%268, %c0_222], %267 {strides = array<i32>} : memref<104x64xf32, #tpu.memory_space<vmem>>, vector<1x64xf32>,
      %cst_223 = arith.constant 0.000000e+00 : f32
      %270 = vector.broadcast %cst_223 : f32 to vector<1x64xf32>
      %c8_i32_224 = arith.constant 8 : i32
      %271 = arith.addi %266, %c8_i32_224 : i32
      %c1_i32_225 = arith.constant 1 : i32
      %272 = arith.addi %271, %c1_i32_225 : i32
      %273 = arith.index_cast %272 : i32 to index
      %c0_226 = arith.constant 0 : index
      %274 = vector.load %arg9[%273, %c0_226] : memref<104x64xf32, #tpu.memory_space<vmem>>, vector<1x64xf32>
      tpu.vector_store %arg9[%273, %c0_226], %270 {strides = array<i32>} : memref<104x64xf32, #tpu.memory_space<vmem>>, vector<1x64xf32>,
      %c1_i32_227 = arith.constant 1 : i32
      %275 = arith.addi %266, %c1_i32_227 : i32
      %276 = arith.index_cast %275 : i32 to index
      %c0_228 = arith.constant 0 : index
      %277 = vector.load %arg9[%276, %c0_228] : memref<104x64xf32, #tpu.memory_space<vmem>>, vector<8x64xf32>
      tpu.vector_store %arg9[%276, %c0_228], %264 {strides = array<i32>} : memref<104x64xf32, #tpu.memory_space<vmem>>, vector<8x64xf32>,
      %278 = arith.addf %arg12, %264 : vector<8x64xf32>
      %279 = arith.mulf %264, %264 : vector<8x64xf32>
      %280 = arith.addf %arg13, %279 : vector<8x64xf32>
      scf.yield %278, %280 : vector<8x64xf32>, vector<8x64xf32>
    }
    %c8_i32_75 = arith.constant 8 : i32
    %c0_76 = arith.constant 0 : index
    %c0_77 = arith.constant 0 : index
    %101 = vector.load %arg4[%c0_76, %c0_77] : memref<1x64xf32, #tpu.memory_space<vmem>>, vector<1x64xf32>
    %c0_78 = arith.constant 0 : index
    %c0_79 = arith.constant 0 : index
    %102 = vector.load %arg5[%c0_78, %c0_79] : memref<1x64xf32, #tpu.memory_space<vmem>>, vector<1x64xf32>
    %cst_80 = arith.constant dense<0.000000e+00> : vector<8x64xf32>
    %103 = tpu.matmul %100#0, %36, %cst_80 {dimension_numbers = #tpu.dot_dimension_numbers<[1], [0], [0], [1], [0, 0, 1, 1], [], []>} : vector<8x64xf32>, vector<64x64xf32>, vector<8x64xf32> -> vector<8x64xf32>
    %cst_81 = arith.constant dense<0.000000e+00> : vector<64xf32>
    %104 = vector.multi_reduction <add>, %103, %cst_81 [0] : vector<8x64xf32> to vector<64xf32>
    %105 = vector.shape_cast %104 : vector<64xf32> to vector<1x64xf32>
    %cst_82 = arith.constant 0.001953125 : f32
    %106 = vector.broadcast %cst_82 : f32 to vector<1x64xf32>
    %107 = arith.mulf %105, %106 : vector<1x64xf32>
    %cst_83 = arith.constant dense<0.000000e+00> : vector<8x64xf32>
    %108 = tpu.matmul %100#1, %36, %cst_83 {dimension_numbers = #tpu.dot_dimension_numbers<[1], [0], [0], [1], [0, 0, 1, 1], [], []>} : vector<8x64xf32>, vector<64x64xf32>, vector<8x64xf32> -> vector<8x64xf32>
    %cst_84 = arith.constant dense<0.000000e+00> : vector<64xf32>
    %109 = vector.multi_reduction <add>, %108, %cst_84 [0] : vector<8x64xf32> to vector<64xf32>
    %110 = vector.shape_cast %109 : vector<64xf32> to vector<1x64xf32>
    %cst_85 = arith.constant 0.001953125 : f32
    %111 = vector.broadcast %cst_85 : f32 to vector<1x64xf32>
    %112 = arith.mulf %110, %111 : vector<1x64xf32>
    %113 = arith.mulf %107, %107 : vector<1x64xf32>
    %114 = arith.subf %112, %113 : vector<1x64xf32>
    %cst_86 = arith.constant 9.99999974E-6 : f32
    %115 = vector.broadcast %cst_86 : f32 to vector<1x64xf32>
    %116 = arith.addf %114, %115 : vector<1x64xf32>
    %117 = math.rsqrt %116 : vector<1x64xf32>
    %118 = arith.mulf %101, %117 : vector<1x64xf32>
    %119 = arith.mulf %107, %118 : vector<1x64xf32>
    %120 = arith.subf %102, %119 : vector<1x64xf32>
    %c0_i32_87 = arith.constant 0 : i32
    %c8_i32_88 = arith.constant 8 : i32
    %121 = arith.addi %c0_i32_87, %c8_i32_88 : i32
    %c1_i32_89 = arith.constant 1 : i32
    scf.for %arg11 = %c0_i32_87 to %121 step %c1_i32_89  : i32 {
      %c1_i32_175 = arith.constant 1 : i32
      %201 = arith.addi %arg11, %c1_i32_175 : i32
      %c10_i32 = arith.constant 10 : i32
      %202 = arith.muli %201, %c10_i32 : i32
      %c1_i32_176 = arith.constant 1 : i32
      %203 = arith.addi %202, %c1_i32_176 : i32
      %204 = arith.index_cast %203 : i32 to index
      %c0_177 = arith.constant 0 : index
      %205 = vector.load %arg9[%204, %c0_177] : memref<104x64xf32, #tpu.memory_space<vmem>>, vector<8x64xf32>
      %206 = vector.broadcast %118 : vector<1x64xf32> to vector<8x64xf32>
      %207 = arith.mulf %205, %206 : vector<8x64xf32>
      %208 = vector.broadcast %120 : vector<1x64xf32> to vector<8x64xf32>
      %209 = arith.addf %207, %208 : vector<8x64xf32>
      %cst_178 = arith.constant 0.000000e+00 : f32
      %210 = vector.broadcast %cst_178 : f32 to vector<8x64xf32>
      %211 = arith.cmpf oge, %209, %210 : vector<8x64xf32>
      %cst_179 = arith.constant 0.229166672 : f32
      %212 = vector.broadcast %cst_179 : f32 to vector<8x64xf32>
      %213 = arith.mulf %212, %209 : vector<8x64xf32>
      %214 = arith.select %211, %209, %213 : vector<8x64xi1>, vector<8x64xf32>
      %215 = arith.index_cast %203 : i32 to index
      %c0_180 = arith.constant 0 : index
      %216 = vector.load %arg9[%215, %c0_180] : memref<104x64xf32, #tpu.memory_space<vmem>>, vector<8x64xf32>
      tpu.vector_store %arg9[%215, %c0_180], %214 {strides = array<i32>} : memref<104x64xf32, #tpu.memory_space<vmem>>, vector<8x64xf32>,
    }
    %c8_i32_90 = arith.constant 8 : i32
    %c0_91 = arith.constant 0 : index
    %c0_92 = arith.constant 0 : index
    %122 = vector.load %arg9[%c0_91, %c0_92] : memref<104x64xf32, #tpu.memory_space<vmem>>, vector<104x64xf32>
    %123 = arith.truncf %122 : vector<104x64xf32> to vector<104x64xbf16>
    %c0_93 = arith.constant 0 : index
    %c0_94 = arith.constant 0 : index
    %c0_95 = arith.constant 0 : index
    %124 = vector.load %arg3[%c0_93, %c0_94, %c0_95] : memref<9x64x64xbf16, #tpu.memory_space<vmem>>, vector<1x64x64xbf16>
    %125 = vector.shape_cast %124 : vector<1x64x64xbf16> to vector<64x64xbf16>
    %cst_96 = arith.constant dense<0.000000e+00> : vector<104x64xf32>
    %126 = tpu.matmul %123, %125, %cst_96 {dimension_numbers = #tpu.dot_dimension_numbers<[1], [0], [0], [1], [0, 0, 1, 1], [], []>} : vector<104x64xbf16>, vector<64x64xbf16>, vector<104x64xf32> -> vector<104x64xf32>
    %c0_97 = arith.constant 0 : index
    %c0_98 = arith.constant 0 : index
    %c0_99 = arith.constant 0 : index
    %127 = vector.load %arg10[%c0_97, %c0_98, %c0_99] : memref<9x104x64xf32, #tpu.memory_space<vmem>>, vector<1x104x64xf32>
    %128 = vector.shape_cast %127 : vector<1x104x64xf32> to vector<104x64xf32>
    %129 = vector.shape_cast %126 : vector<104x64xf32> to vector<1x104x64xf32>
    tpu.vector_store %arg10[%c0_97, %c0_98, %c0_99], %129 {strides = array<i32>} : memref<9x104x64xf32, #tpu.memory_space<vmem>>, vector<1x104x64xf32>,
    %c1_100 = arith.constant 1 : index
    %c0_101 = arith.constant 0 : index
    %c0_102 = arith.constant 0 : index
    %130 = vector.load %arg3[%c1_100, %c0_101, %c0_102] : memref<9x64x64xbf16, #tpu.memory_space<vmem>>, vector<1x64x64xbf16>
    %131 = vector.shape_cast %130 : vector<1x64x64xbf16> to vector<64x64xbf16>
    %cst_103 = arith.constant dense<0.000000e+00> : vector<104x64xf32>
    %132 = tpu.matmul %123, %131, %cst_103 {dimension_numbers = #tpu.dot_dimension_numbers<[1], [0], [0], [1], [0, 0, 1, 1], [], []>} : vector<104x64xbf16>, vector<64x64xbf16>, vector<104x64xf32> -> vector<104x64xf32>
    %c1_104 = arith.constant 1 : index
    %c0_105 = arith.constant 0 : index
    %c0_106 = arith.constant 0 : index
    %133 = vector.load %arg10[%c1_104, %c0_105, %c0_106] : memref<9x104x64xf32, #tpu.memory_space<vmem>>, vector<1x104x64xf32>
    %134 = vector.shape_cast %133 : vector<1x104x64xf32> to vector<104x64xf32>
    %135 = vector.shape_cast %132 : vector<104x64xf32> to vector<1x104x64xf32>
    tpu.vector_store %arg10[%c1_104, %c0_105, %c0_106], %135 {strides = array<i32>} : memref<9x104x64xf32, #tpu.memory_space<vmem>>, vector<1x104x64xf32>,
    %c2_107 = arith.constant 2 : index
    %c0_108 = arith.constant 0 : index
    %c0_109 = arith.constant 0 : index
    %136 = vector.load %arg3[%c2_107, %c0_108, %c0_109] : memref<9x64x64xbf16, #tpu.memory_space<vmem>>, vector<1x64x64xbf16>
    %137 = vector.shape_cast %136 : vector<1x64x64xbf16> to vector<64x64xbf16>
    %cst_110 = arith.constant dense<0.000000e+00> : vector<104x64xf32>
    %138 = tpu.matmul %123, %137, %cst_110 {dimension_numbers = #tpu.dot_dimension_numbers<[1], [0], [0], [1], [0, 0, 1, 1], [], []>} : vector<104x64xbf16>, vector<64x64xbf16>, vector<104x64xf32> -> vector<104x64xf32>
    %c2_111 = arith.constant 2 : index
    %c0_112 = arith.constant 0 : index
    %c0_113 = arith.constant 0 : index
    %139 = vector.load %arg10[%c2_111, %c0_112, %c0_113] : memref<9x104x64xf32, #tpu.memory_space<vmem>>, vector<1x104x64xf32>
    %140 = vector.shape_cast %139 : vector<1x104x64xf32> to vector<104x64xf32>
    %141 = vector.shape_cast %138 : vector<104x64xf32> to vector<1x104x64xf32>
    tpu.vector_store %arg10[%c2_111, %c0_112, %c0_113], %141 {strides = array<i32>} : memref<9x104x64xf32, #tpu.memory_space<vmem>>, vector<1x104x64xf32>,
    %c3_114 = arith.constant 3 : index
    %c0_115 = arith.constant 0 : index
    %c0_116 = arith.constant 0 : index
    %142 = vector.load %arg3[%c3_114, %c0_115, %c0_116] : memref<9x64x64xbf16, #tpu.memory_space<vmem>>, vector<1x64x64xbf16>
    %143 = vector.shape_cast %142 : vector<1x64x64xbf16> to vector<64x64xbf16>
    %cst_117 = arith.constant dense<0.000000e+00> : vector<104x64xf32>
    %144 = tpu.matmul %123, %143, %cst_117 {dimension_numbers = #tpu.dot_dimension_numbers<[1], [0], [0], [1], [0, 0, 1, 1], [], []>} : vector<104x64xbf16>, vector<64x64xbf16>, vector<104x64xf32> -> vector<104x64xf32>
    %c3_118 = arith.constant 3 : index
    %c0_119 = arith.constant 0 : index
    %c0_120 = arith.constant 0 : index
    %145 = vector.load %arg10[%c3_118, %c0_119, %c0_120] : memref<9x104x64xf32, #tpu.memory_space<vmem>>, vector<1x104x64xf32>
    %146 = vector.shape_cast %145 : vector<1x104x64xf32> to vector<104x64xf32>
    %147 = vector.shape_cast %144 : vector<104x64xf32> to vector<1x104x64xf32>
    tpu.vector_store %arg10[%c3_118, %c0_119, %c0_120], %147 {strides = array<i32>} : memref<9x104x64xf32, #tpu.memory_space<vmem>>, vector<1x104x64xf32>,
    %c4_121 = arith.constant 4 : index
    %c0_122 = arith.constant 0 : index
    %c0_123 = arith.constant 0 : index
    %148 = vector.load %arg3[%c4_121, %c0_122, %c0_123] : memref<9x64x64xbf16, #tpu.memory_space<vmem>>, vector<1x64x64xbf16>
    %149 = vector.shape_cast %148 : vector<1x64x64xbf16> to vector<64x64xbf16>
    %cst_124 = arith.constant dense<0.000000e+00> : vector<104x64xf32>
    %150 = tpu.matmul %123, %149, %cst_124 {dimension_numbers = #tpu.dot_dimension_numbers<[1], [0], [0], [1], [0, 0, 1, 1], [], []>} : vector<104x64xbf16>, vector<64x64xbf16>, vector<104x64xf32> -> vector<104x64xf32>
    %c4_125 = arith.constant 4 : index
    %c0_126 = arith.constant 0 : index
    %c0_127 = arith.constant 0 : index
    %151 = vector.load %arg10[%c4_125, %c0_126, %c0_127] : memref<9x104x64xf32, #tpu.memory_space<vmem>>, vector<1x104x64xf32>
    %152 = vector.shape_cast %151 : vector<1x104x64xf32> to vector<104x64xf32>
    %153 = vector.shape_cast %150 : vector<104x64xf32> to vector<1x104x64xf32>
    tpu.vector_store %arg10[%c4_125, %c0_126, %c0_127], %153 {strides = array<i32>} : memref<9x104x64xf32, #tpu.memory_space<vmem>>, vector<1x104x64xf32>,
    %c5_128 = arith.constant 5 : index
    %c0_129 = arith.constant 0 : index
    %c0_130 = arith.constant 0 : index
    %154 = vector.load %arg3[%c5_128, %c0_129, %c0_130] : memref<9x64x64xbf16, #tpu.memory_space<vmem>>, vector<1x64x64xbf16>
    %155 = vector.shape_cast %154 : vector<1x64x64xbf16> to vector<64x64xbf16>
    %cst_131 = arith.constant dense<0.000000e+00> : vector<104x64xf32>
    %156 = tpu.matmul %123, %155, %cst_131 {dimension_numbers = #tpu.dot_dimension_numbers<[1], [0], [0], [1], [0, 0, 1, 1], [], []>} : vector<104x64xbf16>, vector<64x64xbf16>, vector<104x64xf32> -> vector<104x64xf32>
    %c5_132 = arith.constant 5 : index
    %c0_133 = arith.constant 0 : index
    %c0_134 = arith.constant 0 : index
    %157 = vector.load %arg10[%c5_132, %c0_133, %c0_134] : memref<9x104x64xf32, #tpu.memory_space<vmem>>, vector<1x104x64xf32>
    %158 = vector.shape_cast %157 : vector<1x104x64xf32> to vector<104x64xf32>
    %159 = vector.shape_cast %156 : vector<104x64xf32> to vector<1x104x64xf32>
    tpu.vector_store %arg10[%c5_132, %c0_133, %c0_134], %159 {strides = array<i32>} : memref<9x104x64xf32, #tpu.memory_space<vmem>>, vector<1x104x64xf32>,
    %c6_135 = arith.constant 6 : index
    %c0_136 = arith.constant 0 : index
    %c0_137 = arith.constant 0 : index
    %160 = vector.load %arg3[%c6_135, %c0_136, %c0_137] : memref<9x64x64xbf16, #tpu.memory_space<vmem>>, vector<1x64x64xbf16>
    %161 = vector.shape_cast %160 : vector<1x64x64xbf16> to vector<64x64xbf16>
    %cst_138 = arith.constant dense<0.000000e+00> : vector<104x64xf32>
    %162 = tpu.matmul %123, %161, %cst_138 {dimension_numbers = #tpu.dot_dimension_numbers<[1], [0], [0], [1], [0, 0, 1, 1], [], []>} : vector<104x64xbf16>, vector<64x64xbf16>, vector<104x64xf32> -> vector<104x64xf32>
    %c6_139 = arith.constant 6 : index
    %c0_140 = arith.constant 0 : index
    %c0_141 = arith.constant 0 : index
    %163 = vector.load %arg10[%c6_139, %c0_140, %c0_141] : memref<9x104x64xf32, #tpu.memory_space<vmem>>, vector<1x104x64xf32>
    %164 = vector.shape_cast %163 : vector<1x104x64xf32> to vector<104x64xf32>
    %165 = vector.shape_cast %162 : vector<104x64xf32> to vector<1x104x64xf32>
    tpu.vector_store %arg10[%c6_139, %c0_140, %c0_141], %165 {strides = array<i32>} : memref<9x104x64xf32, #tpu.memory_space<vmem>>, vector<1x104x64xf32>,
    %c7_142 = arith.constant 7 : index
    %c0_143 = arith.constant 0 : index
    %c0_144 = arith.constant 0 : index
    %166 = vector.load %arg3[%c7_142, %c0_143, %c0_144] : memref<9x64x64xbf16, #tpu.memory_space<vmem>>, vector<1x64x64xbf16>
    %167 = vector.shape_cast %166 : vector<1x64x64xbf16> to vector<64x64xbf16>
    %cst_145 = arith.constant dense<0.000000e+00> : vector<104x64xf32>
    %168 = tpu.matmul %123, %167, %cst_145 {dimension_numbers = #tpu.dot_dimension_numbers<[1], [0], [0], [1], [0, 0, 1, 1], [], []>} : vector<104x64xbf16>, vector<64x64xbf16>, vector<104x64xf32> -> vector<104x64xf32>
    %c7_146 = arith.constant 7 : index
    %c0_147 = arith.constant 0 : index
    %c0_148 = arith.constant 0 : index
    %169 = vector.load %arg10[%c7_146, %c0_147, %c0_148] : memref<9x104x64xf32, #tpu.memory_space<vmem>>, vector<1x104x64xf32>
    %170 = vector.shape_cast %169 : vector<1x104x64xf32> to vector<104x64xf32>
    %171 = vector.shape_cast %168 : vector<104x64xf32> to vector<1x104x64xf32>
    tpu.vector_store %arg10[%c7_146, %c0_147, %c0_148], %171 {strides = array<i32>} : memref<9x104x64xf32, #tpu.memory_space<vmem>>, vector<1x104x64xf32>,
    %c8_149 = arith.constant 8 : index
    %c0_150 = arith.constant 0 : index
    %c0_151 = arith.constant 0 : index
    %172 = vector.load %arg3[%c8_149, %c0_150, %c0_151] : memref<9x64x64xbf16, #tpu.memory_space<vmem>>, vector<1x64x64xbf16>
    %173 = vector.shape_cast %172 : vector<1x64x64xbf16> to vector<64x64xbf16>
    %cst_152 = arith.constant dense<0.000000e+00> : vector<104x64xf32>
    %174 = tpu.matmul %123, %173, %cst_152 {dimension_numbers = #tpu.dot_dimension_numbers<[1], [0], [0], [1], [0, 0, 1, 1], [], []>} : vector<104x64xbf16>, vector<64x64xbf16>, vector<104x64xf32> -> vector<104x64xf32>
    %c8_153 = arith.constant 8 : index
    %c0_154 = arith.constant 0 : index
    %c0_155 = arith.constant 0 : index
    %175 = vector.load %arg10[%c8_153, %c0_154, %c0_155] : memref<9x104x64xf32, #tpu.memory_space<vmem>>, vector<1x104x64xf32>
    %176 = vector.shape_cast %175 : vector<1x104x64xf32> to vector<104x64xf32>
    %177 = vector.shape_cast %174 : vector<104x64xf32> to vector<1x104x64xf32>
    tpu.vector_store %arg10[%c8_153, %c0_154, %c0_155], %177 {strides = array<i32>} : memref<9x104x64xf32, #tpu.memory_space<vmem>>, vector<1x104x64xf32>,
    %c0_i32_156 = arith.constant 0 : i32
    %c8_i32_157 = arith.constant 8 : i32
    %178 = arith.addi %c0_i32_156, %c8_i32_157 : i32
    %c1_i32_158 = arith.constant 1 : i32
    %179:2 = scf.for %arg11 = %c0_i32_156 to %178 step %c1_i32_158 iter_args(%arg12 = %37, %arg13 = %37) -> (vector<8x64xf32>, vector<8x64xf32>)  : i32 {
      %cst_175 = arith.constant 0.000000e+00 : f32
      %201 = vector.broadcast %cst_175 : f32 to vector<8x64xf32>
      %c0_i32_176 = arith.constant 0 : i32
      %202 = arith.addi %arg11, %c0_i32_176 : i32
      %c10_i32 = arith.constant 10 : i32
      %203 = arith.muli %202, %c10_i32 : i32
      %c0_i32_177 = arith.constant 0 : i32
      %204 = arith.addi %203, %c0_i32_177 : i32
      %c0_178 = arith.constant 0 : index
      %205 = arith.index_cast %204 : i32 to index
      %c0_179 = arith.constant 0 : index
      %206 = vector.load %arg10[%c0_178, %205, %c0_179] : memref<9x104x64xf32, #tpu.memory_space<vmem>>, vector<1x8x64xf32>
      %207 = vector.shape_cast %206 : vector<1x8x64xf32> to vector<8x64xf32>
      %208 = arith.addf %201, %207 : vector<8x64xf32>
      %c0_i32_180 = arith.constant 0 : i32
      %209 = arith.addi %arg11, %c0_i32_180 : i32
      %c10_i32_181 = arith.constant 10 : i32
      %210 = arith.muli %209, %c10_i32_181 : i32
      %c1_i32_182 = arith.constant 1 : i32
      %211 = arith.addi %210, %c1_i32_182 : i32
      %c1_183 = arith.constant 1 : index
      %212 = arith.index_cast %211 : i32 to index
      %c0_184 = arith.constant 0 : index
      %213 = vector.load %arg10[%c1_183, %212, %c0_184] : memref<9x104x64xf32, #tpu.memory_space<vmem>>, vector<1x8x64xf32>
      %214 = vector.shape_cast %213 : vector<1x8x64xf32> to vector<8x64xf32>
      %215 = arith.addf %208, %214 : vector<8x64xf32>
      %c0_i32_185 = arith.constant 0 : i32
      %216 = arith.addi %arg11, %c0_i32_185 : i32
      %c10_i32_186 = arith.constant 10 : i32
      %217 = arith.muli %216, %c10_i32_186 : i32
      %c2_i32 = arith.constant 2 : i32
      %218 = arith.addi %217, %c2_i32 : i32
      %c2_187 = arith.constant 2 : index
      %219 = arith.index_cast %218 : i32 to index
      %c0_188 = arith.constant 0 : index
      %220 = vector.load %arg10[%c2_187, %219, %c0_188] : memref<9x104x64xf32, #tpu.memory_space<vmem>>, vector<1x8x64xf32>
      %221 = vector.shape_cast %220 : vector<1x8x64xf32> to vector<8x64xf32>
      %222 = arith.addf %215, %221 : vector<8x64xf32>
      %c1_i32_189 = arith.constant 1 : i32
      %223 = arith.addi %arg11, %c1_i32_189 : i32
      %c10_i32_190 = arith.constant 10 : i32
      %224 = arith.muli %223, %c10_i32_190 : i32
      %c0_i32_191 = arith.constant 0 : i32
      %225 = arith.addi %224, %c0_i32_191 : i32
      %c3_192 = arith.constant 3 : index
      %226 = arith.index_cast %225 : i32 to index
      %c0_193 = arith.constant 0 : index
      %227 = vector.load %arg10[%c3_192, %226, %c0_193] : memref<9x104x64xf32, #tpu.memory_space<vmem>>, vector<1x8x64xf32>
      %228 = vector.shape_cast %227 : vector<1x8x64xf32> to vector<8x64xf32>
      %229 = arith.addf %222, %228 : vector<8x64xf32>
      %c1_i32_194 = arith.constant 1 : i32
      %230 = arith.addi %arg11, %c1_i32_194 : i32
      %c10_i32_195 = arith.constant 10 : i32
      %231 = arith.muli %230, %c10_i32_195 : i32
      %c1_i32_196 = arith.constant 1 : i32
      %232 = arith.addi %231, %c1_i32_196 : i32
      %c4_197 = arith.constant 4 : index
      %233 = arith.index_cast %232 : i32 to index
      %c0_198 = arith.constant 0 : index
      %234 = vector.load %arg10[%c4_197, %233, %c0_198] : memref<9x104x64xf32, #tpu.memory_space<vmem>>, vector<1x8x64xf32>
      %235 = vector.shape_cast %234 : vector<1x8x64xf32> to vector<8x64xf32>
      %236 = arith.addf %229, %235 : vector<8x64xf32>
      %c1_i32_199 = arith.constant 1 : i32
      %237 = arith.addi %arg11, %c1_i32_199 : i32
      %c10_i32_200 = arith.constant 10 : i32
      %238 = arith.muli %237, %c10_i32_200 : i32
      %c2_i32_201 = arith.constant 2 : i32
      %239 = arith.addi %238, %c2_i32_201 : i32
      %c5_202 = arith.constant 5 : index
      %240 = arith.index_cast %239 : i32 to index
      %c0_203 = arith.constant 0 : index
      %241 = vector.load %arg10[%c5_202, %240, %c0_203] : memref<9x104x64xf32, #tpu.memory_space<vmem>>, vector<1x8x64xf32>
      %242 = vector.shape_cast %241 : vector<1x8x64xf32> to vector<8x64xf32>
      %243 = arith.addf %236, %242 : vector<8x64xf32>
      %c2_i32_204 = arith.constant 2 : i32
      %244 = arith.addi %arg11, %c2_i32_204 : i32
      %c10_i32_205 = arith.constant 10 : i32
      %245 = arith.muli %244, %c10_i32_205 : i32
      %c0_i32_206 = arith.constant 0 : i32
      %246 = arith.addi %245, %c0_i32_206 : i32
      %c6_207 = arith.constant 6 : index
      %247 = arith.index_cast %246 : i32 to index
      %c0_208 = arith.constant 0 : index
      %248 = vector.load %arg10[%c6_207, %247, %c0_208] : memref<9x104x64xf32, #tpu.memory_space<vmem>>, vector<1x8x64xf32>
      %249 = vector.shape_cast %248 : vector<1x8x64xf32> to vector<8x64xf32>
      %250 = arith.addf %243, %249 : vector<8x64xf32>
      %c2_i32_209 = arith.constant 2 : i32
      %251 = arith.addi %arg11, %c2_i32_209 : i32
      %c10_i32_210 = arith.constant 10 : i32
      %252 = arith.muli %251, %c10_i32_210 : i32
      %c1_i32_211 = arith.constant 1 : i32
      %253 = arith.addi %252, %c1_i32_211 : i32
      %c7_212 = arith.constant 7 : index
      %254 = arith.index_cast %253 : i32 to index
      %c0_213 = arith.constant 0 : index
      %255 = vector.load %arg10[%c7_212, %254, %c0_213] : memref<9x104x64xf32, #tpu.memory_space<vmem>>, vector<1x8x64xf32>
      %256 = vector.shape_cast %255 : vector<1x8x64xf32> to vector<8x64xf32>
      %257 = arith.addf %250, %256 : vector<8x64xf32>
      %c2_i32_214 = arith.constant 2 : i32
      %258 = arith.addi %arg11, %c2_i32_214 : i32
      %c10_i32_215 = arith.constant 10 : i32
      %259 = arith.muli %258, %c10_i32_215 : i32
      %c2_i32_216 = arith.constant 2 : i32
      %260 = arith.addi %259, %c2_i32_216 : i32
      %c8_217 = arith.constant 8 : index
      %261 = arith.index_cast %260 : i32 to index
      %c0_218 = arith.constant 0 : index
      %262 = vector.load %arg10[%c8_217, %261, %c0_218] : memref<9x104x64xf32, #tpu.memory_space<vmem>>, vector<1x8x64xf32>
      %263 = vector.shape_cast %262 : vector<1x8x64xf32> to vector<8x64xf32>
      %264 = arith.addf %257, %263 : vector<8x64xf32>
      %c8_i32_219 = arith.constant 8 : i32
      %265 = arith.muli %arg11, %c8_i32_219 : i32
      %266 = tpu.assume_multiple %265, 8 : i32
      %267 = arith.index_cast %266 : i32 to index
      %c0_220 = arith.constant 0 : index
      %268 = vector.load %arg8[%267, %c0_220] : memref<64x64xf32, #tpu.memory_space<vmem>>, vector<8x64xf32>
      tpu.vector_store %arg8[%267, %c0_220], %264 {strides = array<i32>} : memref<64x64xf32, #tpu.memory_space<vmem>>, vector<8x64xf32>,
      %269 = arith.addf %arg12, %264 : vector<8x64xf32>
      %270 = arith.mulf %264, %264 : vector<8x64xf32>
      %271 = arith.addf %arg13, %270 : vector<8x64xf32>
      scf.yield %269, %271 : vector<8x64xf32>, vector<8x64xf32>
    }
    %c8_i32_159 = arith.constant 8 : i32
    %c0_160 = arith.constant 0 : index
    %c0_161 = arith.constant 0 : index
    %180 = vector.load %arg6[%c0_160, %c0_161] : memref<1x64xf32, #tpu.memory_space<vmem>>, vector<1x64xf32>
    %c0_162 = arith.constant 0 : index
    %c0_163 = arith.constant 0 : index
    %181 = vector.load %arg7[%c0_162, %c0_163] : memref<1x64xf32, #tpu.memory_space<vmem>>, vector<1x64xf32>
    %cst_164 = arith.constant dense<0.000000e+00> : vector<8x64xf32>
    %182 = tpu.matmul %179#0, %36, %cst_164 {dimension_numbers = #tpu.dot_dimension_numbers<[1], [0], [0], [1], [0, 0, 1, 1], [], []>} : vector<8x64xf32>, vector<64x64xf32>, vector<8x64xf32> -> vector<8x64xf32>
    %cst_165 = arith.constant dense<0.000000e+00> : vector<64xf32>
    %183 = vector.multi_reduction <add>, %182, %cst_165 [0] : vector<8x64xf32> to vector<64xf32>
    %184 = vector.shape_cast %183 : vector<64xf32> to vector<1x64xf32>
    %cst_166 = arith.constant 0.001953125 : f32
    %185 = vector.broadcast %cst_166 : f32 to vector<1x64xf32>
    %186 = arith.mulf %184, %185 : vector<1x64xf32>
    %cst_167 = arith.constant dense<0.000000e+00> : vector<8x64xf32>
    %187 = tpu.matmul %179#1, %36, %cst_167 {dimension_numbers = #tpu.dot_dimension_numbers<[1], [0], [0], [1], [0, 0, 1, 1], [], []>} : vector<8x64xf32>, vector<64x64xf32>, vector<8x64xf32> -> vector<8x64xf32>
    %cst_168 = arith.constant dense<0.000000e+00> : vector<64xf32>
    %188 = vector.multi_reduction <add>, %187, %cst_168 [0] : vector<8x64xf32> to vector<64xf32>
    %189 = vector.shape_cast %188 : vector<64xf32> to vector<1x64xf32>
    %cst_169 = arith.constant 0.001953125 : f32
    %190 = vector.broadcast %cst_169 : f32 to vector<1x64xf32>
    %191 = arith.mulf %189, %190 : vector<1x64xf32>
    %192 = arith.mulf %186, %186 : vector<1x64xf32>
    %193 = arith.subf %191, %192 : vector<1x64xf32>
    %cst_170 = arith.constant 9.99999974E-6 : f32
    %194 = vector.broadcast %cst_170 : f32 to vector<1x64xf32>
    %195 = arith.addf %193, %194 : vector<1x64xf32>
    %196 = math.rsqrt %195 : vector<1x64xf32>
    %197 = arith.mulf %180, %196 : vector<1x64xf32>
    %198 = arith.mulf %186, %197 : vector<1x64xf32>
    %199 = arith.subf %181, %198 : vector<1x64xf32>
    %c0_i32_171 = arith.constant 0 : i32
    %c8_i32_172 = arith.constant 8 : i32
    %200 = arith.addi %c0_i32_171, %c8_i32_172 : i32
    %c1_i32_173 = arith.constant 1 : i32
    scf.for %arg11 = %c0_i32_171 to %200 step %c1_i32_173  : i32 {
      %c8_i32_175 = arith.constant 8 : i32
      %201 = arith.muli %arg11, %c8_i32_175 : i32
      %202 = tpu.assume_multiple %201, 8 : i32
      %203 = arith.index_cast %202 : i32 to index
      %c0_176 = arith.constant 0 : index
      %204 = vector.load %arg8[%203, %c0_176] : memref<64x64xf32, #tpu.memory_space<vmem>>, vector<8x64xf32>
      %205 = vector.broadcast %197 : vector<1x64xf32> to vector<8x64xf32>
      %206 = arith.mulf %204, %205 : vector<8x64xf32>
      %207 = vector.broadcast %199 : vector<1x64xf32> to vector<8x64xf32>
      %208 = arith.addf %206, %207 : vector<8x64xf32>
      %209 = arith.index_cast %202 : i32 to index
      %c0_177 = arith.constant 0 : index
      %210 = vector.load %arg8[%209, %c0_177] : memref<64x64xf32, #tpu.memory_space<vmem>>, vector<8x64xf32>
      tpu.vector_store %arg8[%209, %c0_177], %208 {strides = array<i32>} : memref<64x64xf32, #tpu.memory_space<vmem>>, vector<8x64xf32>,
    }
    %c8_i32_174 = arith.constant 8 : i32
    return
  }
  func.func @transform_0(%arg0: i32) -> (i32, i32) {
    %c0_i32 = arith.constant 0 : i32
    %c0_i32_0 = arith.constant 0 : i32
    return %arg0, %c0_i32 : i32, i32
  }
  func.func @transform_1(%arg0: i32) -> (i32, i32, i32) {
    %c0_i32 = arith.constant 0 : i32
    %c0_i32_0 = arith.constant 0 : i32
    %c0_i32_1 = arith.constant 0 : i32
    %c0_i32_2 = arith.constant 0 : i32
    return %c0_i32, %c0_i32_0, %c0_i32_1 : i32, i32, i32
  }
  func.func @transform_2(%arg0: i32) -> (i32, i32, i32) {
    %c0_i32 = arith.constant 0 : i32
    %c0_i32_0 = arith.constant 0 : i32
    %c0_i32_1 = arith.constant 0 : i32
    %c0_i32_2 = arith.constant 0 : i32
    return %c0_i32, %c0_i32_0, %c0_i32_1 : i32, i32, i32
  }
  func.func @transform_3(%arg0: i32) -> (i32, i32) {
    %c0_i32 = arith.constant 0 : i32
    %c0_i32_0 = arith.constant 0 : i32
    %c0_i32_1 = arith.constant 0 : i32
    return %c0_i32, %c0_i32_0 : i32, i32
  }
  func.func @transform_4(%arg0: i32) -> (i32, i32) {
    %c0_i32 = arith.constant 0 : i32
    %c0_i32_0 = arith.constant 0 : i32
    %c0_i32_1 = arith.constant 0 : i32
    return %c0_i32, %c0_i32_0 : i32, i32
  }
  func.func @transform_5(%arg0: i32) -> (i32, i32) {
    %c0_i32 = arith.constant 0 : i32
    %c0_i32_0 = arith.constant 0 : i32
    %c0_i32_1 = arith.constant 0 : i32
    return %c0_i32, %c0_i32_0 : i32, i32
  }
  func.func @transform_6(%arg0: i32) -> (i32, i32) {
    %c0_i32 = arith.constant 0 : i32
    %c0_i32_0 = arith.constant 0 : i32
    %c0_i32_1 = arith.constant 0 : i32
    return %c0_i32, %c0_i32_0 : i32, i32
  }
  func.func @transform_7(%arg0: i32) -> (i32, i32) {
    %c0_i32 = arith.constant 0 : i32
    %c0_i32_0 = arith.constant 0 : i32
    return %arg0, %c0_i32 : i32, i32
  }
}

</mosaic_0001>

<llo_original>
// kernel: double_conv_forward.1
$region0: #{double_conv_forward.1}
  #allocation0 [shape = 'u32[]', space=smem, size = 0x4, offset = 0x4, fixed_abs, tag = 'smem constant byte address 0x4 - core index']
  #allocation1 [shape = 'u32[144,128]{1,0:T(1,128)}', space=vmem, size = 0x12000, scoped, tag = 'internal scratch']
  #allocation2 [shape = 'f32[104,64]{1,0:T(8,128)}', space=vmem, size = 0xd000, scoped, tag = 'scratch operand']
  #allocation3 [shape = 'f32[9,104,64]{2,1,0:T(8,128)}', space=vmem, size = 0x75000, scoped, tag = 'scratch operand']
  %s0 = inlined_call_operand.vmem [shape: bf16[208,32], index: 0, kind: input, shape index: {}]
  %s1 = inlined_call_operand.vmem [shape: bf16[9,32,64], index: 1, kind: input, shape index: {}]
  %s2 = inlined_call_operand.vmem [shape: bf16[9,64,64], index: 2, kind: input, shape index: {}]
  %s3 = inlined_call_operand.vmem [shape: f32[1,64], index: 3, kind: input, shape index: {}]
  %s4 = inlined_call_operand.vmem [shape: f32[1,64], index: 4, kind: input, shape index: {}]
  %s5 = inlined_call_operand.vmem [shape: f32[1,64], index: 5, kind: input, shape index: {}]
  %s6 = inlined_call_operand.vmem [shape: f32[1,64], index: 6, kind: input, shape index: {}]
  %s7 = inlined_call_operand.vmem [shape: f32[128,64], index: 7, kind: output, shape index: {}]
  %s8 = sld [smem:[#allocation0]]
  $region89: #{double_conv_forward.1} parent=0
    _
  %s10 = ssub.s32 1, %s8
  %s11 = scalar_select 0, %s10, %s8
  loop: start=0, step=1, limit=4
  $region2: #{double_conv_forward.1} parent=0 // loop_pre_header
    _
  $region3: #{double_conv_forward.1} parent=0 // loop_header
    %s13 = sphi 0, %s17
    %p14 = scmp.ge.s32.totalorder %s13, 4
    %s23 = sphi 0, %s25
    %s26 = sphi 0, %s23
    %s27 = sphi 0, %s26
    %s43 = sphi 0, %s27
    %s47 = sphi 0, %s47
    %s49 = sphi 0, %s47
    %s50 = sphi 0, %s49
    %s64 = sphi 0, %s50
    %s68 = sphi 0, %s68
    %s70 = sphi 0, %s68
    %s71 = sphi 0, %s70
    %s85 = sphi 0, %s71
    %s89 = sphi 0, %s89
    %s91 = sphi 0, %s89
    %s92 = sphi 0, %s91
    %s106 = sphi 0, %s92
    %s110 = sphi 0, %s110
    %s112 = sphi 0, %s110
    %s113 = sphi 0, %s112
    %s127 = sphi 0, %s113
    %s131 = sphi 0, %s131
    %s133 = sphi 0, %s131
    %s134 = sphi 0, %s133
    %s148 = sphi 0, %s134
    %s152 = sphi 0, %s152
    %s154 = sphi 0, %s152
    %s155 = sphi 0, %s154
    %s169 = sphi 0, %s155
    %s175 = sphi 0, %s177
    %s178 = sphi 0, %s175
    %s179 = sphi 0, %s178
    %s195 = sphi 0, %s179
  $region4: #{double_conv_forward.1} parent=0 // loop_header_branch
    %16 = sbr.rel (%p14) target = $region8
  $region5: #{double_conv_forward.1} parent=0 // loop_body
    %s18 = ssub.s32 %s13, 1
    %s19 = ssub.s32 %s13, 2
    %s20 = sadd.s32 %s13, 1
    %s21 = ssub.s32 %s13, %s20
    %p22 = scmp.eq.s32.totalorder %s21, 0
    %s24 = sadd.s32 %s23, 1
    %s25 = scalar_select %p22, %s23, %s24
    %p28 = pneg %p22
    %p29 = scmp.eq.s32.totalorder %s13, 1
    %p30 = por %p28, %p29
    %p31 = scmp.ne.s32.totalorder %s23, %s26
    %p32 = scmp.eq.s32.totalorder %s13, 0
    %p33 = por %p31, %p32
    %p34 = scmp.ne.s32.totalorder %s23, %s26
    %p35 = scmp.eq.s32.totalorder %s18, 1
    %p36 = por %p34, %p35
    %p37 = scmp.ne.s32.totalorder %s26, %s27
    %p38 = scmp.eq.s32.totalorder %s18, 0
    %p39 = por %p37, %p38
    %p40 = scmp.ne.s32.totalorder %s26, %s27
    %p41 = scmp.eq.s32.totalorder %s19, 1
    %p42 = por %p40, %p41
    %p44 = scmp.ne.s32.totalorder %s27, %s43
    %p45 = scmp.eq.s32.totalorder %s19, 0
    %p46 = por %p44, %p45
    %s48 = sadd.s32 %s47, 1
    %p51 = scmp.eq.s32.totalorder %s13, 1
    %p52 = scmp.ne.s32.totalorder %s47, %s49
    %p53 = scmp.eq.s32.totalorder %s13, 0
    %p54 = por %p52, %p53
    %p55 = scmp.ne.s32.totalorder %s47, %s49
    %p56 = scmp.eq.s32.totalorder %s18, 1
    %p57 = por %p55, %p56
    %p58 = scmp.ne.s32.totalorder %s49, %s50
    %p59 = scmp.eq.s32.totalorder %s18, 0
    %p60 = por %p58, %p59
    %p61 = scmp.ne.s32.totalorder %s49, %s50
    %p62 = scmp.eq.s32.totalorder %s19, 1
    %p63 = por %p61, %p62
    %p65 = scmp.ne.s32.totalorder %s50, %s64
    %p66 = scmp.eq.s32.totalorder %s19, 0
    %p67 = por %p65, %p66
    %s69 = sadd.s32 %s68, 1
    %p72 = scmp.eq.s32.totalorder %s13, 1
    %p73 = scmp.ne.s32.totalorder %s68, %s70
    %p74 = scmp.eq.s32.totalorder %s13, 0
    %p75 = por %p73, %p74
    %p76 = scmp.ne.s32.totalorder %s68, %s70
    %p77 = scmp.eq.s32.totalorder %s18, 1
    %p78 = por %p76, %p77
    %p79 = scmp.ne.s32.totalorder %s70, %s71
    %p80 = scmp.eq.s32.totalorder %s18, 0
    %p81 = por %p79, %p80
    %p82 = scmp.ne.s32.totalorder %s70, %s71
    %p83 = scmp.eq.s32.totalorder %s19, 1
    %p84 = por %p82, %p83
    %p86 = scmp.ne.s32.totalorder %s71, %s85
    %p87 = scmp.eq.s32.totalorder %s19, 0
    %p88 = por %p86, %p87
    %s90 = sadd.s32 %s89, 1
    %p93 = scmp.eq.s32.totalorder %s13, 1
    %p94 = scmp.ne.s32.totalorder %s89, %s91
    %p95 = scmp.eq.s32.totalorder %s13, 0
    %p96 = por %p94, %p95
    %p97 = scmp.ne.s32.totalorder %s89, %s91
    %p98 = scmp.eq.s32.totalorder %s18, 1
    %p99 = por %p97, %p98
    %p100 = scmp.ne.s32.totalorder %s91, %s92
    %p101 = scmp.eq.s32.totalorder %s18, 0
    %p102 = por %p100, %p101
    %p103 = scmp.ne.s32.totalorder %s91, %s92
    %p104 = scmp.eq.s32.totalorder %s19, 1
    %p105 = por %p103, %p104
    %p107 = scmp.ne.s32.totalorder %s92, %s106
    %p108 = scmp.eq.s32.totalorder %s19, 0
    %p109 = por %p107, %p108
    %s111 = sadd.s32 %s110, 1
    %p114 = scmp.eq.s32.totalorder %s13, 1
    %p115 = scmp.ne.s32.totalorder %s110, %s112
    %p116 = scmp.eq.s32.totalorder %s13, 0
    %p117 = por %p115, %p116
    %p118 = scmp.ne.s32.totalorder %s110, %s112
    %p119 = scmp.eq.s32.totalorder %s18, 1
    %p120 = por %p118, %p119
    %p121 = scmp.ne.s32.totalorder %s112, %s113
    %p122 = scmp.eq.s32.totalorder %s18, 0
    %p123 = por %p121, %p122
    %p124 = scmp.ne.s32.totalorder %s112, %s113
    %p125 = scmp.eq.s32.totalorder %s19, 1
    %p126 = por %p124, %p125
    %p128 = scmp.ne.s32.totalorder %s113, %s127
    %p129 = scmp.eq.s32.totalorder %s19, 0
    %p130 = por %p128, %p129
    %s132 = sadd.s32 %s131, 1
    %p135 = scmp.eq.s32.totalorder %s13, 1
    %p136 = scmp.ne.s32.totalorder %s131, %s133
    %p137 = scmp.eq.s32.totalorder %s13, 0
    %p138 = por %p136, %p137
    %p139 = scmp.ne.s32.totalorder %s131, %s133
    %p140 = scmp.eq.s32.totalorder %s18, 1
    %p141 = por %p139, %p140
    %p142 = scmp.ne.s32.totalorder %s133, %s134
    %p143 = scmp.eq.s32.totalorder %s18, 0
    %p144 = por %p142, %p143
    %p145 = scmp.ne.s32.totalorder %s133, %s134
    %p146 = scmp.eq.s32.totalorder %s19, 1
    %p147 = por %p145, %p146
    %p149 = scmp.ne.s32.totalorder %s134, %s148
    %p150 = scmp.eq.s32.totalorder %s19, 0
    %p151 = por %p149, %p150
    %s153 = sadd.s32 %s152, 1
    %p156 = scmp.eq.s32.totalorder %s13, 1
    %p157 = scmp.ne.s32.totalorder %s152, %s154
    %p158 = scmp.eq.s32.totalorder %s13, 0
    %p159 = por %p157, %p158
    %p160 = scmp.ne.s32.totalorder %s152, %s154
    %p161 = scmp.eq.s32.totalorder %s18, 1
    %p162 = por %p160, %p161
    %p163 = scmp.ne.s32.totalorder %s154, %s155
    %p164 = scmp.eq.s32.totalorder %s18, 0
    %p165 = por %p163, %p164
    %p166 = scmp.ne.s32.totalorder %s154, %s155
    %p167 = scmp.eq.s32.totalorder %s19, 1
    %p168 = por %p166, %p167
    %p170 = scmp.ne.s32.totalorder %s155, %s169
    %p171 = scmp.eq.s32.totalorder %s19, 0
    %p172 = por %p170, %p171
    %s173 = ssub.s32 %s13, %s20
    %p174 = scmp.eq.s32.totalorder %s173, 0
    %s176 = sadd.s32 %s175, 1
    %s177 = scalar_select %p174, %s175, %s176
    %p180 = pneg %p174
    %p181 = scmp.eq.s32.totalorder %s13, 1
    %p182 = por %p180, %p181
    %p183 = scmp.ne.s32.totalorder %s175, %s178
    %p184 = scmp.eq.s32.totalorder %s13, 0
    %p185 = por %p183, %p184
    %p186 = scmp.ne.s32.totalorder %s175, %s178
    %p187 = scmp.eq.s32.totalorder %s18, 1
    %p188 = por %p186, %p187
    %p189 = scmp.ne.s32.totalorder %s178, %s179
    %p190 = scmp.eq.s32.totalorder %s18, 0
    %p191 = por %p189, %p190
    %p192 = scmp.ne.s32.totalorder %s178, %s179
    %p193 = scmp.eq.s32.totalorder %s19, 1
    %p194 = por %p192, %p193
    %p196 = scmp.ne.s32.totalorder %s179, %s195
    %p197 = scmp.eq.s32.totalorder %s19, 0
    %p198 = por %p196, %p197
    %p199 = scmp.le.s32.totalorder 1, %s13
    %p200 = scmp.lt.s32.totalorder %s13, 3
    %p201 = pnand %p199, %p200
    %p202 = pneg %p201
    // Predicated region
    $region9: #{double_conv_forward.1} parent=5 // pred_check
      _
    $region10: #{double_conv_forward.1} parent=5 // pred_check_branch
      %204 = sbr.rel (%p201) target = $region12
    $region11: #{double_conv_forward.1} parent=5 // pred_region
      %s205 = ssub.s32 %s13, 1
      // Predicated region
      $region13: #{double_conv_forward.1} parent=11 // pred_check
        %p206 = pneg %p60
      $region14: #{double_conv_forward.1} parent=11 // pred_check_branch
        %208 = sbr.rel (%p206) target = $region16
      $region15: #{double_conv_forward.1} parent=11 // pred_region
        _
      $region16: #{double_conv_forward.1} parent=11 // pred_fallthru
        _
      // Predicated region
      $region17: #{double_conv_forward.1} parent=11 // pred_check
        %p209 = pneg %p81
      $region18: #{double_conv_forward.1} parent=11 // pred_check_branch
        %211 = sbr.rel (%p209) target = $region20
      $region19: #{double_conv_forward.1} parent=11 // pred_region
        _
      $region20: #{double_conv_forward.1} parent=11 // pred_fallthru
        _
      // Predicated region
      $region21: #{double_conv_forward.1} parent=11 // pred_check
        %p212 = pneg %p102
      $region22: #{double_conv_forward.1} parent=11 // pred_check_branch
        %214 = sbr.rel (%p212) target = $region24
      $region23: #{double_conv_forward.1} parent=11 // pred_region
        _
      $region24: #{double_conv_forward.1} parent=11 // pred_fallthru
        _
      // Predicated region
      $region25: #{double_conv_forward.1} parent=11 // pred_check
        %p215 = pneg %p123
      $region26: #{double_conv_forward.1} parent=11 // pred_check_branch
        %217 = sbr.rel (%p215) target = $region28
      $region27: #{double_conv_forward.1} parent=11 // pred_region
        _
      $region28: #{double_conv_forward.1} parent=11 // pred_fallthru
        _
      // Predicated region
      $region29: #{double_conv_forward.1} parent=11 // pred_check
        %p218 = pneg %p144
      $region30: #{double_conv_forward.1} parent=11 // pred_check_branch
        %220 = sbr.rel (%p218) target = $region32
      $region31: #{double_conv_forward.1} parent=11 // pred_region
        _
      $region32: #{double_conv_forward.1} parent=11 // pred_fallthru
        _
      // Predicated region
      $region33: #{double_conv_forward.1} parent=11 // pred_check
        %p221 = pneg %p165
      $region34: #{double_conv_forward.1} parent=11 // pred_check_branch
        %223 = sbr.rel (%p221) target = $region36
      $region35: #{double_conv_forward.1} parent=11 // pred_region
        _
      $region36: #{double_conv_forward.1} parent=11 // pred_fallthru
        _
    $region12: #{double_conv_forward.1} parent=5 // pred_fallthru
      _
    %p224 = scmp.lt.s32.totalorder %s13, 2
    // Predicated region
    $region37: #{double_conv_forward.1} parent=5 // pred_check
      %p225 = pneg %p224
    $region38: #{double_conv_forward.1} parent=5 // pred_check_branch
      %227 = sbr.rel (%p225) target = $region40
    $region39: #{double_conv_forward.1} parent=5 // pred_region
      // Predicated region
      $region41: #{double_conv_forward.1} parent=39 // pred_check
        %p228 = pneg %p33
      $region42: #{double_conv_forward.1} parent=39 // pred_check_branch
        %230 = sbr.rel (%p228) target = $region44
      $region43: #{double_conv_forward.1} parent=39 // pred_region
        %s231 = smul.u32 13, %s13
        %p232 = scmp.lt.s32.totalorder %s231, 25
        %s233 = scalar_select %p232, %s231, 25
        %s234 = smul.addr %s233, 4
        %s235 = scalar_lea.vmem %s0, %s234
        %s236 = smul.u32 13, %s13
      $region44: #{double_conv_forward.1} parent=39 // pred_fallthru
        _
    $region40: #{double_conv_forward.1} parent=5 // pred_fallthru
      _
    %p237 = scmp.le.s32.totalorder 1, %s13
    %p238 = scmp.lt.s32.totalorder %s13, 3
    %p239 = pnand %p237, %p238
    %p240 = pneg %p239
    // Predicated region
    $region45: #{double_conv_forward.1} parent=5 // pred_check
      _
    $region46: #{double_conv_forward.1} parent=5 // pred_check_branch
      %242 = sbr.rel (%p239) target = $region48
    $region47: #{double_conv_forward.1} parent=5 // pred_region
      %s243 = ssub.s32 %s13, 1
      %s244 = smul.u32 13, %s18
      %p245 = scmp.lt.s32.totalorder %s244, 25
      %s246 = scalar_select %p245, %s244, 25
      %s247 = smul.addr %s246, 4
      %s248 = scalar_lea.vmem %s0, %s247
      %p249 = pneg %p39
      %p250 = pneg %p36
      %p251 = pneg %p60
      %p252 = pneg %p57
      %p253 = pneg %p81
      %p254 = pneg %p78
      %p255 = pneg %p102
      %p256 = pneg %p99
      %p257 = pneg %p123
      %p258 = pneg %p120
      %p259 = pneg %p144
      %p260 = pneg %p141
      %p261 = pneg %p165
      %p262 = pneg %p162
      %p263 = pneg %p191
      %p264 = pneg %p188
      %s265 = smul.u32 8, %s18
      %p266 = scmp.lt.s32.totalorder %s265, 15
      %s267 = scalar_select %p266, %s265, 15
      %s268 = smul.addr %s267, 8
      %s269 = scalar_lea.vmem %s7, %s268
      %s270 = smul.u32 13, %s18
      %p271 = scmp.lt.s32.totalorder %s270, 25
      %s272 = scalar_select %p271, %s270, 25
      %s273 = smul.addr %s272, 4
      %s274 = scalar_lea.vmem %s0, %s273
      %s275 = smul.u32 13, %s18
      %s276 = smul.u32 8, %s18
      %p277 = scmp.lt.s32.totalorder %s276, 15
      %s278 = scalar_select %p277, %s276, 15
      %s279 = smul.addr %s278, 8
      %s280 = scalar_lea.vmem %s7, %s279
      %s281 = smul.u32 8, %s18
      %v283 = vlaneseq
      %v284 = vshrl.u32 %v283, 7
      %v285 = vadd.s32 %v284, 8
      %v286 = vadd.s32 %v284, 16
      %v287 = vadd.s32 %v284, 24
      %v288 = vadd.s32 %v284, 32
      %v289 = vadd.s32 %v284, 40
      %v290 = vadd.s32 %v284, 48
      %v291 = vadd.s32 %v284, 56
      %v292 = vlaneseq
      %v293 = vand.u32 %v292, 127
      %vm294 = vcmp.lt.s32.totalorder %v284, 0
      %v295 = vsub.s32 0, %v284
      %v296 = vsel %vm294, %v295, %v284
      %v297 = vshrl.u32 %v296, 3
      %v298 = vand.u32 %v296, 7
      %v299 = vsub.s32 0, %v298
      %v300 = vsel %vm294, %v299, %v298
      %vm301 = vcmp.lt.s32.totalorder %v285, 0
      %v302 = vsub.s32 0, %v285
      %v303 = vsel %vm301, %v302, %v285
      %v304 = vshrl.u32 %v303, 3
      %v305 = vand.u32 %v303, 7
      %v306 = vsub.s32 0, %v305
      %v307 = vsel %vm301, %v306, %v305
      %vm308 = vcmp.lt.s32.totalorder %v286, 0
      %v309 = vsub.s32 0, %v286
      %v310 = vsel %vm308, %v309, %v286
      %v311 = vshrl.u32 %v310, 3
      %v312 = vand.u32 %v310, 7
      %v313 = vsub.s32 0, %v312
      %v314 = vsel %vm308, %v313, %v312
      %vm315 = vcmp.lt.s32.totalorder %v287, 0
      %v316 = vsub.s32 0, %v287
      %v317 = vsel %vm315, %v316, %v287
      %v318 = vshrl.u32 %v317, 3
      %v319 = vand.u32 %v317, 7
      %v320 = vsub.s32 0, %v319
      %v321 = vsel %vm315, %v320, %v319
      %vm322 = vcmp.lt.s32.totalorder %v288, 0
      %v323 = vsub.s32 0, %v288
      %v324 = vsel %vm322, %v323, %v288
      %v325 = vshrl.u32 %v324, 3
      %v326 = vand.u32 %v324, 7
      %v327 = vsub.s32 0, %v326
      %v328 = vsel %vm322, %v327, %v326
      %vm329 = vcmp.lt.s32.totalorder %v289, 0
      %v330 = vsub.s32 0, %v289
      %v331 = vsel %vm329, %v330, %v289
      %v332 = vshrl.u32 %v331, 3
      %v333 = vand.u32 %v331, 7
      %v334 = vsub.s32 0, %v333
      %v335 = vsel %vm329, %v334, %v333
      %vm336 = vcmp.lt.s32.totalorder %v290, 0
      %v337 = vsub.s32 0, %v290
      %v338 = vsel %vm336, %v337, %v290
      %v339 = vshrl.u32 %v338, 3
      %v340 = vand.u32 %v338, 7
      %v341 = vsub.s32 0, %v340
      %v342 = vsel %vm336, %v341, %v340
      %vm343 = vcmp.lt.s32.totalorder %v291, 0
      %v344 = vsub.s32 0, %v291
      %v345 = vsel %vm343, %v344, %v291
      %v346 = vshrl.u32 %v345, 3
      %v347 = vand.u32 %v345, 7
      %v348 = vsub.s32 0, %v347
      %v349 = vsel %vm343, %v348, %v347
      %vm350 = vcmp.ne.s32.totalorder %v300, 0
      %vm351 = vcmp.ne.s32.totalorder %v307, 0
      %vm352 = vcmp.ne.s32.totalorder %v314, 0
      %vm353 = vcmp.ne.s32.totalorder %v321, 0
      %vm354 = vcmp.ne.s32.totalorder %v328, 0
      %vm355 = vcmp.ne.s32.totalorder %v335, 0
      %vm356 = vcmp.ne.s32.totalorder %v342, 0
      %vm357 = vcmp.ne.s32.totalorder %v349, 0
      %vm358 = vcmp.lt.s32.totalorder %v300, 0
      %vm359 = vcmp.lt.s32.totalorder %v307, 0
      %vm360 = vcmp.lt.s32.totalorder %v314, 0
      %vm361 = vcmp.lt.s32.totalorder %v321, 0
      %vm362 = vcmp.lt.s32.totalorder %v328, 0
      %vm363 = vcmp.lt.s32.totalorder %v335, 0
      %vm364 = vcmp.lt.s32.totalorder %v342, 0
      %vm365 = vcmp.lt.s32.totalorder %v349, 0
      %vm366 = vmand %vm358, %vm350
      %vm367 = vmand %vm359, %vm351
      %vm368 = vmand %vm360, %vm352
      %vm369 = vmand %vm361, %vm353
      %vm370 = vmand %vm362, %vm354
      %vm371 = vmand %vm363, %vm355
      %vm372 = vmand %vm364, %vm356
      %vm373 = vmand %vm365, %vm357
      %v374 = vadd.s32 %v300, 8
      %v375 = vadd.s32 %v307, 8
      %v376 = vadd.s32 %v314, 8
      %v377 = vadd.s32 %v321, 8
      %v378 = vadd.s32 %v328, 8
      %v379 = vadd.s32 %v335, 8
      %v380 = vadd.s32 %v342, 8
      %v381 = vadd.s32 %v349, 8
      %v382 = vsel %vm366, %v374, %v300
      %v383 = vsel %vm367, %v375, %v307
      %v384 = vsel %vm368, %v376, %v314
      %v385 = vsel %vm369, %v377, %v321
      %v386 = vsel %vm370, %v378, %v328
      %v387 = vsel %vm371, %v379, %v335
      %v388 = vsel %vm372, %v380, %v342
      %v389 = vsel %vm373, %v381, %v349
      %vm390 = vcmp.lt.s32.totalorder %v293, 0
      %v391 = vsub.s32 0, %v293
      %v392 = vsel %vm390, %v391, %v293
      %v393 = vshrl.u32 %v392, 3
      %v394 = vand.u32 %v392, 7
      %v395 = vsub.s32 0, %v394
      %v396 = vsel %vm390, %v395, %v394
      %vm397 = vcmp.ne.s32.totalorder %v396, 0
      %vm398 = vcmp.lt.s32.totalorder %v396, 0
      %vm399 = vmand %vm398, %vm397
      %v400 = vadd.s32 %v396, 8
      %v401 = vsel %vm399, %v400, %v396
      %vm402 = vcmp.eq.s32.totalorder %v382, %v401
      %vm403 = vcmp.eq.s32.totalorder %v383, %v401
      %vm404 = vcmp.eq.s32.totalorder %v384, %v401
      %vm405 = vcmp.eq.s32.totalorder %v385, %v401
      %vm406 = vcmp.eq.s32.totalorder %v386, %v401
      %vm407 = vcmp.eq.s32.totalorder %v387, %v401
      %vm408 = vcmp.eq.s32.totalorder %v388, %v401
      %vm409 = vcmp.eq.s32.totalorder %v389, %v401
      %v410 = vsel %vm402, 1, 0
      %v411 = vsel %vm403, 1, 0
      %v412 = vsel %vm404, 1, 0
      %v413 = vsel %vm405, 1, 0
      %v414 = vsel %vm406, 1, 0
      %v415 = vsel %vm407, 1, 0
      %v416 = vsel %vm408, 1, 0
      %v417 = vsel %vm409, 1, 0
      %v418 = vcvt.s32.f32 %v410
      %v419 = vcvt.s32.f32 %v411
      %v420 = vcvt.s32.f32 %v412
      %v421 = vcvt.s32.f32 %v413
      %v422 = vcvt.s32.f32 %v414
      %v423 = vcvt.s32.f32 %v415
      %v424 = vcvt.s32.f32 %v416
      %v425 = vcvt.s32.f32 %v417
      %v426 = vld [vmem:[%s274] sm:$0xf]
      %v427 = vld [vmem:[%s274 + $0x4] sm:$0xf]
      %v428 = vld [vmem:[%s274 + $0x8] sm:$0xf]
      %v429 = vld [vmem:[%s274 + $0xc] sm:$0xf]
      %v430 = vld [vmem:[%s274 + $0x10] sm:$0xf]
      %v431 = vld [vmem:[%s274 + $0x14] sm:$0xf]
      %v432 = vld [vmem:[%s274 + $0x18] sm:$0xf]
      %v433 = vld [vmem:[%s274 + $0x1c] sm:$0xf]
      %v434 = vld [vmem:[%s274 + $0x20] sm:$0xf]
      %v435 = vld [vmem:[%s274 + $0x24] sm:$0xf]
      %v436 = vld [vmem:[%s274 + $0x28] sm:$0xf]
      %v437 = vld [vmem:[%s274 + $0x2c] sm:$0xf]
      %v438 = vld [vmem:[%s274 + $0x30] sm:$0xf]
      %v439 = vld [vmem:[%s1] sm:$0xf]
      %v440 = vld [vmem:[%s1 + $0x4] sm:$0xf]
      %v441 = vld [vmem:[%s1 + $0x8] sm:$0xf]
      %v442 = vld [vmem:[%s1 + $0xc] sm:$0xf]
      %v456 = vunpack.c.l.b16 %v426
      %v457 = vunpack.c.l.b16 %v427
      %v458 = vunpack.c.l.b16 %v428
      %v459 = vunpack.c.l.b16 %v429
      %v460 = vunpack.c.l.b16 %v430
      %v461 = vunpack.c.l.b16 %v431
      %v462 = vunpack.c.l.b16 %v432
      %v463 = vunpack.c.l.b16 %v433
      %v464 = vunpack.c.l.b16 %v434
      %v465 = vunpack.c.l.b16 %v435
      %v466 = vunpack.c.l.b16 %v436
      %v467 = vunpack.c.l.b16 %v437
      %v468 = vunpack.c.l.b16 %v438
      %v469 = vpack.c.b16 %v457, %v456
      %v470 = vpack.c.b16 %v459, %v458
      %v471 = vpack.c.b16 %v461, %v460
      %v472 = vpack.c.b16 %v463, %v462
      %v473 = vpack.c.b16 %v465, %v464
      %v474 = vpack.c.b16 %v467, %v466
      %v475 = vpack.c.b16 %v468, %v468
      %v480 = vunpack.c.l.b16 %v439
      %v481 = vunpack.c.l.b16 %v440
      %v482 = vunpack.c.l.b16 %v441
      %v483 = vunpack.c.l.b16 %v442
      %v484 = vpack.c.b16 %v481, %v480
      %v485 = vpack.c.b16 %v483, %v482
      %vm488 = vcmask 261120
      %v490 = vsel %vm488, %v469, 0
      %v493 = vsel %vm488, %v470, 0
      %v496 = vsel %vm488, %v471, 0
      %v499 = vsel %vm488, %v472, 0
      %v502 = vsel %vm488, %v473, 0
      %v505 = vsel %vm488, %v474, 0
      %v508 = vsel %vm488, %v475, 0
      %510 = vmatprep.subr.bf16.mxu0 0
      %511 = vmatpush1.bf16.msra.mxu0 0
      %512 = vmatprep.subr.bf16.mxu0 0
      %513 = vmatpush1.bf16.msra.mxu0 0
      %514 = vmatprep.subr.bf16.mxu0 0
      %515 = vmatpush1.bf16.msra.mxu0 0
      %516 = vmatprep.subr.bf16.mxu0 0
      %517 = vmatpush1.bf16.msra.mxu0 0
      %518 = vmatprep.subr.bf16.mxu0 0
      %519 = vmatpush1.bf16.msra.mxu0 0
      %520 = vmatprep.subr.bf16.mxu0 0
      %521 = vmatpush1.bf16.msra.mxu0 0
      %522 = vmatprep.subr.bf16.mxu0 0
      %523 = vmatpush1.bf16.msra.mxu0 %v485
      %524 = vmatprep.subr.bf16.mxu0 0
      %525 = vmatpush1.bf16.msra.mxu0 %v484
      %526 = vmatprep.subr.bf16.mxu0 0
      %527 = vmatpush2.bf16.msra.mxu0 0
      %528 = vmatprep.subr.bf16.mxu0 0
      %529 = vmatpush2.bf16.msra.mxu0 0
      %530 = vmatprep.subr.bf16.mxu0 0
      %531 = vmatpush2.bf16.msra.mxu0 0
      %532 = vmatprep.subr.bf16.mxu0 0
      %533 = vmatpush2.bf16.msra.mxu0 0
      %534 = vmatprep.subr.bf16.mxu0 0
      %535 = vmatpush2.bf16.msra.mxu0 0
      %536 = vmatprep.subr.bf16.mxu0 0
      %537 = vmatpush2.bf16.msra.mxu0 0
      %538 = vmatprep.subr.bf16.mxu0 0
      %539 = vmatpush2.bf16.msra.mxu0 0
      %540 = vmatprep.subr.bf16.mxu0 0
      %541 = vmatpush2.bf16.msra.mxu0 0
      %542 = vmatprep.mubr.bf16.mxu0 0
      %543 = vmatmul.mubr.bf16.gmra.mxu0 %v490
      %v544 = vpop.f32.mrf.mxu0
      %v545 = vadd.f32 0.0, %v544
      %v546 = vpop.f32.mrf.mxu0
      %v547 = vpop.f32.mrf.mxu0
      %v548 = vadd.f32 0.0, %v547
      %v549 = vpop.f32.mrf.mxu0
      %550 = vmatprep.mubr.bf16.mxu0 0
      %551 = vmatmul.mubr.bf16.gmra.mxu0 %v493
      %v552 = vpop.f32.mrf.mxu0
      %v553 = vadd.f32 0.0, %v552
      %v554 = vpop.f32.mrf.mxu0
      %v555 = vpop.f32.mrf.mxu0
      %v556 = vadd.f32 0.0, %v555
      %v557 = vpop.f32.mrf.mxu0
      %558 = vmatprep.mubr.bf16.mxu0 0
      %559 = vmatmul.mubr.bf16.gmra.mxu0 %v496
      %v560 = vpop.f32.mrf.mxu0
      %v561 = vadd.f32 0.0, %v560
      %v562 = vpop.f32.mrf.mxu0
      %v563 = vpop.f32.mrf.mxu0
      %v564 = vadd.f32 0.0, %v563
      %v565 = vpop.f32.mrf.mxu0
      %566 = vmatprep.mubr.bf16.mxu0 0
      %567 = vmatmul.mubr.bf16.gmra.mxu0 %v499
      %v568 = vpop.f32.mrf.mxu0
      %v569 = vadd.f32 0.0, %v568
      %v570 = vpop.f32.mrf.mxu0
      %v571 = vpop.f32.mrf.mxu0
      %v572 = vadd.f32 0.0, %v571
      %v573 = vpop.f32.mrf.mxu0
      %574 = vmatprep.mubr.bf16.mxu0 0
      %575 = vmatmul.mubr.bf16.gmra.mxu0 %v502
      %v576 = vpop.f32.mrf.mxu0
      %v577 = vadd.f32 0.0, %v576
      %v578 = vpop.f32.mrf.mxu0
      %v579 = vpop.f32.mrf.mxu0
      %v580 = vadd.f32 0.0, %v579
      %v581 = vpop.f32.mrf.mxu0
      %582 = vmatprep.mubr.bf16.mxu0 0
      %583 = vmatmul.mubr.bf16.gmra.mxu0 %v505
      %v584 = vpop.f32.mrf.mxu0
      %v585 = vadd.f32 0.0, %v584
      %v586 = vpop.f32.mrf.mxu0
      %v587 = vpop.f32.mrf.mxu0
      %v588 = vadd.f32 0.0, %v587
      %v589 = vpop.f32.mrf.mxu0
      %590 = vmatprep.mubr.bf16.mxu0 0
      %591 = vmatmul.mubr.bf16.gmra.mxu0 %v508
      %v592 = vpop.f32.mrf.mxu0
      %v593 = vadd.f32 0.0, %v592
      %v594 = vpop.f32.mrf.mxu0
      %v595 = vpop.f32.mrf.mxu0
      %v596 = vpop.f32.mrf.mxu0
      %597 = vdwg.mxu0
      %vm598 = vcmask 523264
      %599 = vst.msk [vmem:[#allocation3] sm:$0xff] %vm598, %v545
      %600 = vst.msk [vmem:[#allocation3 + $0x8] sm:$0xff] %vm598, %v548
      %601 = vst.msk [vmem:[#allocation3 + $0x10] sm:$0xff] %vm598, %v553
      %602 = vst.msk [vmem:[#allocation3 + $0x18] sm:$0xff] %vm598, %v556
      %603 = vst.msk [vmem:[#allocation3 + $0x20] sm:$0xff] %vm598, %v561
      %604 = vst.msk [vmem:[#allocation3 + $0x28] sm:$0xff] %vm598, %v564
      %605 = vst.msk [vmem:[#allocation3 + $0x30] sm:$0xff] %vm598, %v569
      %606 = vst.msk [vmem:[#allocation3 + $0x38] sm:$0xff] %vm598, %v572
      %607 = vst.msk [vmem:[#allocation3 + $0x40] sm:$0xff] %vm598, %v577
      %608 = vst.msk [vmem:[#allocation3 + $0x48] sm:$0xff] %vm598, %v580
      %609 = vst.msk [vmem:[#allocation3 + $0x50] sm:$0xff] %vm598, %v585
      %610 = vst.msk [vmem:[#allocation3 + $0x58] sm:$0xff] %vm598, %v588
      %611 = vst.msk [vmem:[#allocation3 + $0x60] sm:$0xff] %vm598, %v593
      %s612 = scalar_lea.vmem %s1, 16
      %v613 = vld [vmem:[%s612] sm:$0xf]
      %v614 = vld [vmem:[%s612 + $0x4] sm:$0xf]
      %v615 = vld [vmem:[%s612 + $0x8] sm:$0xf]
      %v616 = vld [vmem:[%s612 + $0xc] sm:$0xf]
      %v621 = vunpack.c.l.b16 %v613
      %v622 = vunpack.c.l.b16 %v614
      %v623 = vunpack.c.l.b16 %v615
      %v624 = vunpack.c.l.b16 %v616
      %v625 = vpack.c.b16 %v622, %v621
      %v626 = vpack.c.b16 %v624, %v623
      %629 = vmatprep.subr.bf16.mxu0 0
      %630 = vmatpush1.bf16.msra.mxu0 0
      %631 = vmatprep.subr.bf16.mxu0 0
      %632 = vmatpush1.bf16.msra.mxu0 0
      %633 = vmatprep.subr.bf16.mxu0 0
      %634 = vmatpush1.bf16.msra.mxu0 0
      %635 = vmatprep.subr.bf16.mxu0 0
      %636 = vmatpush1.bf16.msra.mxu0 0
      %637 = vmatprep.subr.bf16.mxu0 0
      %638 = vmatpush1.bf16.msra.mxu0 0
      %639 = vmatprep.subr.bf16.mxu0 0
      %640 = vmatpush1.bf16.msra.mxu0 0
      %641 = vmatprep.subr.bf16.mxu0 0
      %642 = vmatpush1.bf16.msra.mxu0 %v626
      %643 = vmatprep.subr.bf16.mxu0 0
      %644 = vmatpush1.bf16.msra.mxu0 %v625
      %645 = vmatprep.subr.bf16.mxu0 0
      %646 = vmatpush2.bf16.msra.mxu0 0
      %647 = vmatprep.subr.bf16.mxu0 0
      %648 = vmatpush2.bf16.msra.mxu0 0
      %649 = vmatprep.subr.bf16.mxu0 0
      %650 = vmatpush2.bf16.msra.mxu0 0
      %651 = vmatprep.subr.bf16.mxu0 0
      %652 = vmatpush2.bf16.msra.mxu0 0
      %653 = vmatprep.subr.bf16.mxu0 0
      %654 = vmatpush2.bf16.msra.mxu0 0
      %655 = vmatprep.subr.bf16.mxu0 0
      %656 = vmatpush2.bf16.msra.mxu0 0
      %657 = vmatprep.subr.bf16.mxu0 0
      %658 = vmatpush2.bf16.msra.mxu0 0
      %659 = vmatprep.subr.bf16.mxu0 0
      %660 = vmatpush2.bf16.msra.mxu0 0
      %661 = vmatprep.mubr.bf16.mxu0 0
      %662 = vmatmul.mubr.bf16.gmra.mxu0 %v490
      %v663 = vpop.f32.mrf.mxu0
      %v664 = vadd.f32 0.0, %v663
      %v665 = vpop.f32.mrf.mxu0
      %v666 = vpop.f32.mrf.mxu0
      %v667 = vadd.f32 0.0, %v666
      %v668 = vpop.f32.mrf.mxu0
      %669 = vmatprep.mubr.bf16.mxu0 0
      %670 = vmatmul.mubr.bf16.gmra.mxu0 %v493
      %v671 = vpop.f32.mrf.mxu0
      %v672 = vadd.f32 0.0, %v671
      %v673 = vpop.f32.mrf.mxu0
      %v674 = vpop.f32.mrf.mxu0
      %v675 = vadd.f32 0.0, %v674
      %v676 = vpop.f32.mrf.mxu0
      %677 = vmatprep.mubr.bf16.mxu0 0
      %678 = vmatmul.mubr.bf16.gmra.mxu0 %v496
      %v679 = vpop.f32.mrf.mxu0
      %v680 = vadd.f32 0.0, %v679
      %v681 = vpop.f32.mrf.mxu0
      %v682 = vpop.f32.mrf.mxu0
      %v683 = vadd.f32 0.0, %v682
      %v684 = vpop.f32.mrf.mxu0
      %685 = vmatprep.mubr.bf16.mxu0 0
      %686 = vmatmul.mubr.bf16.gmra.mxu0 %v499
      %v687 = vpop.f32.mrf.mxu0
      %v688 = vadd.f32 0.0, %v687
      %v689 = vpop.f32.mrf.mxu0
      %v690 = vpop.f32.mrf.mxu0
      %v691 = vadd.f32 0.0, %v690
      %v692 = vpop.f32.mrf.mxu0
      %693 = vmatprep.mubr.bf16.mxu0 0
      %694 = vmatmul.mubr.bf16.gmra.mxu0 %v502
      %v695 = vpop.f32.mrf.mxu0
      %v696 = vadd.f32 0.0, %v695
      %v697 = vpop.f32.mrf.mxu0
      %v698 = vpop.f32.mrf.mxu0
      %v699 = vadd.f32 0.0, %v698
      %v700 = vpop.f32.mrf.mxu0
      %701 = vmatprep.mubr.bf16.mxu0 0
      %702 = vmatmul.mubr.bf16.gmra.mxu0 %v505
      %v703 = vpop.f32.mrf.mxu0
      %v704 = vadd.f32 0.0, %v703
      %v705 = vpop.f32.mrf.mxu0
      %v706 = vpop.f32.mrf.mxu0
      %v707 = vadd.f32 0.0, %v706
      %v708 = vpop.f32.mrf.mxu0
      %709 = vmatprep.mubr.bf16.mxu0 0
      %710 = vmatmul.mubr.bf16.gmra.mxu0 %v508
      %v711 = vpop.f32.mrf.mxu0
      %v712 = vadd.f32 0.0, %v711
      %v713 = vpop.f32.mrf.mxu0
      %v714 = vpop.f32.mrf.mxu0
      %v715 = vpop.f32.mrf.mxu0
      %716 = vdwg.mxu0
      %s717 = scalar_lea.vmem [#allocation3], 104
      %718 = vst.msk [vmem:[%s717] sm:$0xff] %vm598, %v664
      %719 = vst.msk [vmem:[%s717 + $0x8] sm:$0xff] %vm598, %v667
      %720 = vst.msk [vmem:[%s717 + $0x10] sm:$0xff] %vm598, %v672
      %721 = vst.msk [vmem:[%s717 + $0x18] sm:$0xff] %vm598, %v675
      %722 = vst.msk [vmem:[%s717 + $0x20] sm:$0xff] %vm598, %v680
      %723 = vst.msk [vmem:[%s717 + $0x28] sm:$0xff] %vm598, %v683
      %724 = vst.msk [vmem:[%s717 + $0x30] sm:$0xff] %vm598, %v688
      %725 = vst.msk [vmem:[%s717 + $0x38] sm:$0xff] %vm598, %v691
      %726 = vst.msk [vmem:[%s717 + $0x40] sm:$0xff] %vm598, %v696
      %727 = vst.msk [vmem:[%s717 + $0x48] sm:$0xff] %vm598, %v699
      %728 = vst.msk [vmem:[%s717 + $0x50] sm:$0xff] %vm598, %v704
      %729 = vst.msk [vmem:[%s717 + $0x58] sm:$0xff] %vm598, %v707
      %730 = vst.msk [vmem:[%s717 + $0x60] sm:$0xff] %vm598, %v712
      %s731 = scalar_lea.vmem %s1, 32
      %v732 = vld [vmem:[%s731] sm:$0xf]
      %v733 = vld [vmem:[%s731 + $0x4] sm:$0xf]
      %v734 = vld [vmem:[%s731 + $0x8] sm:$0xf]
      %v735 = vld [vmem:[%s731 + $0xc] sm:$0xf]
      %v740 = vunpack.c.l.b16 %v732
      %v741 = vunpack.c.l.b16 %v733
      %v742 = vunpack.c.l.b16 %v734
      %v743 = vunpack.c.l.b16 %v735
      %v744 = vpack.c.b16 %v741, %v740
      %v745 = vpack.c.b16 %v743, %v742
      %748 = vmatprep.subr.bf16.mxu0 0
      %749 = vmatpush1.bf16.msra.mxu0 0
      %750 = vmatprep.subr.bf16.mxu0 0
      %751 = vmatpush1.bf16.msra.mxu0 0
      %752 = vmatprep.subr.bf16.mxu0 0
      %753 = vmatpush1.bf16.msra.mxu0 0
      %754 = vmatprep.subr.bf16.mxu0 0
      %755 = vmatpush1.bf16.msra.mxu0 0
      %756 = vmatprep.subr.bf16.mxu0 0
      %757 = vmatpush1.bf16.msra.mxu0 0
      %758 = vmatprep.subr.bf16.mxu0 0
      %759 = vmatpush1.bf16.msra.mxu0 0
      %760 = vmatprep.subr.bf16.mxu0 0
      %761 = vmatpush1.bf16.msra.mxu0 %v745
      %762 = vmatprep.subr.bf16.mxu0 0
      %763 = vmatpush1.bf16.msra.mxu0 %v744
      %764 = vmatprep.subr.bf16.mxu0 0
      %765 = vmatpush2.bf16.msra.mxu0 0
      %766 = vmatprep.subr.bf16.mxu0 0
      %767 = vmatpush2.bf16.msra.mxu0 0
      %768 = vmatprep.subr.bf16.mxu0 0
      %769 = vmatpush2.bf16.msra.mxu0 0
      %770 = vmatprep.subr.bf16.mxu0 0
      %771 = vmatpush2.bf16.msra.mxu0 0
      %772 = vmatprep.subr.bf16.mxu0 0
      %773 = vmatpush2.bf16.msra.mxu0 0
      %774 = vmatprep.subr.bf16.mxu0 0
      %775 = vmatpush2.bf16.msra.mxu0 0
      %776 = vmatprep.subr.bf16.mxu0 0
      %777 = vmatpush2.bf16.msra.mxu0 0
      %778 = vmatprep.subr.bf16.mxu0 0
      %779 = vmatpush2.bf16.msra.mxu0 0
      %780 = vmatprep.mubr.bf16.mxu0 0
      %781 = vmatmul.mubr.bf16.gmra.mxu0 %v490
      %v782 = vpop.f32.mrf.mxu0
      %v783 = vadd.f32 0.0, %v782
      %v784 = vpop.f32.mrf.mxu0
      %v785 = vpop.f32.mrf.mxu0
      %v786 = vadd.f32 0.0, %v785
      %v787 = vpop.f32.mrf.mxu0
      %788 = vmatprep.mubr.bf16.mxu0 0
      %789 = vmatmul.mubr.bf16.gmra.mxu0 %v493
      %v790 = vpop.f32.mrf.mxu0
      %v791 = vadd.f32 0.0, %v790
      %v792 = vpop.f32.mrf.mxu0
      %v793 = vpop.f32.mrf.mxu0
      %v794 = vadd.f32 0.0, %v793
      %v795 = vpop.f32.mrf.mxu0
      %796 = vmatprep.mubr.bf16.mxu0 0
      %797 = vmatmul.mubr.bf16.gmra.mxu0 %v496
      %v798 = vpop.f32.mrf.mxu0
      %v799 = vadd.f32 0.0, %v798
      %v800 = vpop.f32.mrf.mxu0
      %v801 = vpop.f32.mrf.mxu0
      %v802 = vadd.f32 0.0, %v801
      %v803 = vpop.f32.mrf.mxu0
      %804 = vmatprep.mubr.bf16.mxu0 0
      %805 = vmatmul.mubr.bf16.gmra.mxu0 %v499
      %v806 = vpop.f32.mrf.mxu0
      %v807 = vadd.f32 0.0, %v806
      %v808 = vpop.f32.mrf.mxu0
      %v809 = vpop.f32.mrf.mxu0
      %v810 = vadd.f32 0.0, %v809
      %v811 = vpop.f32.mrf.mxu0
      %812 = vmatprep.mubr.bf16.mxu0 0
      %813 = vmatmul.mubr.bf16.gmra.mxu0 %v502
      %v814 = vpop.f32.mrf.mxu0
      %v815 = vadd.f32 0.0, %v814
      %v816 = vpop.f32.mrf.mxu0
      %v817 = vpop.f32.mrf.mxu0
      %v818 = vadd.f32 0.0, %v817
      %v819 = vpop.f32.mrf.mxu0
      %820 = vmatprep.mubr.bf16.mxu0 0
      %821 = vmatmul.mubr.bf16.gmra.mxu0 %v505
      %v822 = vpop.f32.mrf.mxu0
      %v823 = vadd.f32 0.0, %v822
      %v824 = vpop.f32.mrf.mxu0
      %v825 = vpop.f32.mrf.mxu0
      %v826 = vadd.f32 0.0, %v825
      %v827 = vpop.f32.mrf.mxu0
      %828 = vmatprep.mubr.bf16.mxu0 0
      %829 = vmatmul.mubr.bf16.gmra.mxu0 %v508
      %v830 = vpop.f32.mrf.mxu0
      %v831 = vadd.f32 0.0, %v830
      %v832 = vpop.f32.mrf.mxu0
      %v833 = vpop.f32.mrf.mxu0
      %v834 = vpop.f32.mrf.mxu0
      %835 = vdwg.mxu0
      %s836 = scalar_lea.vmem [#allocation3], 208
      %837 = vst.msk [vmem:[%s836] sm:$0xff] %vm598, %v783
      %838 = vst.msk [vmem:[%s836 + $0x8] sm:$0xff] %vm598, %v786
      %839 = vst.msk [vmem:[%s836 + $0x10] sm:$0xff] %vm598, %v791
      %840 = vst.msk [vmem:[%s836 + $0x18] sm:$0xff] %vm598, %v794
      %841 = vst.msk [vmem:[%s836 + $0x20] sm:$0xff] %vm598, %v799
      %842 = vst.msk [vmem:[%s836 + $0x28] sm:$0xff] %vm598, %v802
      %843 = vst.msk [vmem:[%s836 + $0x30] sm:$0xff] %vm598, %v807
      %844 = vst.msk [vmem:[%s836 + $0x38] sm:$0xff] %vm598, %v810
      %845 = vst.msk [vmem:[%s836 + $0x40] sm:$0xff] %vm598, %v815
      %846 = vst.msk [vmem:[%s836 + $0x48] sm:$0xff] %vm598, %v818
      %847 = vst.msk [vmem:[%s836 + $0x50] sm:$0xff] %vm598, %v823
      %848 = vst.msk [vmem:[%s836 + $0x58] sm:$0xff] %vm598, %v826
      %849 = vst.msk [vmem:[%s836 + $0x60] sm:$0xff] %vm598, %v831
      %s850 = scalar_lea.vmem %s1, 48
      %v851 = vld [vmem:[%s850] sm:$0xf]
      %v852 = vld [vmem:[%s850 + $0x4] sm:$0xf]
      %v853 = vld [vmem:[%s850 + $0x8] sm:$0xf]
      %v854 = vld [vmem:[%s850 + $0xc] sm:$0xf]
      %v859 = vunpack.c.l.b16 %v851
      %v860 = vunpack.c.l.b16 %v852
      %v861 = vunpack.c.l.b16 %v853
      %v862 = vunpack.c.l.b16 %v854
      %v863 = vpack.c.b16 %v860, %v859
      %v864 = vpack.c.b16 %v862, %v861
      %867 = vmatprep.subr.bf16.mxu0 0
      %868 = vmatpush1.bf16.msra.mxu0 0
      %869 = vmatprep.subr.bf16.mxu0 0
      %870 = vmatpush1.bf16.msra.mxu0 0
      %871 = vmatprep.subr.bf16.mxu0 0
      %872 = vmatpush1.bf16.msra.mxu0 0
      %873 = vmatprep.subr.bf16.mxu0 0
      %874 = vmatpush1.bf16.msra.mxu0 0
      %875 = vmatprep.subr.bf16.mxu0 0
      %876 = vmatpush1.bf16.msra.mxu0 0
      %877 = vmatprep.subr.bf16.mxu0 0
      %878 = vmatpush1.bf16.msra.mxu0 0
      %879 = vmatprep.subr.bf16.mxu0 0
      %880 = vmatpush1.bf16.msra.mxu0 %v864
      %881 = vmatprep.subr.bf16.mxu0 0
      %882 = vmatpush1.bf16.msra.mxu0 %v863
      %883 = vmatprep.subr.bf16.mxu0 0
      %884 = vmatpush2.bf16.msra.mxu0 0
      %885 = vmatprep.subr.bf16.mxu0 0
      %886 = vmatpush2.bf16.msra.mxu0 0
      %887 = vmatprep.subr.bf16.mxu0 0
      %888 = vmatpush2.bf16.msra.mxu0 0
      %889 = vmatprep.subr.bf16.mxu0 0
      %890 = vmatpush2.bf16.msra.mxu0 0
      %891 = vmatprep.subr.bf16.mxu0 0
      %892 = vmatpush2.bf16.msra.mxu0 0
      %893 = vmatprep.subr.bf16.mxu0 0
      %894 = vmatpush2.bf16.msra.mxu0 0
      %895 = vmatprep.subr.bf16.mxu0 0
      %896 = vmatpush2.bf16.msra.mxu0 0
      %897 = vmatprep.subr.bf16.mxu0 0
      %898 = vmatpush2.bf16.msra.mxu0 0
      %899 = vmatprep.mubr.bf16.mxu0 0
      %900 = vmatmul.mubr.bf16.gmra.mxu0 %v490
      %v901 = vpop.f32.mrf.mxu0
      %v902 = vadd.f32 0.0, %v901
      %v903 = vpop.f32.mrf.mxu0
      %v904 = vpop.f32.mrf.mxu0
      %v905 = vadd.f32 0.0, %v904
      %v906 = vpop.f32.mrf.mxu0
      %907 = vmatprep.mubr.bf16.mxu0 0
      %908 = vmatmul.mubr.bf16.gmra.mxu0 %v493
      %v909 = vpop.f32.mrf.mxu0
      %v910 = vadd.f32 0.0, %v909
      %v911 = vpop.f32.mrf.mxu0
      %v912 = vpop.f32.mrf.mxu0
      %v913 = vadd.f32 0.0, %v912
      %v914 = vpop.f32.mrf.mxu0
      %915 = vmatprep.mubr.bf16.mxu0 0
      %916 = vmatmul.mubr.bf16.gmra.mxu0 %v496
      %v917 = vpop.f32.mrf.mxu0
      %v918 = vadd.f32 0.0, %v917
      %v919 = vpop.f32.mrf.mxu0
      %v920 = vpop.f32.mrf.mxu0
      %v921 = vadd.f32 0.0, %v920
      %v922 = vpop.f32.mrf.mxu0
      %923 = vmatprep.mubr.bf16.mxu0 0
      %924 = vmatmul.mubr.bf16.gmra.mxu0 %v499
      %v925 = vpop.f32.mrf.mxu0
      %v926 = vadd.f32 0.0, %v925
      %v927 = vpop.f32.mrf.mxu0
      %v928 = vpop.f32.mrf.mxu0
      %v929 = vadd.f32 0.0, %v928
      %v930 = vpop.f32.mrf.mxu0
      %931 = vmatprep.mubr.bf16.mxu0 0
      %932 = vmatmul.mubr.bf16.gmra.mxu0 %v502
      %v933 = vpop.f32.mrf.mxu0
      %v934 = vadd.f32 0.0, %v933
      %v935 = vpop.f32.mrf.mxu0
      %v936 = vpop.f32.mrf.mxu0
      %v937 = vadd.f32 0.0, %v936
      %v938 = vpop.f32.mrf.mxu0
      %939 = vmatprep.mubr.bf16.mxu0 0
      %940 = vmatmul.mubr.bf16.gmra.mxu0 %v505
      %v941 = vpop.f32.mrf.mxu0
      %v942 = vadd.f32 0.0, %v941
      %v943 = vpop.f32.mrf.mxu0
      %v944 = vpop.f32.mrf.mxu0
      %v945 = vadd.f32 0.0, %v944
      %v946 = vpop.f32.mrf.mxu0
      %947 = vmatprep.mubr.bf16.mxu0 0
      %948 = vmatmul.mubr.bf16.gmra.mxu0 %v508
      %v949 = vpop.f32.mrf.mxu0
      %v950 = vadd.f32 0.0, %v949
      %v951 = vpop.f32.mrf.mxu0
      %v952 = vpop.f32.mrf.mxu0
      %v953 = vpop.f32.mrf.mxu0
      %954 = vdwg.mxu0
      %s955 = scalar_lea.vmem [#allocation3], 312
      %956 = vst.msk [vmem:[%s955] sm:$0xff] %vm598, %v902
      %957 = vst.msk [vmem:[%s955 + $0x8] sm:$0xff] %vm598, %v905
      %958 = vst.msk [vmem:[%s955 + $0x10] sm:$0xff] %vm598, %v910
      %959 = vst.msk [vmem:[%s955 + $0x18] sm:$0xff] %vm598, %v913
      %960 = vst.msk [vmem:[%s955 + $0x20] sm:$0xff] %vm598, %v918
      %961 = vst.msk [vmem:[%s955 + $0x28] sm:$0xff] %vm598, %v921
      %962 = vst.msk [vmem:[%s955 + $0x30] sm:$0xff] %vm598, %v926
      %963 = vst.msk [vmem:[%s955 + $0x38] sm:$0xff] %vm598, %v929
      %964 = vst.msk [vmem:[%s955 + $0x40] sm:$0xff] %vm598, %v934
      %965 = vst.msk [vmem:[%s955 + $0x48] sm:$0xff] %vm598, %v937
      %966 = vst.msk [vmem:[%s955 + $0x50] sm:$0xff] %vm598, %v942
      %967 = vst.msk [vmem:[%s955 + $0x58] sm:$0xff] %vm598, %v945
      %968 = vst.msk [vmem:[%s955 + $0x60] sm:$0xff] %vm598, %v950
      %s969 = scalar_lea.vmem %s1, 64
      %v970 = vld [vmem:[%s969] sm:$0xf]
      %v971 = vld [vmem:[%s969 + $0x4] sm:$0xf]
      %v972 = vld [vmem:[%s969 + $0x8] sm:$0xf]
      %v973 = vld [vmem:[%s969 + $0xc] sm:$0xf]
      %v978 = vunpack.c.l.b16 %v970
      %v979 = vunpack.c.l.b16 %v971
      %v980 = vunpack.c.l.b16 %v972
      %v981 = vunpack.c.l.b16 %v973
      %v982 = vpack.c.b16 %v979, %v978
      %v983 = vpack.c.b16 %v981, %v980
      %986 = vmatprep.subr.bf16.mxu0 0
      %987 = vmatpush1.bf16.msra.mxu0 0
      %988 = vmatprep.subr.bf16.mxu0 0
      %989 = vmatpush1.bf16.msra.mxu0 0
      %990 = vmatprep.subr.bf16.mxu0 0
      %991 = vmatpush1.bf16.msra.mxu0 0
      %992 = vmatprep.subr.bf16.mxu0 0
      %993 = vmatpush1.bf16.msra.mxu0 0
      %994 = vmatprep.subr.bf16.mxu0 0
      %995 = vmatpush1.bf16.msra.mxu0 0
      %996 = vmatprep.subr.bf16.mxu0 0
      %997 = vmatpush1.bf16.msra.mxu0 0
      %998 = vmatprep.subr.bf16.mxu0 0
      %999 = vmatpush1.bf16.msra.mxu0 %v983
      %1000 = vmatprep.subr.bf16.mxu0 0
      %1001 = vmatpush1.bf16.msra.mxu0 %v982
      %1002 = vmatprep.subr.bf16.mxu0 0
      %1003 = vmatpush2.bf16.msra.mxu0 0
      %1004 = vmatprep.subr.bf16.mxu0 0
      %1005 = vmatpush2.bf16.msra.mxu0 0
      %1006 = vmatprep.subr.bf16.mxu0 0
      %1007 = vmatpush2.bf16.msra.mxu0 0
      %1008 = vmatprep.subr.bf16.mxu0 0
      %1009 = vmatpush2.bf16.msra.mxu0 0
      %1010 = vmatprep.subr.bf16.mxu0 0
      %1011 = vmatpush2.bf16.msra.mxu0 0
      %1012 = vmatprep.subr.bf16.mxu0 0
      %1013 = vmatpush2.bf16.msra.mxu0 0
      %1014 = vmatprep.subr.bf16.mxu0 0
      %1015 = vmatpush2.bf16.msra.mxu0 0
      %1016 = vmatprep.subr.bf16.mxu0 0
      %1017 = vmatpush2.bf16.msra.mxu0 0
      %1018 = vmatprep.mubr.bf16.mxu0 0
      %1019 = vmatmul.mubr.bf16.gmra.mxu0 %v490
      %v1020 = vpop.f32.mrf.mxu0
      %v1021 = vadd.f32 0.0, %v1020
      %v1022 = vpop.f32.mrf.mxu0
      %v1023 = vpop.f32.mrf.mxu0
      %v1024 = vadd.f32 0.0, %v1023
      %v1025 = vpop.f32.mrf.mxu0
      %1026 = vmatprep.mubr.bf16.mxu0 0
      %1027 = vmatmul.mubr.bf16.gmra.mxu0 %v493
      %v1028 = vpop.f32.mrf.mxu0
      %v1029 = vadd.f32 0.0, %v1028
      %v1030 = vpop.f32.mrf.mxu0
      %v1031 = vpop.f32.mrf.mxu0
      %v1032 = vadd.f32 0.0, %v1031
      %v1033 = vpop.f32.mrf.mxu0
      %1034 = vmatprep.mubr.bf16.mxu0 0
      %1035 = vmatmul.mubr.bf16.gmra.mxu0 %v496
      %v1036 = vpop.f32.mrf.mxu0
      %v1037 = vadd.f32 0.0, %v1036
      %v1038 = vpop.f32.mrf.mxu0
      %v1039 = vpop.f32.mrf.mxu0
      %v1040 = vadd.f32 0.0, %v1039
      %v1041 = vpop.f32.mrf.mxu0
      %1042 = vmatprep.mubr.bf16.mxu0 0
      %1043 = vmatmul.mubr.bf16.gmra.mxu0 %v499
      %v1044 = vpop.f32.mrf.mxu0
      %v1045 = vadd.f32 0.0, %v1044
      %v1046 = vpop.f32.mrf.mxu0
      %v1047 = vpop.f32.mrf.mxu0
      %v1048 = vadd.f32 0.0, %v1047
      %v1049 = vpop.f32.mrf.mxu0
      %1050 = vmatprep.mubr.bf16.mxu0 0
      %1051 = vmatmul.mubr.bf16.gmra.mxu0 %v502
      %v1052 = vpop.f32.mrf.mxu0
      %v1053 = vadd.f32 0.0, %v1052
      %v1054 = vpop.f32.mrf.mxu0
      %v1055 = vpop.f32.mrf.mxu0
      %v1056 = vadd.f32 0.0, %v1055
      %v1057 = vpop.f32.mrf.mxu0
      %1058 = vmatprep.mubr.bf16.mxu0 0
      %1059 = vmatmul.mubr.bf16.gmra.mxu0 %v505
      %v1060 = vpop.f32.mrf.mxu0
      %v1061 = vadd.f32 0.0, %v1060
      %v1062 = vpop.f32.mrf.mxu0
      %v1063 = vpop.f32.mrf.mxu0
      %v1064 = vadd.f32 0.0, %v1063
      %v1065 = vpop.f32.mrf.mxu0
      %1066 = vmatprep.mubr.bf16.mxu0 0
      %1067 = vmatmul.mubr.bf16.gmra.mxu0 %v508
      %v1068 = vpop.f32.mrf.mxu0
      %v1069 = vadd.f32 0.0, %v1068
      %v1070 = vpop.f32.mrf.mxu0
      %v1071 = vpop.f32.mrf.mxu0
      %v1072 = vpop.f32.mrf.mxu0
      %1073 = vdwg.mxu0
      %s1074 = scalar_lea.vmem [#allocation3], 416
      %1075 = vst.msk [vmem:[%s1074] sm:$0xff] %vm598, %v1021
      %1076 = vst.msk [vmem:[%s1074 + $0x8] sm:$0xff] %vm598, %v1024
      %1077 = vst.msk [vmem:[%s1074 + $0x10] sm:$0xff] %vm598, %v1029
      %1078 = vst.msk [vmem:[%s1074 + $0x18] sm:$0xff] %vm598, %v1032
      %1079 = vst.msk [vmem:[%s1074 + $0x20] sm:$0xff] %vm598, %v1037
      %1080 = vst.msk [vmem:[%s1074 + $0x28] sm:$0xff] %vm598, %v1040
      %1081 = vst.msk [vmem:[%s1074 + $0x30] sm:$0xff] %vm598, %v1045
      %1082 = vst.msk [vmem:[%s1074 + $0x38] sm:$0xff] %vm598, %v1048
      %1083 = vst.msk [vmem:[%s1074 + $0x40] sm:$0xff] %vm598, %v1053
      %1084 = vst.msk [vmem:[%s1074 + $0x48] sm:$0xff] %vm598, %v1056
      %1085 = vst.msk [vmem:[%s1074 + $0x50] sm:$0xff] %vm598, %v1061
      %1086 = vst.msk [vmem:[%s1074 + $0x58] sm:$0xff] %vm598, %v1064
      %1087 = vst.msk [vmem:[%s1074 + $0x60] sm:$0xff] %vm598, %v1069
      %s1088 = scalar_lea.vmem %s1, 80
      %v1089 = vld [vmem:[%s1088] sm:$0xf]
      %v1090 = vld [vmem:[%s1088 + $0x4] sm:$0xf]
      %v1091 = vld [vmem:[%s1088 + $0x8] sm:$0xf]
      %v1092 = vld [vmem:[%s1088 + $0xc] sm:$0xf]
      %v1097 = vunpack.c.l.b16 %v1089
      %v1098 = vunpack.c.l.b16 %v1090
      %v1099 = vunpack.c.l.b16 %v1091
      %v1100 = vunpack.c.l.b16 %v1092
      %v1101 = vpack.c.b16 %v1098, %v1097
      %v1102 = vpack.c.b16 %v1100, %v1099
      %1105 = vmatprep.subr.bf16.mxu0 0
      %1106 = vmatpush1.bf16.msra.mxu0 0
      %1107 = vmatprep.subr.bf16.mxu0 0
      %1108 = vmatpush1.bf16.msra.mxu0 0
      %1109 = vmatprep.subr.bf16.mxu0 0
      %1110 = vmatpush1.bf16.msra.mxu0 0
      %1111 = vmatprep.subr.bf16.mxu0 0
      %1112 = vmatpush1.bf16.msra.mxu0 0
      %1113 = vmatprep.subr.bf16.mxu0 0
      %1114 = vmatpush1.bf16.msra.mxu0 0
      %1115 = vmatprep.subr.bf16.mxu0 0
      %1116 = vmatpush1.bf16.msra.mxu0 0
      %1117 = vmatprep.subr.bf16.mxu0 0
      %1118 = vmatpush1.bf16.msra.mxu0 %v1102
      %1119 = vmatprep.subr.bf16.mxu0 0
      %1120 = vmatpush1.bf16.msra.mxu0 %v1101
      %1121 = vmatprep.subr.bf16.mxu0 0
      %1122 = vmatpush2.bf16.msra.mxu0 0
      %1123 = vmatprep.subr.bf16.mxu0 0
      %1124 = vmatpush2.bf16.msra.mxu0 0
      %1125 = vmatprep.subr.bf16.mxu0 0
      %1126 = vmatpush2.bf16.msra.mxu0 0
      %1127 = vmatprep.subr.bf16.mxu0 0
      %1128 = vmatpush2.bf16.msra.mxu0 0
      %1129 = vmatprep.subr.bf16.mxu0 0
      %1130 = vmatpush2.bf16.msra.mxu0 0
      %1131 = vmatprep.subr.bf16.mxu0 0
      %1132 = vmatpush2.bf16.msra.mxu0 0
      %1133 = vmatprep.subr.bf16.mxu0 0
      %1134 = vmatpush2.bf16.msra.mxu0 0
      %1135 = vmatprep.subr.bf16.mxu0 0
      %1136 = vmatpush2.bf16.msra.mxu0 0
      %1137 = vmatprep.mubr.bf16.mxu0 0
      %1138 = vmatmul.mubr.bf16.gmra.mxu0 %v490
      %v1139 = vpop.f32.mrf.mxu0
      %v1140 = vadd.f32 0.0, %v1139
      %v1141 = vpop.f32.mrf.mxu0
      %v1142 = vpop.f32.mrf.mxu0
      %v1143 = vadd.f32 0.0, %v1142
      %v1144 = vpop.f32.mrf.mxu0
      %1145 = vmatprep.mubr.bf16.mxu0 0
      %1146 = vmatmul.mubr.bf16.gmra.mxu0 %v493
      %v1147 = vpop.f32.mrf.mxu0
      %v1148 = vadd.f32 0.0, %v1147
      %v1149 = vpop.f32.mrf.mxu0
      %v1150 = vpop.f32.mrf.mxu0
      %v1151 = vadd.f32 0.0, %v1150
      %v1152 = vpop.f32.mrf.mxu0
      %1153 = vmatprep.mubr.bf16.mxu0 0
      %1154 = vmatmul.mubr.bf16.gmra.mxu0 %v496
      %v1155 = vpop.f32.mrf.mxu0
      %v1156 = vadd.f32 0.0, %v1155
      %v1157 = vpop.f32.mrf.mxu0
      %v1158 = vpop.f32.mrf.mxu0
      %v1159 = vadd.f32 0.0, %v1158
      %v1160 = vpop.f32.mrf.mxu0
      %1161 = vmatprep.mubr.bf16.mxu0 0
      %1162 = vmatmul.mubr.bf16.gmra.mxu0 %v499
      %v1163 = vpop.f32.mrf.mxu0
      %v1164 = vadd.f32 0.0, %v1163
      %v1165 = vpop.f32.mrf.mxu0
      %v1166 = vpop.f32.mrf.mxu0
      %v1167 = vadd.f32 0.0, %v1166
      %v1168 = vpop.f32.mrf.mxu0
      %1169 = vmatprep.mubr.bf16.mxu0 0
      %1170 = vmatmul.mubr.bf16.gmra.mxu0 %v502
      %v1171 = vpop.f32.mrf.mxu0
      %v1172 = vadd.f32 0.0, %v1171
      %v1173 = vpop.f32.mrf.mxu0
      %v1174 = vpop.f32.mrf.mxu0
      %v1175 = vadd.f32 0.0, %v1174
      %v1176 = vpop.f32.mrf.mxu0
      %1177 = vmatprep.mubr.bf16.mxu0 0
      %1178 = vmatmul.mubr.bf16.gmra.mxu0 %v505
      %v1179 = vpop.f32.mrf.mxu0
      %v1180 = vadd.f32 0.0, %v1179
      %v1181 = vpop.f32.mrf.mxu0
      %v1182 = vpop.f32.mrf.mxu0
      %v1183 = vadd.f32 0.0, %v1182
      %v1184 = vpop.f32.mrf.mxu0
      %1185 = vmatprep.mubr.bf16.mxu0 0
      %1186 = vmatmul.mubr.bf16.gmra.mxu0 %v508
      %v1187 = vpop.f32.mrf.mxu0
      %v1188 = vadd.f32 0.0, %v1187
      %v1189 = vpop.f32.mrf.mxu0
      %v1190 = vpop.f32.mrf.mxu0
      %v1191 = vpop.f32.mrf.mxu0
      %1192 = vdwg.mxu0
      %s1193 = scalar_lea.vmem [#allocation3], 520
      %1194 = vst.msk [vmem:[%s1193] sm:$0xff] %vm598, %v1140
      %1195 = vst.msk [vmem:[%s1193 + $0x8] sm:$0xff] %vm598, %v1143
      %1196 = vst.msk [vmem:[%s1193 + $0x10] sm:$0xff] %vm598, %v1148
      %1197 = vst.msk [vmem:[%s1193 + $0x18] sm:$0xff] %vm598, %v1151
      %1198 = vst.msk [vmem:[%s1193 + $0x20] sm:$0xff] %vm598, %v1156
      %1199 = vst.msk [vmem:[%s1193 + $0x28] sm:$0xff] %vm598, %v1159
      %1200 = vst.msk [vmem:[%s1193 + $0x30] sm:$0xff] %vm598, %v1164
      %1201 = vst.msk [vmem:[%s1193 + $0x38] sm:$0xff] %vm598, %v1167
      %1202 = vst.msk [vmem:[%s1193 + $0x40] sm:$0xff] %vm598, %v1172
      %1203 = vst.msk [vmem:[%s1193 + $0x48] sm:$0xff] %vm598, %v1175
      %1204 = vst.msk [vmem:[%s1193 + $0x50] sm:$0xff] %vm598, %v1180
      %1205 = vst.msk [vmem:[%s1193 + $0x58] sm:$0xff] %vm598, %v1183
      %1206 = vst.msk [vmem:[%s1193 + $0x60] sm:$0xff] %vm598, %v1188
      %s1207 = scalar_lea.vmem %s1, 96
      %v1208 = vld [vmem:[%s1207] sm:$0xf]
      %v1209 = vld [vmem:[%s1207 + $0x4] sm:$0xf]
      %v1210 = vld [vmem:[%s1207 + $0x8] sm:$0xf]
      %v1211 = vld [vmem:[%s1207 + $0xc] sm:$0xf]
      %v1216 = vunpack.c.l.b16 %v1208
      %v1217 = vunpack.c.l.b16 %v1209
      %v1218 = vunpack.c.l.b16 %v1210
      %v1219 = vunpack.c.l.b16 %v1211
      %v1220 = vpack.c.b16 %v1217, %v1216
      %v1221 = vpack.c.b16 %v1219, %v1218
      %1224 = vmatprep.subr.bf16.mxu0 0
      %1225 = vmatpush1.bf16.msra.mxu0 0
      %1226 = vmatprep.subr.bf16.mxu0 0
      %1227 = vmatpush1.bf16.msra.mxu0 0
      %1228 = vmatprep.subr.bf16.mxu0 0
      %1229 = vmatpush1.bf16.msra.mxu0 0
      %1230 = vmatprep.subr.bf16.mxu0 0
      %1231 = vmatpush1.bf16.msra.mxu0 0
      %1232 = vmatprep.subr.bf16.mxu0 0
      %1233 = vmatpush1.bf16.msra.mxu0 0
      %1234 = vmatprep.subr.bf16.mxu0 0
      %1235 = vmatpush1.bf16.msra.mxu0 0
      %1236 = vmatprep.subr.bf16.mxu0 0
      %1237 = vmatpush1.bf16.msra.mxu0 %v1221
      %1238 = vmatprep.subr.bf16.mxu0 0
      %1239 = vmatpush1.bf16.msra.mxu0 %v1220
      %1240 = vmatprep.subr.bf16.mxu0 0
      %1241 = vmatpush2.bf16.msra.mxu0 0
      %1242 = vmatprep.subr.bf16.mxu0 0
      %1243 = vmatpush2.bf16.msra.mxu0 0
      %1244 = vmatprep.subr.bf16.mxu0 0
      %1245 = vmatpush2.bf16.msra.mxu0 0
      %1246 = vmatprep.subr.bf16.mxu0 0
      %1247 = vmatpush2.bf16.msra.mxu0 0
      %1248 = vmatprep.subr.bf16.mxu0 0
      %1249 = vmatpush2.bf16.msra.mxu0 0
      %1250 = vmatprep.subr.bf16.mxu0 0
      %1251 = vmatpush2.bf16.msra.mxu0 0
      %1252 = vmatprep.subr.bf16.mxu0 0
      %1253 = vmatpush2.bf16.msra.mxu0 0
      %1254 = vmatprep.subr.bf16.mxu0 0
      %1255 = vmatpush2.bf16.msra.mxu0 0
      %1256 = vmatprep.mubr.bf16.mxu0 0
      %1257 = vmatmul.mubr.bf16.gmra.mxu0 %v490
      %v1258 = vpop.f32.mrf.mxu0
      %v1259 = vadd.f32 0.0, %v1258
      %v1260 = vpop.f32.mrf.mxu0
      %v1261 = vpop.f32.mrf.mxu0
      %v1262 = vadd.f32 0.0, %v1261
      %v1263 = vpop.f32.mrf.mxu0
      %1264 = vmatprep.mubr.bf16.mxu0 0
      %1265 = vmatmul.mubr.bf16.gmra.mxu0 %v493
      %v1266 = vpop.f32.mrf.mxu0
      %v1267 = vadd.f32 0.0, %v1266
      %v1268 = vpop.f32.mrf.mxu0
      %v1269 = vpop.f32.mrf.mxu0
      %v1270 = vadd.f32 0.0, %v1269
      %v1271 = vpop.f32.mrf.mxu0
      %1272 = vmatprep.mubr.bf16.mxu0 0
      %1273 = vmatmul.mubr.bf16.gmra.mxu0 %v496
      %v1274 = vpop.f32.mrf.mxu0
      %v1275 = vadd.f32 0.0, %v1274
      %v1276 = vpop.f32.mrf.mxu0
      %v1277 = vpop.f32.mrf.mxu0
      %v1278 = vadd.f32 0.0, %v1277
      %v1279 = vpop.f32.mrf.mxu0
      %1280 = vmatprep.mubr.bf16.mxu0 0
      %1281 = vmatmul.mubr.bf16.gmra.mxu0 %v499
      %v1282 = vpop.f32.mrf.mxu0
      %v1283 = vadd.f32 0.0, %v1282
      %v1284 = vpop.f32.mrf.mxu0
      %v1285 = vpop.f32.mrf.mxu0
      %v1286 = vadd.f32 0.0, %v1285
      %v1287 = vpop.f32.mrf.mxu0
      %1288 = vmatprep.mubr.bf16.mxu0 0
      %1289 = vmatmul.mubr.bf16.gmra.mxu0 %v502
      %v1290 = vpop.f32.mrf.mxu0
      %v1291 = vadd.f32 0.0, %v1290
      %v1292 = vpop.f32.mrf.mxu0
      %v1293 = vpop.f32.mrf.mxu0
      %v1294 = vadd.f32 0.0, %v1293
      %v1295 = vpop.f32.mrf.mxu0
      %1296 = vmatprep.mubr.bf16.mxu0 0
      %1297 = vmatmul.mubr.bf16.gmra.mxu0 %v505
      %v1298 = vpop.f32.mrf.mxu0
      %v1299 = vadd.f32 0.0, %v1298
      %v1300 = vpop.f32.mrf.mxu0
      %v1301 = vpop.f32.mrf.mxu0
      %v1302 = vadd.f32 0.0, %v1301
      %v1303 = vpop.f32.mrf.mxu0
      %1304 = vmatprep.mubr.bf16.mxu0 0
      %1305 = vmatmul.mubr.bf16.gmra.mxu0 %v508
      %v1306 = vpop.f32.mrf.mxu0
      %v1307 = vadd.f32 0.0, %v1306
      %v1308 = vpop.f32.mrf.mxu0
      %v1309 = vpop.f32.mrf.mxu0
      %v1310 = vpop.f32.mrf.mxu0
      %1311 = vdwg.mxu0
      %s1312 = scalar_lea.vmem [#allocation3], 624
      %1313 = vst.msk [vmem:[%s1312] sm:$0xff] %vm598, %v1259
      %1314 = vst.msk [vmem:[%s1312 + $0x8] sm:$0xff] %vm598, %v1262
      %1315 = vst.msk [vmem:[%s1312 + $0x10] sm:$0xff] %vm598, %v1267
      %1316 = vst.msk [vmem:[%s1312 + $0x18] sm:$0xff] %vm598, %v1270
      %1317 = vst.msk [vmem:[%s1312 + $0x20] sm:$0xff] %vm598, %v1275
      %1318 = vst.msk [vmem:[%s1312 + $0x28] sm:$0xff] %vm598, %v1278
      %1319 = vst.msk [vmem:[%s1312 + $0x30] sm:$0xff] %vm598, %v1283
      %1320 = vst.msk [vmem:[%s1312 + $0x38] sm:$0xff] %vm598, %v1286
      %1321 = vst.msk [vmem:[%s1312 + $0x40] sm:$0xff] %vm598, %v1291
      %1322 = vst.msk [vmem:[%s1312 + $0x48] sm:$0xff] %vm598, %v1294
      %1323 = vst.msk [vmem:[%s1312 + $0x50] sm:$0xff] %vm598, %v1299
      %1324 = vst.msk [vmem:[%s1312 + $0x58] sm:$0xff] %vm598, %v1302
      %1325 = vst.msk [vmem:[%s1312 + $0x60] sm:$0xff] %vm598, %v1307
      %s1326 = scalar_lea.vmem %s1, 112
      %v1327 = vld [vmem:[%s1326] sm:$0xf]
      %v1328 = vld [vmem:[%s1326 + $0x4] sm:$0xf]
      %v1329 = vld [vmem:[%s1326 + $0x8] sm:$0xf]
      %v1330 = vld [vmem:[%s1326 + $0xc] sm:$0xf]
      %v1335 = vunpack.c.l.b16 %v1327
      %v1336 = vunpack.c.l.b16 %v1328
      %v1337 = vunpack.c.l.b16 %v1329
      %v1338 = vunpack.c.l.b16 %v1330
      %v1339 = vpack.c.b16 %v1336, %v1335
      %v1340 = vpack.c.b16 %v1338, %v1337
      %1343 = vmatprep.subr.bf16.mxu0 0
      %1344 = vmatpush1.bf16.msra.mxu0 0
      %1345 = vmatprep.subr.bf16.mxu0 0
      %1346 = vmatpush1.bf16.msra.mxu0 0
      %1347 = vmatprep.subr.bf16.mxu0 0
      %1348 = vmatpush1.bf16.msra.mxu0 0
      %1349 = vmatprep.subr.bf16.mxu0 0
      %1350 = vmatpush1.bf16.msra.mxu0 0
      %1351 = vmatprep.subr.bf16.mxu0 0
      %1352 = vmatpush1.bf16.msra.mxu0 0
      %1353 = vmatprep.subr.bf16.mxu0 0
      %1354 = vmatpush1.bf16.msra.mxu0 0
      %1355 = vmatprep.subr.bf16.mxu0 0
      %1356 = vmatpush1.bf16.msra.mxu0 %v1340
      %1357 = vmatprep.subr.bf16.mxu0 0
      %1358 = vmatpush1.bf16.msra.mxu0 %v1339
      %1359 = vmatprep.subr.bf16.mxu0 0
      %1360 = vmatpush2.bf16.msra.mxu0 0
      %1361 = vmatprep.subr.bf16.mxu0 0
      %1362 = vmatpush2.bf16.msra.mxu0 0
      %1363 = vmatprep.subr.bf16.mxu0 0
      %1364 = vmatpush2.bf16.msra.mxu0 0
      %1365 = vmatprep.subr.bf16.mxu0 0
      %1366 = vmatpush2.bf16.msra.mxu0 0
      %1367 = vmatprep.subr.bf16.mxu0 0
      %1368 = vmatpush2.bf16.msra.mxu0 0
      %1369 = vmatprep.subr.bf16.mxu0 0
      %1370 = vmatpush2.bf16.msra.mxu0 0
      %1371 = vmatprep.subr.bf16.mxu0 0
      %1372 = vmatpush2.bf16.msra.mxu0 0
      %1373 = vmatprep.subr.bf16.mxu0 0
      %1374 = vmatpush2.bf16.msra.mxu0 0
      %1375 = vmatprep.mubr.bf16.mxu0 0
      %1376 = vmatmul.mubr.bf16.gmra.mxu0 %v490
      %v1377 = vpop.f32.mrf.mxu0
      %v1378 = vadd.f32 0.0, %v1377
      %v1379 = vpop.f32.mrf.mxu0
      %v1380 = vpop.f32.mrf.mxu0
      %v1381 = vadd.f32 0.0, %v1380
      %v1382 = vpop.f32.mrf.mxu0
      %1383 = vmatprep.mubr.bf16.mxu0 0
      %1384 = vmatmul.mubr.bf16.gmra.mxu0 %v493
      %v1385 = vpop.f32.mrf.mxu0
      %v1386 = vadd.f32 0.0, %v1385
      %v1387 = vpop.f32.mrf.mxu0
      %v1388 = vpop.f32.mrf.mxu0
      %v1389 = vadd.f32 0.0, %v1388
      %v1390 = vpop.f32.mrf.mxu0
      %1391 = vmatprep.mubr.bf16.mxu0 0
      %1392 = vmatmul.mubr.bf16.gmra.mxu0 %v496
      %v1393 = vpop.f32.mrf.mxu0
      %v1394 = vadd.f32 0.0, %v1393
      %v1395 = vpop.f32.mrf.mxu0
      %v1396 = vpop.f32.mrf.mxu0
      %v1397 = vadd.f32 0.0, %v1396
      %v1398 = vpop.f32.mrf.mxu0
      %1399 = vmatprep.mubr.bf16.mxu0 0
      %1400 = vmatmul.mubr.bf16.gmra.mxu0 %v499
      %v1401 = vpop.f32.mrf.mxu0
      %v1402 = vadd.f32 0.0, %v1401
      %v1403 = vpop.f32.mrf.mxu0
      %v1404 = vpop.f32.mrf.mxu0
      %v1405 = vadd.f32 0.0, %v1404
      %v1406 = vpop.f32.mrf.mxu0
      %1407 = vmatprep.mubr.bf16.mxu0 0
      %1408 = vmatmul.mubr.bf16.gmra.mxu0 %v502
      %v1409 = vpop.f32.mrf.mxu0
      %v1410 = vadd.f32 0.0, %v1409
      %v1411 = vpop.f32.mrf.mxu0
      %v1412 = vpop.f32.mrf.mxu0
      %v1413 = vadd.f32 0.0, %v1412
      %v1414 = vpop.f32.mrf.mxu0
      %1415 = vmatprep.mubr.bf16.mxu0 0
      %1416 = vmatmul.mubr.bf16.gmra.mxu0 %v505
      %v1417 = vpop.f32.mrf.mxu0
      %v1418 = vadd.f32 0.0, %v1417
      %v1419 = vpop.f32.mrf.mxu0
      %v1420 = vpop.f32.mrf.mxu0
      %v1421 = vadd.f32 0.0, %v1420
      %v1422 = vpop.f32.mrf.mxu0
      %1423 = vmatprep.mubr.bf16.mxu0 0
      %1424 = vmatmul.mubr.bf16.gmra.mxu0 %v508
      %v1425 = vpop.f32.mrf.mxu0
      %v1426 = vadd.f32 0.0, %v1425
      %v1427 = vpop.f32.mrf.mxu0
      %v1428 = vpop.f32.mrf.mxu0
      %v1429 = vpop.f32.mrf.mxu0
      %1430 = vdwg.mxu0
      %s1431 = scalar_lea.vmem [#allocation3], 728
      %1432 = vst.msk [vmem:[%s1431] sm:$0xff] %vm598, %v1378
      %1433 = vst.msk [vmem:[%s1431 + $0x8] sm:$0xff] %vm598, %v1381
      %1434 = vst.msk [vmem:[%s1431 + $0x10] sm:$0xff] %vm598, %v1386
      %1435 = vst.msk [vmem:[%s1431 + $0x18] sm:$0xff] %vm598, %v1389
      %1436 = vst.msk [vmem:[%s1431 + $0x20] sm:$0xff] %vm598, %v1394
      %1437 = vst.msk [vmem:[%s1431 + $0x28] sm:$0xff] %vm598, %v1397
      %1438 = vst.msk [vmem:[%s1431 + $0x30] sm:$0xff] %vm598, %v1402
      %1439 = vst.msk [vmem:[%s1431 + $0x38] sm:$0xff] %vm598, %v1405
      %1440 = vst.msk [vmem:[%s1431 + $0x40] sm:$0xff] %vm598, %v1410
      %1441 = vst.msk [vmem:[%s1431 + $0x48] sm:$0xff] %vm598, %v1413
      %1442 = vst.msk [vmem:[%s1431 + $0x50] sm:$0xff] %vm598, %v1418
      %1443 = vst.msk [vmem:[%s1431 + $0x58] sm:$0xff] %vm598, %v1421
      %1444 = vst.msk [vmem:[%s1431 + $0x60] sm:$0xff] %vm598, %v1426
      %s1445 = scalar_lea.vmem %s1, 128
      %v1446 = vld [vmem:[%s1445] sm:$0xf]
      %v1447 = vld [vmem:[%s1445 + $0x4] sm:$0xf]
      %v1448 = vld [vmem:[%s1445 + $0x8] sm:$0xf]
      %v1449 = vld [vmem:[%s1445 + $0xc] sm:$0xf]
      %v1454 = vunpack.c.l.b16 %v1446
      %v1455 = vunpack.c.l.b16 %v1447
      %v1456 = vunpack.c.l.b16 %v1448
      %v1457 = vunpack.c.l.b16 %v1449
      %v1458 = vpack.c.b16 %v1455, %v1454
      %v1459 = vpack.c.b16 %v1457, %v1456
      %1462 = vmatprep.subr.bf16.mxu0 0
      %1463 = vmatpush1.bf16.msra.mxu0 0
      %1464 = vmatprep.subr.bf16.mxu0 0
      %1465 = vmatpush1.bf16.msra.mxu0 0
      %1466 = vmatprep.subr.bf16.mxu0 0
      %1467 = vmatpush1.bf16.msra.mxu0 0
      %1468 = vmatprep.subr.bf16.mxu0 0
      %1469 = vmatpush1.bf16.msra.mxu0 0
      %1470 = vmatprep.subr.bf16.mxu0 0
      %1471 = vmatpush1.bf16.msra.mxu0 0
      %1472 = vmatprep.subr.bf16.mxu0 0
      %1473 = vmatpush1.bf16.msra.mxu0 0
      %1474 = vmatprep.subr.bf16.mxu0 0
      %1475 = vmatpush1.bf16.msra.mxu0 %v1459
      %1476 = vmatprep.subr.bf16.mxu0 0
      %1477 = vmatpush1.bf16.msra.mxu0 %v1458
      %1478 = vmatprep.subr.bf16.mxu0 0
      %1479 = vmatpush2.bf16.msra.mxu0 0
      %1480 = vmatprep.subr.bf16.mxu0 0
      %1481 = vmatpush2.bf16.msra.mxu0 0
      %1482 = vmatprep.subr.bf16.mxu0 0
      %1483 = vmatpush2.bf16.msra.mxu0 0
      %1484 = vmatprep.subr.bf16.mxu0 0
      %1485 = vmatpush2.bf16.msra.mxu0 0
      %1486 = vmatprep.subr.bf16.mxu0 0
      %1487 = vmatpush2.bf16.msra.mxu0 0
      %1488 = vmatprep.subr.bf16.mxu0 0
      %1489 = vmatpush2.bf16.msra.mxu0 0
      %1490 = vmatprep.subr.bf16.mxu0 0
      %1491 = vmatpush2.bf16.msra.mxu0 0
      %1492 = vmatprep.subr.bf16.mxu0 0
      %1493 = vmatpush2.bf16.msra.mxu0 0
      %1494 = vmatprep.mubr.bf16.mxu0 0
      %1495 = vmatmul.mubr.bf16.gmra.mxu0 %v490
      %v1496 = vpop.f32.mrf.mxu0
      %v1497 = vadd.f32 0.0, %v1496
      %v1498 = vpop.f32.mrf.mxu0
      %v1499 = vpop.f32.mrf.mxu0
      %v1500 = vadd.f32 0.0, %v1499
      %v1501 = vpop.f32.mrf.mxu0
      %1502 = vmatprep.mubr.bf16.mxu0 0
      %1503 = vmatmul.mubr.bf16.gmra.mxu0 %v493
      %v1504 = vpop.f32.mrf.mxu0
      %v1505 = vadd.f32 0.0, %v1504
      %v1506 = vpop.f32.mrf.mxu0
      %v1507 = vpop.f32.mrf.mxu0
      %v1508 = vadd.f32 0.0, %v1507
      %v1509 = vpop.f32.mrf.mxu0
      %1510 = vmatprep.mubr.bf16.mxu0 0
      %1511 = vmatmul.mubr.bf16.gmra.mxu0 %v496
      %v1512 = vpop.f32.mrf.mxu0
      %v1513 = vadd.f32 0.0, %v1512
      %v1514 = vpop.f32.mrf.mxu0
      %v1515 = vpop.f32.mrf.mxu0
      %v1516 = vadd.f32 0.0, %v1515
      %v1517 = vpop.f32.mrf.mxu0
      %1518 = vmatprep.mubr.bf16.mxu0 0
      %1519 = vmatmul.mubr.bf16.gmra.mxu0 %v499
      %v1520 = vpop.f32.mrf.mxu0
      %v1521 = vadd.f32 0.0, %v1520
      %v1522 = vpop.f32.mrf.mxu0
      %v1523 = vpop.f32.mrf.mxu0
      %v1524 = vadd.f32 0.0, %v1523
      %v1525 = vpop.f32.mrf.mxu0
      %1526 = vmatprep.mubr.bf16.mxu0 0
      %1527 = vmatmul.mubr.bf16.gmra.mxu0 %v502
      %v1528 = vpop.f32.mrf.mxu0
      %v1529 = vadd.f32 0.0, %v1528
      %v1530 = vpop.f32.mrf.mxu0
      %v1531 = vpop.f32.mrf.mxu0
      %v1532 = vadd.f32 0.0, %v1531
      %v1533 = vpop.f32.mrf.mxu0
      %1534 = vmatprep.mubr.bf16.mxu0 0
      %1535 = vmatmul.mubr.bf16.gmra.mxu0 %v505
      %v1536 = vpop.f32.mrf.mxu0
      %v1537 = vadd.f32 0.0, %v1536
      %v1538 = vpop.f32.mrf.mxu0
      %v1539 = vpop.f32.mrf.mxu0
      %v1540 = vadd.f32 0.0, %v1539
      %v1541 = vpop.f32.mrf.mxu0
      %1542 = vmatprep.mubr.bf16.mxu0 0
      %1543 = vmatmul.mubr.bf16.gmra.mxu0 %v508
      %v1544 = vpop.f32.mrf.mxu0
      %v1545 = vadd.f32 0.0, %v1544
      %v1546 = vpop.f32.mrf.mxu0
      %v1547 = vpop.f32.mrf.mxu0
      %v1548 = vpop.f32.mrf.mxu0
      %1549 = vdwg.mxu0
      %s1550 = scalar_lea.vmem [#allocation3], 832
      %1551 = vst.msk [vmem:[%s1550] sm:$0xff] %vm598, %v1497
      %1552 = vst.msk [vmem:[%s1550 + $0x8] sm:$0xff] %vm598, %v1500
      %1553 = vst.msk [vmem:[%s1550 + $0x10] sm:$0xff] %vm598, %v1505
      %1554 = vst.msk [vmem:[%s1550 + $0x18] sm:$0xff] %vm598, %v1508
      %1555 = vst.msk [vmem:[%s1550 + $0x20] sm:$0xff] %vm598, %v1513
      %1556 = vst.msk [vmem:[%s1550 + $0x28] sm:$0xff] %vm598, %v1516
      %1557 = vst.msk [vmem:[%s1550 + $0x30] sm:$0xff] %vm598, %v1521
      %1558 = vst.msk [vmem:[%s1550 + $0x38] sm:$0xff] %vm598, %v1524
      %1559 = vst.msk [vmem:[%s1550 + $0x40] sm:$0xff] %vm598, %v1529
      %1560 = vst.msk [vmem:[%s1550 + $0x48] sm:$0xff] %vm598, %v1532
      %1561 = vst.msk [vmem:[%s1550 + $0x50] sm:$0xff] %vm598, %v1537
      %1562 = vst.msk [vmem:[%s1550 + $0x58] sm:$0xff] %vm598, %v1540
      %1563 = vst.msk [vmem:[%s1550 + $0x60] sm:$0xff] %vm598, %v1545
      %1564 = vst.msk [vmem:[#allocation2] sm:$0xff] %vm598, 0.0
      %vm1565 = vcmask 517120
      %1566 = vst.msk [vmem:[#allocation2 + $0x8] sm:$0x3] %vm1565, 0.0
      %1567 = vst.msk [vmem:[#allocation2 + $0x5a] sm:$0xff] %vm598, 0.0
      %1568 = vst.msk [vmem:[#allocation2 + $0x62] sm:$0x3] %vm1565, 0.0
      %vm1569 = vcmask 519168
      %1570 = vst.msk [vmem:[#allocation2 + $0x64] sm:$0xf] %vm1569, 0.0
      loop: start=0, step=1, limit=8
      $region49: #{double_conv_forward.1} parent=47 // loop_pre_header
        _
      $region50: #{double_conv_forward.1} parent=47 // loop_header
        %s1572 = sphi 0, %s1576
        %p1573 = scmp.ge.s32.totalorder %s1572, 8
        %v1577 = vphi 0.0, %v1633
        %v1578 = vphi 0.0, %v1635
      $region51: #{double_conv_forward.1} parent=47 // loop_header_branch
        %1575 = sbr.rel (%p1573) target = $region55
      $region52: #{double_conv_forward.1} parent=47 // loop_body
        %s1579 = smul.u32 %s1572, 10
        %s1580 = scalar_lea.vmem [#allocation3], %s1579
        %v1581 = vld [vmem:[%s1580] sm:$0xff]
        %v1582 = vadd.f32 %v1581, 0.0
        %s1583 = sadd.s32 %s1579, 1
        %s1584 = sadd.s32 %s1583, 104
        %s1585 = scalar_lea.vmem [#allocation3], %s1584
        %v1586 = vld [vmem:[%s1585] sm:$0xff]
        %v1587 = vadd.f32 %v1582, %v1586
        %s1588 = sadd.s32 %s1579, 2
        %s1589 = sadd.s32 %s1588, 208
        %s1590 = scalar_lea.vmem [#allocation3], %s1589
        %v1591 = vld [vmem:[%s1590] sm:$0xff]
        %v1592 = vadd.f32 %v1587, %v1591
        %s1593 = sadd.s32 %s1572, 1
        %s1594 = smul.u32 %s1593, 10
        %s1595 = sadd.s32 %s1594, 312
        %s1596 = scalar_lea.vmem [#allocation3], %s1595
        %v1597 = vld [vmem:[%s1596] sm:$0xff]
        %v1598 = vadd.f32 %v1592, %v1597
        %s1599 = sadd.s32 %s1594, 1
        %s1600 = sadd.s32 %s1599, 416
        %s1601 = scalar_lea.vmem [#allocation3], %s1600
        %v1602 = vld [vmem:[%s1601] sm:$0xff]
        %v1603 = vadd.f32 %v1598, %v1602
        %s1604 = sadd.s32 %s1594, 2
        %s1605 = sadd.s32 %s1604, 520
        %s1606 = scalar_lea.vmem [#allocation3], %s1605
        %v1607 = vld [vmem:[%s1606] sm:$0xff]
        %v1608 = vadd.f32 %v1603, %v1607
        %s1609 = sadd.s32 %s1572, 2
        %s1610 = smul.u32 %s1609, 10
        %s1611 = sadd.s32 %s1610, 624
        %s1612 = scalar_lea.vmem [#allocation3], %s1611
        %v1613 = vld [vmem:[%s1612] sm:$0xff]
        %v1614 = vadd.f32 %v1608, %v1613
        %s1615 = sadd.s32 %s1610, 1
        %s1616 = sadd.s32 %s1615, 728
        %s1617 = scalar_lea.vmem [#allocation3], %s1616
        %v1618 = vld [vmem:[%s1617] sm:$0xff]
        %v1619 = vadd.f32 %v1614, %v1618
        %s1620 = sadd.s32 %s1610, 2
        %s1621 = sadd.s32 %s1620, 832
        %s1622 = scalar_lea.vmem [#allocation3], %s1621
        %v1623 = vld [vmem:[%s1622] sm:$0xff]
        %v1624 = vadd.f32 %v1619, %v1623
        %s1625 = scalar_lea.vmem [#allocation2], %s1594
        %vm1626 = vcmask 516096
        %1627 = vst.msk [vmem:[%s1625] sm:$0x1] %vm1626, 0.0
        %s1628 = sadd.s32 %s1594, 9
        %s1629 = scalar_lea.vmem [#allocation2], %s1628
        %1630 = vst.msk [vmem:[%s1629] sm:$0x1] %vm1626, 0.0
        %s1631 = scalar_lea.vmem [#allocation2], %s1599
        %1632 = vst.msk [vmem:[%s1631] sm:$0xff] %vm598, %v1624
        %v1633 = vadd.f32 %v1577, %v1624
        %v1634 = vmul.f32 %v1624, %v1624
        %v1635 = vadd.f32 %v1578, %v1634
      $region53: #{double_conv_forward.1} parent=47 // loop_footer
        %s1576 = sadd.s32 1, %s1572
      $region54: #{double_conv_forward.1} parent=47 // loop_footer_branch
        %1571 = sbr.rel target = $region50
      $region55: #{double_conv_forward.1} parent=47 // loop_exit
        _
      %v1636 = vld [vmem:[%s3] sm:$0x1]
      %v1637 = vld [vmem:[%s4] sm:$0x1]
      %v1639 = vsel %vm598, %v1577, 0
      %1641 = vmatprep.subr.mxu0 0.0
      %1642 = vmatpush1.msra.mxu0 0.0
      %1643 = vmatprep.subr.mxu0 0.0
      %1644 = vmatpush1.msra.mxu0 0.0
      %1645 = vmatprep.subr.mxu0 0.0
      %1646 = vmatpush1.msra.mxu0 0.0
      %1647 = vmatprep.subr.mxu0 0.0
      %1648 = vmatpush1.msra.mxu0 0.0
      %1649 = vmatprep.subr.mxu0 0.0
      %1650 = vmatpush1.msra.mxu0 0.0
      %1651 = vmatprep.subr.mxu0 0.0
      %1652 = vmatpush1.msra.mxu0 0.0
      %1653 = vmatprep.subr.mxu0 0.0
      %1654 = vmatpush1.msra.mxu0 0.0
      %1655 = vmatprep.subr.mxu0 0.0
      %1656 = vmatpush1.msra.mxu0 0.0
      %1657 = vmatprep.subr.mxu0 0.0
      %1658 = vmatpush1.msra.mxu0 %v425
      %1659 = vmatprep.subr.mxu0 0.0
      %1660 = vmatpush1.msra.mxu0 %v424
      %1661 = vmatprep.subr.mxu0 0.0
      %1662 = vmatpush1.msra.mxu0 %v423
      %1663 = vmatprep.subr.mxu0 0.0
      %1664 = vmatpush1.msra.mxu0 %v422
      %1665 = vmatprep.subr.mxu0 0.0
      %1666 = vmatpush1.msra.mxu0 %v421
      %1667 = vmatprep.subr.mxu0 0.0
      %1668 = vmatpush1.msra.mxu0 %v420
      %1669 = vmatprep.subr.mxu0 0.0
      %1670 = vmatpush1.msra.mxu0 %v419
      %1671 = vmatprep.subr.mxu0 0.0
      %1672 = vmatpush1.msra.mxu0 %v418
      %1673 = vmatprep.subr.mxu0 0.0
      %1674 = vmatpush2.msra.mxu0 0.0
      %1675 = vmatprep.subr.mxu0 0.0
      %1676 = vmatpush2.msra.mxu0 0.0
      %1677 = vmatprep.subr.mxu0 0.0
      %1678 = vmatpush2.msra.mxu0 0.0
      %1679 = vmatprep.subr.mxu0 0.0
      %1680 = vmatpush2.msra.mxu0 0.0
      %1681 = vmatprep.subr.mxu0 0.0
      %1682 = vmatpush2.msra.mxu0 0.0
      %1683 = vmatprep.subr.mxu0 0.0
      %1684 = vmatpush2.msra.mxu0 0.0
      %1685 = vmatprep.subr.mxu0 0.0
      %1686 = vmatpush2.msra.mxu0 0.0
      %1687 = vmatprep.subr.mxu0 0.0
      %1688 = vmatpush2.msra.mxu0 0.0
      %1689 = vmatprep.subr.mxu0 0.0
      %1690 = vmatpush2.msra.mxu0 0.0
      %1691 = vmatprep.subr.mxu0 0.0
      %1692 = vmatpush2.msra.mxu0 0.0
      %1693 = vmatprep.subr.mxu0 0.0
      %1694 = vmatpush2.msra.mxu0 0.0
      %1695 = vmatprep.subr.mxu0 0.0
      %1696 = vmatpush2.msra.mxu0 0.0
      %1697 = vmatprep.subr.mxu0 0.0
      %1698 = vmatpush2.msra.mxu0 0.0
      %1699 = vmatprep.subr.mxu0 0.0
      %1700 = vmatpush2.msra.mxu0 0.0
      %1701 = vmatprep.subr.mxu0 0.0
      %1702 = vmatpush2.msra.mxu0 0.0
      %1703 = vmatprep.subr.mxu0 0.0
      %1704 = vmatpush2.msra.mxu0 0.0
      %1705 = vmatprep.mubr.f32.mxu0 0.0
      %1706 = vmatmul.mubr.f32.gmra.mxu0 %v1639
      %v1707 = vpop.f32.mrf.mxu0
      %v1708 = vadd.f32 0.0, %v1707
      %v1709 = vpop.f32.mrf.mxu0
      %1710 = vdwg.mxu0
      %v1711 = vsel %vm598, %v1708, 0.0
      %v1712 = vrot.slane %v1711, 4
      %v1713 = vadd.f32 %v1711, %v1712
      %v1714 = vrot.slane %v1713, 2
      %v1715 = vadd.f32 %v1713, %v1714
      %v1716 = vrot.slane %v1715, 1
      %v1717 = vadd.f32 %v1715, %v1716
      %v1718 = vmul.f32 %v1717, 0.001953125
      %v1720 = vsel %vm598, %v1578, 0
      %1722 = vmatprep.subr.mxu0 0.0
      %1723 = vmatpush1.msra.mxu0 0.0
      %1724 = vmatprep.subr.mxu0 0.0
      %1725 = vmatpush1.msra.mxu0 0.0
      %1726 = vmatprep.subr.mxu0 0.0
      %1727 = vmatpush1.msra.mxu0 0.0
      %1728 = vmatprep.subr.mxu0 0.0
      %1729 = vmatpush1.msra.mxu0 0.0
      %1730 = vmatprep.subr.mxu0 0.0
      %1731 = vmatpush1.msra.mxu0 0.0
      %1732 = vmatprep.subr.mxu0 0.0
      %1733 = vmatpush1.msra.mxu0 0.0
      %1734 = vmatprep.subr.mxu0 0.0
      %1735 = vmatpush1.msra.mxu0 0.0
      %1736 = vmatprep.subr.mxu0 0.0
      %1737 = vmatpush1.msra.mxu0 0.0
      %1738 = vmatprep.subr.mxu0 0.0
      %1739 = vmatpush1.msra.mxu0 %v425
      %1740 = vmatprep.subr.mxu0 0.0
      %1741 = vmatpush1.msra.mxu0 %v424
      %1742 = vmatprep.subr.mxu0 0.0
      %1743 = vmatpush1.msra.mxu0 %v423
      %1744 = vmatprep.subr.mxu0 0.0
      %1745 = vmatpush1.msra.mxu0 %v422
      %1746 = vmatprep.subr.mxu0 0.0
      %1747 = vmatpush1.msra.mxu0 %v421
      %1748 = vmatprep.subr.mxu0 0.0
      %1749 = vmatpush1.msra.mxu0 %v420
      %1750 = vmatprep.subr.mxu0 0.0
      %1751 = vmatpush1.msra.mxu0 %v419
      %1752 = vmatprep.subr.mxu0 0.0
      %1753 = vmatpush1.msra.mxu0 %v418
      %1754 = vmatprep.subr.mxu0 0.0
      %1755 = vmatpush2.msra.mxu0 0.0
      %1756 = vmatprep.subr.mxu0 0.0
      %1757 = vmatpush2.msra.mxu0 0.0
      %1758 = vmatprep.subr.mxu0 0.0
      %1759 = vmatpush2.msra.mxu0 0.0
      %1760 = vmatprep.subr.mxu0 0.0
      %1761 = vmatpush2.msra.mxu0 0.0
      %1762 = vmatprep.subr.mxu0 0.0
      %1763 = vmatpush2.msra.mxu0 0.0
      %1764 = vmatprep.subr.mxu0 0.0
      %1765 = vmatpush2.msra.mxu0 0.0
      %1766 = vmatprep.subr.mxu0 0.0
      %1767 = vmatpush2.msra.mxu0 0.0
      %1768 = vmatprep.subr.mxu0 0.0
      %1769 = vmatpush2.msra.mxu0 0.0
      %1770 = vmatprep.subr.mxu0 0.0
      %1771 = vmatpush2.msra.mxu0 0.0
      %1772 = vmatprep.subr.mxu0 0.0
      %1773 = vmatpush2.msra.mxu0 0.0
      %1774 = vmatprep.subr.mxu0 0.0
      %1775 = vmatpush2.msra.mxu0 0.0
      %1776 = vmatprep.subr.mxu0 0.0
      %1777 = vmatpush2.msra.mxu0 0.0
      %1778 = vmatprep.subr.mxu0 0.0
      %1779 = vmatpush2.msra.mxu0 0.0
      %1780 = vmatprep.subr.mxu0 0.0
      %1781 = vmatpush2.msra.mxu0 0.0
      %1782 = vmatprep.subr.mxu0 0.0
      %1783 = vmatpush2.msra.mxu0 0.0
      %1784 = vmatprep.subr.mxu0 0.0
      %1785 = vmatpush2.msra.mxu0 0.0
      %1786 = vmatprep.mubr.f32.mxu0 0.0
      %1787 = vmatmul.mubr.f32.gmra.mxu0 %v1720
      %v1788 = vpop.f32.mrf.mxu0
      %v1789 = vadd.f32 0.0, %v1788
      %v1790 = vpop.f32.mrf.mxu0
      %1791 = vdwg.mxu0
      %v1792 = vsel %vm598, %v1789, 0.0
      %v1793 = vrot.slane %v1792, 4
      %v1794 = vadd.f32 %v1792, %v1793
      %v1795 = vrot.slane %v1794, 2
      %v1796 = vadd.f32 %v1794, %v1795
      %v1797 = vrot.slane %v1796, 1
      %v1798 = vadd.f32 %v1796, %v1797
      %v1799 = vmul.f32 %v1798, 0.001953125
      %v1800 = vmul.f32 %v1718, %v1718
      %v1801 = vsub.f32 %v1799, %v1800
      %v1802 = vadd.f32 %v1801, 1e-05
      %v1803 = vrsqrt.pop %v1802
      %v1804 = vmul.f32 %v1636, %v1803
      %v1805 = vmul.f32 %v1718, %v1804
      %v1806 = vsub.f32 %v1637, %v1805
      loop: start=0, step=1, limit=8
      $region56: #{double_conv_forward.1} parent=47 // loop_pre_header
        _
      $region57: #{double_conv_forward.1} parent=47 // loop_header
        %s1808 = sphi 0, %s1812
        %p1809 = scmp.ge.s32.totalorder %s1808, 8
      $region58: #{double_conv_forward.1} parent=47 // loop_header_branch
        %1811 = sbr.rel (%p1809) target = $region62
      $region59: #{double_conv_forward.1} parent=47 // loop_body
        %s1813 = sadd.s32 %s1808, 1
        %s1814 = smul.u32 %s1813, 10
        %s1815 = sadd.s32 %s1814, 1
        %s1816 = scalar_lea.vmem [#allocation2], %s1815
        %v1817 = vld [vmem:[%s1816] sm:$0xff]
        %v1819 = vlaneseq
        %v1820 = vshrl.u32 %v1819, 7
        %v1821 = vsub.s32 0, %v1820
        %v1822 = vrot.slane %v1804, %v1821
        %v1824 = vmul.f32 %v1817, %v1822
        %v1826 = vlaneseq
        %v1827 = vshrl.u32 %v1826, 7
        %v1828 = vsub.s32 0, %v1827
        %v1829 = vrot.slane %v1806, %v1828
        %v1831 = vadd.f32 %v1824, %v1829
        %vm1832 = vcmp.ge.f32.partialorder %v1831, 0.0
        %v1833 = vmul.f32 %v1831, 0.22916667
        %v1834 = vsel %vm1832, %v1831, %v1833
        %1835 = vst.msk [vmem:[%s1816] sm:$0xff] %vm598, %v1834
      $region60: #{double_conv_forward.1} parent=47 // loop_footer
        %s1812 = sadd.s32 1, %s1808
      $region61: #{double_conv_forward.1} parent=47 // loop_footer_branch
        %1807 = sbr.rel target = $region57
      $region62: #{double_conv_forward.1} parent=47 // loop_exit
        _
      %v1836 = vld [vmem:[#allocation2] sm:$0xff]
      %v1837 = vld [vmem:[#allocation2 + $0x8] sm:$0xff]
      %v1838 = vld [vmem:[#allocation2 + $0x10] sm:$0xff]
      %v1839 = vld [vmem:[#allocation2 + $0x18] sm:$0xff]
      %v1840 = vld [vmem:[#allocation2 + $0x20] sm:$0xff]
      %v1841 = vld [vmem:[#allocation2 + $0x28] sm:$0xff]
      %v1842 = vld [vmem:[#allocation2 + $0x30] sm:$0xff]
      %v1843 = vld [vmem:[#allocation2 + $0x38] sm:$0xff]
      %v1844 = vld [vmem:[#allocation2 + $0x40] sm:$0xff]
      %v1845 = vld [vmem:[#allocation2 + $0x48] sm:$0xff]
      %v1846 = vld [vmem:[#allocation2 + $0x50] sm:$0xff]
      %v1847 = vld [vmem:[#allocation2 + $0x58] sm:$0xff]
      %v1848 = vld [vmem:[#allocation2 + $0x60] sm:$0xff]
      %v1849 = vpack.c.bf16 %v1837, %v1836
      %v1850 = vpack.c.bf16 %v1839, %v1838
      %v1851 = vpack.c.bf16 %v1841, %v1840
      %v1852 = vpack.c.bf16 %v1843, %v1842
      %v1853 = vpack.c.bf16 %v1845, %v1844
      %v1854 = vpack.c.bf16 %v1847, %v1846
      %v1855 = vpack.c.bf16 %v1848, %v1848
      %v1856 = vld [vmem:[%s2] sm:$0xf]
      %v1857 = vld [vmem:[%s2 + $0x4] sm:$0xf]
      %v1858 = vld [vmem:[%s2 + $0x8] sm:$0xf]
      %v1859 = vld [vmem:[%s2 + $0xc] sm:$0xf]
      %v1860 = vld [vmem:[%s2 + $0x10] sm:$0xf]
      %v1861 = vld [vmem:[%s2 + $0x14] sm:$0xf]
      %v1862 = vld [vmem:[%s2 + $0x18] sm:$0xf]
      %v1863 = vld [vmem:[%s2 + $0x1c] sm:$0xf]
      %v1872 = vunpack.c.l.b16 %v1856
      %v1873 = vunpack.c.l.b16 %v1857
      %v1874 = vunpack.c.l.b16 %v1858
      %v1875 = vunpack.c.l.b16 %v1859
      %v1876 = vunpack.c.l.b16 %v1860
      %v1877 = vunpack.c.l.b16 %v1861
      %v1878 = vunpack.c.l.b16 %v1862
      %v1879 = vunpack.c.l.b16 %v1863
      %v1880 = vpack.c.b16 %v1873, %v1872
      %v1881 = vpack.c.b16 %v1875, %v1874
      %v1882 = vpack.c.b16 %v1877, %v1876
      %v1883 = vpack.c.b16 %v1879, %v1878
      %v1889 = vsel %vm598, %v1849, 0
      %v1892 = vsel %vm598, %v1850, 0
      %v1895 = vsel %vm598, %v1851, 0
      %v1898 = vsel %vm598, %v1852, 0
      %v1901 = vsel %vm598, %v1853, 0
      %v1904 = vsel %vm598, %v1854, 0
      %v1907 = vsel %vm598, %v1855, 0
      %1909 = vmatprep.subr.bf16.mxu0 0
      %1910 = vmatpush1.bf16.msra.mxu0 0
      %1911 = vmatprep.subr.bf16.mxu0 0
      %1912 = vmatpush1.bf16.msra.mxu0 0
      %1913 = vmatprep.subr.bf16.mxu0 0
      %1914 = vmatpush1.bf16.msra.mxu0 0
      %1915 = vmatprep.subr.bf16.mxu0 0
      %1916 = vmatpush1.bf16.msra.mxu0 0
      %1917 = vmatprep.subr.bf16.mxu0 0
      %1918 = vmatpush1.bf16.msra.mxu0 %v1883
      %1919 = vmatprep.subr.bf16.mxu0 0
      %1920 = vmatpush1.bf16.msra.mxu0 %v1882
      %1921 = vmatprep.subr.bf16.mxu0 0
      %1922 = vmatpush1.bf16.msra.mxu0 %v1881
      %1923 = vmatprep.subr.bf16.mxu0 0
      %1924 = vmatpush1.bf16.msra.mxu0 %v1880
      %1925 = vmatprep.subr.bf16.mxu0 0
      %1926 = vmatpush2.bf16.msra.mxu0 0
      %1927 = vmatprep.subr.bf16.mxu0 0
      %1928 = vmatpush2.bf16.msra.mxu0 0
      %1929 = vmatprep.subr.bf16.mxu0 0
      %1930 = vmatpush2.bf16.msra.mxu0 0
      %1931 = vmatprep.subr.bf16.mxu0 0
      %1932 = vmatpush2.bf16.msra.mxu0 0
      %1933 = vmatprep.subr.bf16.mxu0 0
      %1934 = vmatpush2.bf16.msra.mxu0 0
      %1935 = vmatprep.subr.bf16.mxu0 0
      %1936 = vmatpush2.bf16.msra.mxu0 0
      %1937 = vmatprep.subr.bf16.mxu0 0
      %1938 = vmatpush2.bf16.msra.mxu0 0
      %1939 = vmatprep.subr.bf16.mxu0 0
      %1940 = vmatpush2.bf16.msra.mxu0 0
      %1941 = vmatprep.mubr.bf16.mxu0 0
      %1942 = vmatmul.mubr.bf16.gmra.mxu0 %v1889
      %v1943 = vpop.f32.mrf.mxu0
      %v1944 = vadd.f32 0.0, %v1943
      %v1945 = vpop.f32.mrf.mxu0
      %v1946 = vpop.f32.mrf.mxu0
      %v1947 = vadd.f32 0.0, %v1946
      %v1948 = vpop.f32.mrf.mxu0
      %1949 = vmatprep.mubr.bf16.mxu0 0
      %1950 = vmatmul.mubr.bf16.gmra.mxu0 %v1892
      %v1951 = vpop.f32.mrf.mxu0
      %v1952 = vadd.f32 0.0, %v1951
      %v1953 = vpop.f32.mrf.mxu0
      %v1954 = vpop.f32.mrf.mxu0
      %v1955 = vadd.f32 0.0, %v1954
      %v1956 = vpop.f32.mrf.mxu0
      %1957 = vmatprep.mubr.bf16.mxu0 0
      %1958 = vmatmul.mubr.bf16.gmra.mxu0 %v1895
      %v1959 = vpop.f32.mrf.mxu0
      %v1960 = vadd.f32 0.0, %v1959
      %v1961 = vpop.f32.mrf.mxu0
      %v1962 = vpop.f32.mrf.mxu0
      %v1963 = vadd.f32 0.0, %v1962
      %v1964 = vpop.f32.mrf.mxu0
      %1965 = vmatprep.mubr.bf16.mxu0 0
      %1966 = vmatmul.mubr.bf16.gmra.mxu0 %v1898
      %v1967 = vpop.f32.mrf.mxu0
      %v1968 = vadd.f32 0.0, %v1967
      %v1969 = vpop.f32.mrf.mxu0
      %v1970 = vpop.f32.mrf.mxu0
      %v1971 = vadd.f32 0.0, %v1970
      %v1972 = vpop.f32.mrf.mxu0
      %1973 = vmatprep.mubr.bf16.mxu0 0
      %1974 = vmatmul.mubr.bf16.gmra.mxu0 %v1901
      %v1975 = vpop.f32.mrf.mxu0
      %v1976 = vadd.f32 0.0, %v1975
      %v1977 = vpop.f32.mrf.mxu0
      %v1978 = vpop.f32.mrf.mxu0
      %v1979 = vadd.f32 0.0, %v1978
      %v1980 = vpop.f32.mrf.mxu0
      %1981 = vmatprep.mubr.bf16.mxu0 0
      %1982 = vmatmul.mubr.bf16.gmra.mxu0 %v1904
      %v1983 = vpop.f32.mrf.mxu0
      %v1984 = vadd.f32 0.0, %v1983
      %v1985 = vpop.f32.mrf.mxu0
      %v1986 = vpop.f32.mrf.mxu0
      %v1987 = vadd.f32 0.0, %v1986
      %v1988 = vpop.f32.mrf.mxu0
      %1989 = vmatprep.mubr.bf16.mxu0 0
      %1990 = vmatmul.mubr.bf16.gmra.mxu0 %v1907
      %v1991 = vpop.f32.mrf.mxu0
      %v1992 = vadd.f32 0.0, %v1991
      %v1993 = vpop.f32.mrf.mxu0
      %v1994 = vpop.f32.mrf.mxu0
      %v1995 = vpop.f32.mrf.mxu0
      %1996 = vdwg.mxu0
      %1997 = vst.msk [vmem:[#allocation3] sm:$0xff] %vm598, %v1944
      %1998 = vst.msk [vmem:[#allocation3 + $0x8] sm:$0xff] %vm598, %v1947
      %1999 = vst.msk [vmem:[#allocation3 + $0x10] sm:$0xff] %vm598, %v1952
      %2000 = vst.msk [vmem:[#allocation3 + $0x18] sm:$0xff] %vm598, %v1955
      %2001 = vst.msk [vmem:[#allocation3 + $0x20] sm:$0xff] %vm598, %v1960
      %2002 = vst.msk [vmem:[#allocation3 + $0x28] sm:$0xff] %vm598, %v1963
      %2003 = vst.msk [vmem:[#allocation3 + $0x30] sm:$0xff] %vm598, %v1968
      %2004 = vst.msk [vmem:[#allocation3 + $0x38] sm:$0xff] %vm598, %v1971
      %2005 = vst.msk [vmem:[#allocation3 + $0x40] sm:$0xff] %vm598, %v1976
      %2006 = vst.msk [vmem:[#allocation3 + $0x48] sm:$0xff] %vm598, %v1979
      %2007 = vst.msk [vmem:[#allocation3 + $0x50] sm:$0xff] %vm598, %v1984
      %2008 = vst.msk [vmem:[#allocation3 + $0x58] sm:$0xff] %vm598, %v1987
      %2009 = vst.msk [vmem:[#allocation3 + $0x60] sm:$0xff] %vm598, %v1992
      %s2010 = scalar_lea.vmem %s2, 32
      %v2011 = vld [vmem:[%s2010] sm:$0xf]
      %v2012 = vld [vmem:[%s2010 + $0x4] sm:$0xf]
      %v2013 = vld [vmem:[%s2010 + $0x8] sm:$0xf]
      %v2014 = vld [vmem:[%s2010 + $0xc] sm:$0xf]
      %v2015 = vld [vmem:[%s2010 + $0x10] sm:$0xf]
      %v2016 = vld [vmem:[%s2010 + $0x14] sm:$0xf]
      %v2017 = vld [vmem:[%s2010 + $0x18] sm:$0xf]
      %v2018 = vld [vmem:[%s2010 + $0x1c] sm:$0xf]
      %v2027 = vunpack.c.l.b16 %v2011
      %v2028 = vunpack.c.l.b16 %v2012
      %v2029 = vunpack.c.l.b16 %v2013
      %v2030 = vunpack.c.l.b16 %v2014
      %v2031 = vunpack.c.l.b16 %v2015
      %v2032 = vunpack.c.l.b16 %v2016
      %v2033 = vunpack.c.l.b16 %v2017
      %v2034 = vunpack.c.l.b16 %v2018
      %v2035 = vpack.c.b16 %v2028, %v2027
      %v2036 = vpack.c.b16 %v2030, %v2029
      %v2037 = vpack.c.b16 %v2032, %v2031
      %v2038 = vpack.c.b16 %v2034, %v2033
      %2043 = vmatprep.subr.bf16.mxu0 0
      %2044 = vmatpush1.bf16.msra.mxu0 0
      %2045 = vmatprep.subr.bf16.mxu0 0
      %2046 = vmatpush1.bf16.msra.mxu0 0
      %2047 = vmatprep.subr.bf16.mxu0 0
      %2048 = vmatpush1.bf16.msra.mxu0 0
      %2049 = vmatprep.subr.bf16.mxu0 0
      %2050 = vmatpush1.bf16.msra.mxu0 0
      %2051 = vmatprep.subr.bf16.mxu0 0
      %2052 = vmatpush1.bf16.msra.mxu0 %v2038
      %2053 = vmatprep.subr.bf16.mxu0 0
      %2054 = vmatpush1.bf16.msra.mxu0 %v2037
      %2055 = vmatprep.subr.bf16.mxu0 0
      %2056 = vmatpush1.bf16.msra.mxu0 %v2036
      %2057 = vmatprep.subr.bf16.mxu0 0
      %2058 = vmatpush1.bf16.msra.mxu0 %v2035
      %2059 = vmatprep.subr.bf16.mxu0 0
      %2060 = vmatpush2.bf16.msra.mxu0 0
      %2061 = vmatprep.subr.bf16.mxu0 0
      %2062 = vmatpush2.bf16.msra.mxu0 0
      %2063 = vmatprep.subr.bf16.mxu0 0
      %2064 = vmatpush2.bf16.msra.mxu0 0
      %2065 = vmatprep.subr.bf16.mxu0 0
      %2066 = vmatpush2.bf16.msra.mxu0 0
      %2067 = vmatprep.subr.bf16.mxu0 0
      %2068 = vmatpush2.bf16.msra.mxu0 0
      %2069 = vmatprep.subr.bf16.mxu0 0
      %2070 = vmatpush2.bf16.msra.mxu0 0
      %2071 = vmatprep.subr.bf16.mxu0 0
      %2072 = vmatpush2.bf16.msra.mxu0 0
      %2073 = vmatprep.subr.bf16.mxu0 0
      %2074 = vmatpush2.bf16.msra.mxu0 0
      %2075 = vmatprep.mubr.bf16.mxu0 0
      %2076 = vmatmul.mubr.bf16.gmra.mxu0 %v1889
      %v2077 = vpop.f32.mrf.mxu0
      %v2078 = vadd.f32 0.0, %v2077
      %v2079 = vpop.f32.mrf.mxu0
      %v2080 = vpop.f32.mrf.mxu0
      %v2081 = vadd.f32 0.0, %v2080
      %v2082 = vpop.f32.mrf.mxu0
      %2083 = vmatprep.mubr.bf16.mxu0 0
      %2084 = vmatmul.mubr.bf16.gmra.mxu0 %v1892
      %v2085 = vpop.f32.mrf.mxu0
      %v2086 = vadd.f32 0.0, %v2085
      %v2087 = vpop.f32.mrf.mxu0
      %v2088 = vpop.f32.mrf.mxu0
      %v2089 = vadd.f32 0.0, %v2088
      %v2090 = vpop.f32.mrf.mxu0
      %2091 = vmatprep.mubr.bf16.mxu0 0
      %2092 = vmatmul.mubr.bf16.gmra.mxu0 %v1895
      %v2093 = vpop.f32.mrf.mxu0
      %v2094 = vadd.f32 0.0, %v2093
      %v2095 = vpop.f32.mrf.mxu0
      %v2096 = vpop.f32.mrf.mxu0
      %v2097 = vadd.f32 0.0, %v2096
      %v2098 = vpop.f32.mrf.mxu0
      %2099 = vmatprep.mubr.bf16.mxu0 0
      %2100 = vmatmul.mubr.bf16.gmra.mxu0 %v1898
      %v2101 = vpop.f32.mrf.mxu0
      %v2102 = vadd.f32 0.0, %v2101
      %v2103 = vpop.f32.mrf.mxu0
      %v2104 = vpop.f32.mrf.mxu0
      %v2105 = vadd.f32 0.0, %v2104
      %v2106 = vpop.f32.mrf.mxu0
      %2107 = vmatprep.mubr.bf16.mxu0 0
      %2108 = vmatmul.mubr.bf16.gmra.mxu0 %v1901
      %v2109 = vpop.f32.mrf.mxu0
      %v2110 = vadd.f32 0.0, %v2109
      %v2111 = vpop.f32.mrf.mxu0
      %v2112 = vpop.f32.mrf.mxu0
      %v2113 = vadd.f32 0.0, %v2112
      %v2114 = vpop.f32.mrf.mxu0
      %2115 = vmatprep.mubr.bf16.mxu0 0
      %2116 = vmatmul.mubr.bf16.gmra.mxu0 %v1904
      %v2117 = vpop.f32.mrf.mxu0
      %v2118 = vadd.f32 0.0, %v2117
      %v2119 = vpop.f32.mrf.mxu0
      %v2120 = vpop.f32.mrf.mxu0
      %v2121 = vadd.f32 0.0, %v2120
      %v2122 = vpop.f32.mrf.mxu0
      %2123 = vmatprep.mubr.bf16.mxu0 0
      %2124 = vmatmul.mubr.bf16.gmra.mxu0 %v1907
      %v2125 = vpop.f32.mrf.mxu0
      %v2126 = vadd.f32 0.0, %v2125
      %v2127 = vpop.f32.mrf.mxu0
      %v2128 = vpop.f32.mrf.mxu0
      %v2129 = vpop.f32.mrf.mxu0
      %2130 = vdwg.mxu0
      %2131 = vst.msk [vmem:[%s717] sm:$0xff] %vm598, %v2078
      %2132 = vst.msk [vmem:[%s717 + $0x8] sm:$0xff] %vm598, %v2081
      %2133 = vst.msk [vmem:[%s717 + $0x10] sm:$0xff] %vm598, %v2086
      %2134 = vst.msk [vmem:[%s717 + $0x18] sm:$0xff] %vm598, %v2089
      %2135 = vst.msk [vmem:[%s717 + $0x20] sm:$0xff] %vm598, %v2094
      %2136 = vst.msk [vmem:[%s717 + $0x28] sm:$0xff] %vm598, %v2097
      %2137 = vst.msk [vmem:[%s717 + $0x30] sm:$0xff] %vm598, %v2102
      %2138 = vst.msk [vmem:[%s717 + $0x38] sm:$0xff] %vm598, %v2105
      %2139 = vst.msk [vmem:[%s717 + $0x40] sm:$0xff] %vm598, %v2110
      %2140 = vst.msk [vmem:[%s717 + $0x48] sm:$0xff] %vm598, %v2113
      %2141 = vst.msk [vmem:[%s717 + $0x50] sm:$0xff] %vm598, %v2118
      %2142 = vst.msk [vmem:[%s717 + $0x58] sm:$0xff] %vm598, %v2121
      %2143 = vst.msk [vmem:[%s717 + $0x60] sm:$0xff] %vm598, %v2126
      %s2144 = scalar_lea.vmem %s2, 64
      %v2145 = vld [vmem:[%s2144] sm:$0xf]
      %v2146 = vld [vmem:[%s2144 + $0x4] sm:$0xf]
      %v2147 = vld [vmem:[%s2144 + $0x8] sm:$0xf]
      %v2148 = vld [vmem:[%s2144 + $0xc] sm:$0xf]
      %v2149 = vld [vmem:[%s2144 + $0x10] sm:$0xf]
      %v2150 = vld [vmem:[%s2144 + $0x14] sm:$0xf]
      %v2151 = vld [vmem:[%s2144 + $0x18] sm:$0xf]
      %v2152 = vld [vmem:[%s2144 + $0x1c] sm:$0xf]
      %v2161 = vunpack.c.l.b16 %v2145
      %v2162 = vunpack.c.l.b16 %v2146
      %v2163 = vunpack.c.l.b16 %v2147
      %v2164 = vunpack.c.l.b16 %v2148
      %v2165 = vunpack.c.l.b16 %v2149
      %v2166 = vunpack.c.l.b16 %v2150
      %v2167 = vunpack.c.l.b16 %v2151
      %v2168 = vunpack.c.l.b16 %v2152
      %v2169 = vpack.c.b16 %v2162, %v2161
      %v2170 = vpack.c.b16 %v2164, %v2163
      %v2171 = vpack.c.b16 %v2166, %v2165
      %v2172 = vpack.c.b16 %v2168, %v2167
      %2177 = vmatprep.subr.bf16.mxu0 0
      %2178 = vmatpush1.bf16.msra.mxu0 0
      %2179 = vmatprep.subr.bf16.mxu0 0
      %2180 = vmatpush1.bf16.msra.mxu0 0
      %2181 = vmatprep.subr.bf16.mxu0 0
      %2182 = vmatpush1.bf16.msra.mxu0 0
      %2183 = vmatprep.subr.bf16.mxu0 0
      %2184 = vmatpush1.bf16.msra.mxu0 0
      %2185 = vmatprep.subr.bf16.mxu0 0
      %2186 = vmatpush1.bf16.msra.mxu0 %v2172
      %2187 = vmatprep.subr.bf16.mxu0 0
      %2188 = vmatpush1.bf16.msra.mxu0 %v2171
      %2189 = vmatprep.subr.bf16.mxu0 0
      %2190 = vmatpush1.bf16.msra.mxu0 %v2170
      %2191 = vmatprep.subr.bf16.mxu0 0
      %2192 = vmatpush1.bf16.msra.mxu0 %v2169
      %2193 = vmatprep.subr.bf16.mxu0 0
      %2194 = vmatpush2.bf16.msra.mxu0 0
      %2195 = vmatprep.subr.bf16.mxu0 0
      %2196 = vmatpush2.bf16.msra.mxu0 0
      %2197 = vmatprep.subr.bf16.mxu0 0
      %2198 = vmatpush2.bf16.msra.mxu0 0
      %2199 = vmatprep.subr.bf16.mxu0 0
      %2200 = vmatpush2.bf16.msra.mxu0 0
      %2201 = vmatprep.subr.bf16.mxu0 0
      %2202 = vmatpush2.bf16.msra.mxu0 0
      %2203 = vmatprep.subr.bf16.mxu0 0
      %2204 = vmatpush2.bf16.msra.mxu0 0
      %2205 = vmatprep.subr.bf16.mxu0 0
      %2206 = vmatpush2.bf16.msra.mxu0 0
      %2207 = vmatprep.subr.bf16.mxu0 0
      %2208 = vmatpush2.bf16.msra.mxu0 0
      %2209 = vmatprep.mubr.bf16.mxu0 0
      %2210 = vmatmul.mubr.bf16.gmra.mxu0 %v1889
      %v2211 = vpop.f32.mrf.mxu0
      %v2212 = vadd.f32 0.0, %v2211
      %v2213 = vpop.f32.mrf.mxu0
      %v2214 = vpop.f32.mrf.mxu0
      %v2215 = vadd.f32 0.0, %v2214
      %v2216 = vpop.f32.mrf.mxu0
      %2217 = vmatprep.mubr.bf16.mxu0 0
      %2218 = vmatmul.mubr.bf16.gmra.mxu0 %v1892
      %v2219 = vpop.f32.mrf.mxu0
      %v2220 = vadd.f32 0.0, %v2219
      %v2221 = vpop.f32.mrf.mxu0
      %v2222 = vpop.f32.mrf.mxu0
      %v2223 = vadd.f32 0.0, %v2222
      %v2224 = vpop.f32.mrf.mxu0
      %2225 = vmatprep.mubr.bf16.mxu0 0
      %2226 = vmatmul.mubr.bf16.gmra.mxu0 %v1895
      %v2227 = vpop.f32.mrf.mxu0
      %v2228 = vadd.f32 0.0, %v2227
      %v2229 = vpop.f32.mrf.mxu0
      %v2230 = vpop.f32.mrf.mxu0
      %v2231 = vadd.f32 0.0, %v2230
      %v2232 = vpop.f32.mrf.mxu0
      %2233 = vmatprep.mubr.bf16.mxu0 0
      %2234 = vmatmul.mubr.bf16.gmra.mxu0 %v1898
      %v2235 = vpop.f32.mrf.mxu0
      %v2236 = vadd.f32 0.0, %v2235
      %v2237 = vpop.f32.mrf.mxu0
      %v2238 = vpop.f32.mrf.mxu0
      %v2239 = vadd.f32 0.0, %v2238
      %v2240 = vpop.f32.mrf.mxu0
      %2241 = vmatprep.mubr.bf16.mxu0 0
      %2242 = vmatmul.mubr.bf16.gmra.mxu0 %v1901
      %v2243 = vpop.f32.mrf.mxu0
      %v2244 = vadd.f32 0.0, %v2243
      %v2245 = vpop.f32.mrf.mxu0
      %v2246 = vpop.f32.mrf.mxu0
      %v2247 = vadd.f32 0.0, %v2246
      %v2248 = vpop.f32.mrf.mxu0
      %2249 = vmatprep.mubr.bf16.mxu0 0
      %2250 = vmatmul.mubr.bf16.gmra.mxu0 %v1904
      %v2251 = vpop.f32.mrf.mxu0
      %v2252 = vadd.f32 0.0, %v2251
      %v2253 = vpop.f32.mrf.mxu0
      %v2254 = vpop.f32.mrf.mxu0
      %v2255 = vadd.f32 0.0, %v2254
      %v2256 = vpop.f32.mrf.mxu0
      %2257 = vmatprep.mubr.bf16.mxu0 0
      %2258 = vmatmul.mubr.bf16.gmra.mxu0 %v1907
      %v2259 = vpop.f32.mrf.mxu0
      %v2260 = vadd.f32 0.0, %v2259
      %v2261 = vpop.f32.mrf.mxu0
      %v2262 = vpop.f32.mrf.mxu0
      %v2263 = vpop.f32.mrf.mxu0
      %2264 = vdwg.mxu0
      %2265 = vst.msk [vmem:[%s836] sm:$0xff] %vm598, %v2212
      %2266 = vst.msk [vmem:[%s836 + $0x8] sm:$0xff] %vm598, %v2215
      %2267 = vst.msk [vmem:[%s836 + $0x10] sm:$0xff] %vm598, %v2220
      %2268 = vst.msk [vmem:[%s836 + $0x18] sm:$0xff] %vm598, %v2223
      %2269 = vst.msk [vmem:[%s836 + $0x20] sm:$0xff] %vm598, %v2228
      %2270 = vst.msk [vmem:[%s836 + $0x28] sm:$0xff] %vm598, %v2231
      %2271 = vst.msk [vmem:[%s836 + $0x30] sm:$0xff] %vm598, %v2236
      %2272 = vst.msk [vmem:[%s836 + $0x38] sm:$0xff] %vm598, %v2239
      %2273 = vst.msk [vmem:[%s836 + $0x40] sm:$0xff] %vm598, %v2244
      %2274 = vst.msk [vmem:[%s836 + $0x48] sm:$0xff] %vm598, %v2247
      %2275 = vst.msk [vmem:[%s836 + $0x50] sm:$0xff] %vm598, %v2252
      %2276 = vst.msk [vmem:[%s836 + $0x58] sm:$0xff] %vm598, %v2255
      %2277 = vst.msk [vmem:[%s836 + $0x60] sm:$0xff] %vm598, %v2260
      %s2278 = scalar_lea.vmem %s2, 96
      %v2279 = vld [vmem:[%s2278] sm:$0xf]
      %v2280 = vld [vmem:[%s2278 + $0x4] sm:$0xf]
      %v2281 = vld [vmem:[%s2278 + $0x8] sm:$0xf]
      %v2282 = vld [vmem:[%s2278 + $0xc] sm:$0xf]
      %v2283 = vld [vmem:[%s2278 + $0x10] sm:$0xf]
      %v2284 = vld [vmem:[%s2278 + $0x14] sm:$0xf]
      %v2285 = vld [vmem:[%s2278 + $0x18] sm:$0xf]
      %v2286 = vld [vmem:[%s2278 + $0x1c] sm:$0xf]
      %v2295 = vunpack.c.l.b16 %v2279
      %v2296 = vunpack.c.l.b16 %v2280
      %v2297 = vunpack.c.l.b16 %v2281
      %v2298 = vunpack.c.l.b16 %v2282
      %v2299 = vunpack.c.l.b16 %v2283
      %v2300 = vunpack.c.l.b16 %v2284
      %v2301 = vunpack.c.l.b16 %v2285
      %v2302 = vunpack.c.l.b16 %v2286
      %v2303 = vpack.c.b16 %v2296, %v2295
      %v2304 = vpack.c.b16 %v2298, %v2297
      %v2305 = vpack.c.b16 %v2300, %v2299
      %v2306 = vpack.c.b16 %v2302, %v2301
      %2311 = vmatprep.subr.bf16.mxu0 0
      %2312 = vmatpush1.bf16.msra.mxu0 0
      %2313 = vmatprep.subr.bf16.mxu0 0
      %2314 = vmatpush1.bf16.msra.mxu0 0
      %2315 = vmatprep.subr.bf16.mxu0 0
      %2316 = vmatpush1.bf16.msra.mxu0 0
      %2317 = vmatprep.subr.bf16.mxu0 0
      %2318 = vmatpush1.bf16.msra.mxu0 0
      %2319 = vmatprep.subr.bf16.mxu0 0
      %2320 = vmatpush1.bf16.msra.mxu0 %v2306
      %2321 = vmatprep.subr.bf16.mxu0 0
      %2322 = vmatpush1.bf16.msra.mxu0 %v2305
      %2323 = vmatprep.subr.bf16.mxu0 0
      %2324 = vmatpush1.bf16.msra.mxu0 %v2304
      %2325 = vmatprep.subr.bf16.mxu0 0
      %2326 = vmatpush1.bf16.msra.mxu0 %v2303
      %2327 = vmatprep.subr.bf16.mxu0 0
      %2328 = vmatpush2.bf16.msra.mxu0 0
      %2329 = vmatprep.subr.bf16.mxu0 0
      %2330 = vmatpush2.bf16.msra.mxu0 0
      %2331 = vmatprep.subr.bf16.mxu0 0
      %2332 = vmatpush2.bf16.msra.mxu0 0
      %2333 = vmatprep.subr.bf16.mxu0 0
      %2334 = vmatpush2.bf16.msra.mxu0 0
      %2335 = vmatprep.subr.bf16.mxu0 0
      %2336 = vmatpush2.bf16.msra.mxu0 0
      %2337 = vmatprep.subr.bf16.mxu0 0
      %2338 = vmatpush2.bf16.msra.mxu0 0
      %2339 = vmatprep.subr.bf16.mxu0 0
      %2340 = vmatpush2.bf16.msra.mxu0 0
      %2341 = vmatprep.subr.bf16.mxu0 0
      %2342 = vmatpush2.bf16.msra.mxu0 0
      %2343 = vmatprep.mubr.bf16.mxu0 0
      %2344 = vmatmul.mubr.bf16.gmra.mxu0 %v1889
      %v2345 = vpop.f32.mrf.mxu0
      %v2346 = vadd.f32 0.0, %v2345
      %v2347 = vpop.f32.mrf.mxu0
      %v2348 = vpop.f32.mrf.mxu0
      %v2349 = vadd.f32 0.0, %v2348
      %v2350 = vpop.f32.mrf.mxu0
      %2351 = vmatprep.mubr.bf16.mxu0 0
      %2352 = vmatmul.mubr.bf16.gmra.mxu0 %v1892
      %v2353 = vpop.f32.mrf.mxu0
      %v2354 = vadd.f32 0.0, %v2353
      %v2355 = vpop.f32.mrf.mxu0
      %v2356 = vpop.f32.mrf.mxu0
      %v2357 = vadd.f32 0.0, %v2356
      %v2358 = vpop.f32.mrf.mxu0
      %2359 = vmatprep.mubr.bf16.mxu0 0
      %2360 = vmatmul.mubr.bf16.gmra.mxu0 %v1895
      %v2361 = vpop.f32.mrf.mxu0
      %v2362 = vadd.f32 0.0, %v2361
      %v2363 = vpop.f32.mrf.mxu0
      %v2364 = vpop.f32.mrf.mxu0
      %v2365 = vadd.f32 0.0, %v2364
      %v2366 = vpop.f32.mrf.mxu0
      %2367 = vmatprep.mubr.bf16.mxu0 0
      %2368 = vmatmul.mubr.bf16.gmra.mxu0 %v1898
      %v2369 = vpop.f32.mrf.mxu0
      %v2370 = vadd.f32 0.0, %v2369
      %v2371 = vpop.f32.mrf.mxu0
      %v2372 = vpop.f32.mrf.mxu0
      %v2373 = vadd.f32 0.0, %v2372
      %v2374 = vpop.f32.mrf.mxu0
      %2375 = vmatprep.mubr.bf16.mxu0 0
      %2376 = vmatmul.mubr.bf16.gmra.mxu0 %v1901
      %v2377 = vpop.f32.mrf.mxu0
      %v2378 = vadd.f32 0.0, %v2377
      %v2379 = vpop.f32.mrf.mxu0
      %v2380 = vpop.f32.mrf.mxu0
      %v2381 = vadd.f32 0.0, %v2380
      %v2382 = vpop.f32.mrf.mxu0
      %2383 = vmatprep.mubr.bf16.mxu0 0
      %2384 = vmatmul.mubr.bf16.gmra.mxu0 %v1904
      %v2385 = vpop.f32.mrf.mxu0
      %v2386 = vadd.f32 0.0, %v2385
      %v2387 = vpop.f32.mrf.mxu0
      %v2388 = vpop.f32.mrf.mxu0
      %v2389 = vadd.f32 0.0, %v2388
      %v2390 = vpop.f32.mrf.mxu0
      %2391 = vmatprep.mubr.bf16.mxu0 0
      %2392 = vmatmul.mubr.bf16.gmra.mxu0 %v1907
      %v2393 = vpop.f32.mrf.mxu0
      %v2394 = vadd.f32 0.0, %v2393
      %v2395 = vpop.f32.mrf.mxu0
      %v2396 = vpop.f32.mrf.mxu0
      %v2397 = vpop.f32.mrf.mxu0
      %2398 = vdwg.mxu0
      %2399 = vst.msk [vmem:[%s955] sm:$0xff] %vm598, %v2346
      %2400 = vst.msk [vmem:[%s955 + $0x8] sm:$0xff] %vm598, %v2349
      %2401 = vst.msk [vmem:[%s955 + $0x10] sm:$0xff] %vm598, %v2354
      %2402 = vst.msk [vmem:[%s955 + $0x18] sm:$0xff] %vm598, %v2357
      %2403 = vst.msk [vmem:[%s955 + $0x20] sm:$0xff] %vm598, %v2362
      %2404 = vst.msk [vmem:[%s955 + $0x28] sm:$0xff] %vm598, %v2365
      %2405 = vst.msk [vmem:[%s955 + $0x30] sm:$0xff] %vm598, %v2370
      %2406 = vst.msk [vmem:[%s955 + $0x38] sm:$0xff] %vm598, %v2373
      %2407 = vst.msk [vmem:[%s955 + $0x40] sm:$0xff] %vm598, %v2378
      %2408 = vst.msk [vmem:[%s955 + $0x48] sm:$0xff] %vm598, %v2381
      %2409 = vst.msk [vmem:[%s955 + $0x50] sm:$0xff] %vm598, %v2386
      %2410 = vst.msk [vmem:[%s955 + $0x58] sm:$0xff] %vm598, %v2389
      %2411 = vst.msk [vmem:[%s955 + $0x60] sm:$0xff] %vm598, %v2394
      %s2412 = scalar_lea.vmem %s2, 128
      %v2413 = vld [vmem:[%s2412] sm:$0xf]
      %v2414 = vld [vmem:[%s2412 + $0x4] sm:$0xf]
      %v2415 = vld [vmem:[%s2412 + $0x8] sm:$0xf]
      %v2416 = vld [vmem:[%s2412 + $0xc] sm:$0xf]
      %v2417 = vld [vmem:[%s2412 + $0x10] sm:$0xf]
      %v2418 = vld [vmem:[%s2412 + $0x14] sm:$0xf]
      %v2419 = vld [vmem:[%s2412 + $0x18] sm:$0xf]
      %v2420 = vld [vmem:[%s2412 + $0x1c] sm:$0xf]
      %v2429 = vunpack.c.l.b16 %v2413
      %v2430 = vunpack.c.l.b16 %v2414
      %v2431 = vunpack.c.l.b16 %v2415
      %v2432 = vunpack.c.l.b16 %v2416
      %v2433 = vunpack.c.l.b16 %v2417
      %v2434 = vunpack.c.l.b16 %v2418
      %v2435 = vunpack.c.l.b16 %v2419
      %v2436 = vunpack.c.l.b16 %v2420
      %v2437 = vpack.c.b16 %v2430, %v2429
      %v2438 = vpack.c.b16 %v2432, %v2431
      %v2439 = vpack.c.b16 %v2434, %v2433
      %v2440 = vpack.c.b16 %v2436, %v2435
      %2445 = vmatprep.subr.bf16.mxu0 0
      %2446 = vmatpush1.bf16.msra.mxu0 0
      %2447 = vmatprep.subr.bf16.mxu0 0
      %2448 = vmatpush1.bf16.msra.mxu0 0
      %2449 = vmatprep.subr.bf16.mxu0 0
      %2450 = vmatpush1.bf16.msra.mxu0 0
      %2451 = vmatprep.subr.bf16.mxu0 0
      %2452 = vmatpush1.bf16.msra.mxu0 0
      %2453 = vmatprep.subr.bf16.mxu0 0
      %2454 = vmatpush1.bf16.msra.mxu0 %v2440
      %2455 = vmatprep.subr.bf16.mxu0 0
      %2456 = vmatpush1.bf16.msra.mxu0 %v2439
      %2457 = vmatprep.subr.bf16.mxu0 0
      %2458 = vmatpush1.bf16.msra.mxu0 %v2438
      %2459 = vmatprep.subr.bf16.mxu0 0
      %2460 = vmatpush1.bf16.msra.mxu0 %v2437
      %2461 = vmatprep.subr.bf16.mxu0 0
      %2462 = vmatpush2.bf16.msra.mxu0 0
      %2463 = vmatprep.subr.bf16.mxu0 0
      %2464 = vmatpush2.bf16.msra.mxu0 0
      %2465 = vmatprep.subr.bf16.mxu0 0
      %2466 = vmatpush2.bf16.msra.mxu0 0
      %2467 = vmatprep.subr.bf16.mxu0 0
      %2468 = vmatpush2.bf16.msra.mxu0 0
      %2469 = vmatprep.subr.bf16.mxu0 0
      %2470 = vmatpush2.bf16.msra.mxu0 0
      %2471 = vmatprep.subr.bf16.mxu0 0
      %2472 = vmatpush2.bf16.msra.mxu0 0
      %2473 = vmatprep.subr.bf16.mxu0 0
      %2474 = vmatpush2.bf16.msra.mxu0 0
      %2475 = vmatprep.subr.bf16.mxu0 0
      %2476 = vmatpush2.bf16.msra.mxu0 0
      %2477 = vmatprep.mubr.bf16.mxu0 0
      %2478 = vmatmul.mubr.bf16.gmra.mxu0 %v1889
      %v2479 = vpop.f32.mrf.mxu0
      %v2480 = vadd.f32 0.0, %v2479
      %v2481 = vpop.f32.mrf.mxu0
      %v2482 = vpop.f32.mrf.mxu0
      %v2483 = vadd.f32 0.0, %v2482
      %v2484 = vpop.f32.mrf.mxu0
      %2485 = vmatprep.mubr.bf16.mxu0 0
      %2486 = vmatmul.mubr.bf16.gmra.mxu0 %v1892
      %v2487 = vpop.f32.mrf.mxu0
      %v2488 = vadd.f32 0.0, %v2487
      %v2489 = vpop.f32.mrf.mxu0
      %v2490 = vpop.f32.mrf.mxu0
      %v2491 = vadd.f32 0.0, %v2490
      %v2492 = vpop.f32.mrf.mxu0
      %2493 = vmatprep.mubr.bf16.mxu0 0
      %2494 = vmatmul.mubr.bf16.gmra.mxu0 %v1895
      %v2495 = vpop.f32.mrf.mxu0
      %v2496 = vadd.f32 0.0, %v2495
      %v2497 = vpop.f32.mrf.mxu0
      %v2498 = vpop.f32.mrf.mxu0
      %v2499 = vadd.f32 0.0, %v2498
      %v2500 = vpop.f32.mrf.mxu0
      %2501 = vmatprep.mubr.bf16.mxu0 0
      %2502 = vmatmul.mubr.bf16.gmra.mxu0 %v1898
      %v2503 = vpop.f32.mrf.mxu0
      %v2504 = vadd.f32 0.0, %v2503
      %v2505 = vpop.f32.mrf.mxu0
      %v2506 = vpop.f32.mrf.mxu0
      %v2507 = vadd.f32 0.0, %v2506
      %v2508 = vpop.f32.mrf.mxu0
      %2509 = vmatprep.mubr.bf16.mxu0 0
      %2510 = vmatmul.mubr.bf16.gmra.mxu0 %v1901
      %v2511 = vpop.f32.mrf.mxu0
      %v2512 = vadd.f32 0.0, %v2511
      %v2513 = vpop.f32.mrf.mxu0
      %v2514 = vpop.f32.mrf.mxu0
      %v2515 = vadd.f32 0.0, %v2514
      %v2516 = vpop.f32.mrf.mxu0
      %2517 = vmatprep.mubr.bf16.mxu0 0
      %2518 = vmatmul.mubr.bf16.gmra.mxu0 %v1904
      %v2519 = vpop.f32.mrf.mxu0
      %v2520 = vadd.f32 0.0, %v2519
      %v2521 = vpop.f32.mrf.mxu0
      %v2522 = vpop.f32.mrf.mxu0
      %v2523 = vadd.f32 0.0, %v2522
      %v2524 = vpop.f32.mrf.mxu0
      %2525 = vmatprep.mubr.bf16.mxu0 0
      %2526 = vmatmul.mubr.bf16.gmra.mxu0 %v1907
      %v2527 = vpop.f32.mrf.mxu0
      %v2528 = vadd.f32 0.0, %v2527
      %v2529 = vpop.f32.mrf.mxu0
      %v2530 = vpop.f32.mrf.mxu0
      %v2531 = vpop.f32.mrf.mxu0
      %2532 = vdwg.mxu0
      %2533 = vst.msk [vmem:[%s1074] sm:$0xff] %vm598, %v2480
      %2534 = vst.msk [vmem:[%s1074 + $0x8] sm:$0xff] %vm598, %v2483
      %2535 = vst.msk [vmem:[%s1074 + $0x10] sm:$0xff] %vm598, %v2488
      %2536 = vst.msk [vmem:[%s1074 + $0x18] sm:$0xff] %vm598, %v2491
      %2537 = vst.msk [vmem:[%s1074 + $0x20] sm:$0xff] %vm598, %v2496
      %2538 = vst.msk [vmem:[%s1074 + $0x28] sm:$0xff] %vm598, %v2499
      %2539 = vst.msk [vmem:[%s1074 + $0x30] sm:$0xff] %vm598, %v2504
      %2540 = vst.msk [vmem:[%s1074 + $0x38] sm:$0xff] %vm598, %v2507
      %2541 = vst.msk [vmem:[%s1074 + $0x40] sm:$0xff] %vm598, %v2512
      %2542 = vst.msk [vmem:[%s1074 + $0x48] sm:$0xff] %vm598, %v2515
      %2543 = vst.msk [vmem:[%s1074 + $0x50] sm:$0xff] %vm598, %v2520
      %2544 = vst.msk [vmem:[%s1074 + $0x58] sm:$0xff] %vm598, %v2523
      %2545 = vst.msk [vmem:[%s1074 + $0x60] sm:$0xff] %vm598, %v2528
      %s2546 = scalar_lea.vmem %s2, 160
      %v2547 = vld [vmem:[%s2546] sm:$0xf]
      %v2548 = vld [vmem:[%s2546 + $0x4] sm:$0xf]
      %v2549 = vld [vmem:[%s2546 + $0x8] sm:$0xf]
      %v2550 = vld [vmem:[%s2546 + $0xc] sm:$0xf]
      %v2551 = vld [vmem:[%s2546 + $0x10] sm:$0xf]
      %v2552 = vld [vmem:[%s2546 + $0x14] sm:$0xf]
      %v2553 = vld [vmem:[%s2546 + $0x18] sm:$0xf]
      %v2554 = vld [vmem:[%s2546 + $0x1c] sm:$0xf]
      %v2563 = vunpack.c.l.b16 %v2547
      %v2564 = vunpack.c.l.b16 %v2548
      %v2565 = vunpack.c.l.b16 %v2549
      %v2566 = vunpack.c.l.b16 %v2550
      %v2567 = vunpack.c.l.b16 %v2551
      %v2568 = vunpack.c.l.b16 %v2552
      %v2569 = vunpack.c.l.b16 %v2553
      %v2570 = vunpack.c.l.b16 %v2554
      %v2571 = vpack.c.b16 %v2564, %v2563
      %v2572 = vpack.c.b16 %v2566, %v2565
      %v2573 = vpack.c.b16 %v2568, %v2567
      %v2574 = vpack.c.b16 %v2570, %v2569
      %2579 = vmatprep.subr.bf16.mxu0 0
      %2580 = vmatpush1.bf16.msra.mxu0 0
      %2581 = vmatprep.subr.bf16.mxu0 0
      %2582 = vmatpush1.bf16.msra.mxu0 0
      %2583 = vmatprep.subr.bf16.mxu0 0
      %2584 = vmatpush1.bf16.msra.mxu0 0
      %2585 = vmatprep.subr.bf16.mxu0 0
      %2586 = vmatpush1.bf16.msra.mxu0 0
      %2587 = vmatprep.subr.bf16.mxu0 0
      %2588 = vmatpush1.bf16.msra.mxu0 %v2574
      %2589 = vmatprep.subr.bf16.mxu0 0
      %2590 = vmatpush1.bf16.msra.mxu0 %v2573
      %2591 = vmatprep.subr.bf16.mxu0 0
      %2592 = vmatpush1.bf16.msra.mxu0 %v2572
      %2593 = vmatprep.subr.bf16.mxu0 0
      %2594 = vmatpush1.bf16.msra.mxu0 %v2571
      %2595 = vmatprep.subr.bf16.mxu0 0
      %2596 = vmatpush2.bf16.msra.mxu0 0
      %2597 = vmatprep.subr.bf16.mxu0 0
      %2598 = vmatpush2.bf16.msra.mxu0 0
      %2599 = vmatprep.subr.bf16.mxu0 0
      %2600 = vmatpush2.bf16.msra.mxu0 0
      %2601 = vmatprep.subr.bf16.mxu0 0
      %2602 = vmatpush2.bf16.msra.mxu0 0
      %2603 = vmatprep.subr.bf16.mxu0 0
      %2604 = vmatpush2.bf16.msra.mxu0 0
      %2605 = vmatprep.subr.bf16.mxu0 0
      %2606 = vmatpush2.bf16.msra.mxu0 0
      %2607 = vmatprep.subr.bf16.mxu0 0
      %2608 = vmatpush2.bf16.msra.mxu0 0
      %2609 = vmatprep.subr.bf16.mxu0 0
      %2610 = vmatpush2.bf16.msra.mxu0 0
      %2611 = vmatprep.mubr.bf16.mxu0 0
      %2612 = vmatmul.mubr.bf16.gmra.mxu0 %v1889
      %v2613 = vpop.f32.mrf.mxu0
      %v2614 = vadd.f32 0.0, %v2613
      %v2615 = vpop.f32.mrf.mxu0
      %v2616 = vpop.f32.mrf.mxu0
      %v2617 = vadd.f32 0.0, %v2616
      %v2618 = vpop.f32.mrf.mxu0
      %2619 = vmatprep.mubr.bf16.mxu0 0
      %2620 = vmatmul.mubr.bf16.gmra.mxu0 %v1892
      %v2621 = vpop.f32.mrf.mxu0
      %v2622 = vadd.f32 0.0, %v2621
      %v2623 = vpop.f32.mrf.mxu0
      %v2624 = vpop.f32.mrf.mxu0
      %v2625 = vadd.f32 0.0, %v2624
      %v2626 = vpop.f32.mrf.mxu0
      %2627 = vmatprep.mubr.bf16.mxu0 0
      %2628 = vmatmul.mubr.bf16.gmra.mxu0 %v1895
      %v2629 = vpop.f32.mrf.mxu0
      %v2630 = vadd.f32 0.0, %v2629
      %v2631 = vpop.f32.mrf.mxu0
      %v2632 = vpop.f32.mrf.mxu0
      %v2633 = vadd.f32 0.0, %v2632
      %v2634 = vpop.f32.mrf.mxu0
      %2635 = vmatprep.mubr.bf16.mxu0 0
      %2636 = vmatmul.mubr.bf16.gmra.mxu0 %v1898
      %v2637 = vpop.f32.mrf.mxu0
      %v2638 = vadd.f32 0.0, %v2637
      %v2639 = vpop.f32.mrf.mxu0
      %v2640 = vpop.f32.mrf.mxu0
      %v2641 = vadd.f32 0.0, %v2640
      %v2642 = vpop.f32.mrf.mxu0
      %2643 = vmatprep.mubr.bf16.mxu0 0
      %2644 = vmatmul.mubr.bf16.gmra.mxu0 %v1901
      %v2645 = vpop.f32.mrf.mxu0
      %v2646 = vadd.f32 0.0, %v2645
      %v2647 = vpop.f32.mrf.mxu0
      %v2648 = vpop.f32.mrf.mxu0
      %v2649 = vadd.f32 0.0, %v2648
      %v2650 = vpop.f32.mrf.mxu0
      %2651 = vmatprep.mubr.bf16.mxu0 0
      %2652 = vmatmul.mubr.bf16.gmra.mxu0 %v1904
      %v2653 = vpop.f32.mrf.mxu0
      %v2654 = vadd.f32 0.0, %v2653
      %v2655 = vpop.f32.mrf.mxu0
      %v2656 = vpop.f32.mrf.mxu0
      %v2657 = vadd.f32 0.0, %v2656
      %v2658 = vpop.f32.mrf.mxu0
      %2659 = vmatprep.mubr.bf16.mxu0 0
      %2660 = vmatmul.mubr.bf16.gmra.mxu0 %v1907
      %v2661 = vpop.f32.mrf.mxu0
      %v2662 = vadd.f32 0.0, %v2661
      %v2663 = vpop.f32.mrf.mxu0
      %v2664 = vpop.f32.mrf.mxu0
      %v2665 = vpop.f32.mrf.mxu0
      %2666 = vdwg.mxu0
      %2667 = vst.msk [vmem:[%s1193] sm:$0xff] %vm598, %v2614
      %2668 = vst.msk [vmem:[%s1193 + $0x8] sm:$0xff] %vm598, %v2617
      %2669 = vst.msk [vmem:[%s1193 + $0x10] sm:$0xff] %vm598, %v2622
      %2670 = vst.msk [vmem:[%s1193 + $0x18] sm:$0xff] %vm598, %v2625
      %2671 = vst.msk [vmem:[%s1193 + $0x20] sm:$0xff] %vm598, %v2630
      %2672 = vst.msk [vmem:[%s1193 + $0x28] sm:$0xff] %vm598, %v2633
      %2673 = vst.msk [vmem:[%s1193 + $0x30] sm:$0xff] %vm598, %v2638
      %2674 = vst.msk [vmem:[%s1193 + $0x38] sm:$0xff] %vm598, %v2641
      %2675 = vst.msk [vmem:[%s1193 + $0x40] sm:$0xff] %vm598, %v2646
      %2676 = vst.msk [vmem:[%s1193 + $0x48] sm:$0xff] %vm598, %v2649
      %2677 = vst.msk [vmem:[%s1193 + $0x50] sm:$0xff] %vm598, %v2654
      %2678 = vst.msk [vmem:[%s1193 + $0x58] sm:$0xff] %vm598, %v2657
      %2679 = vst.msk [vmem:[%s1193 + $0x60] sm:$0xff] %vm598, %v2662
      %s2680 = scalar_lea.vmem %s2, 192
      %v2681 = vld [vmem:[%s2680] sm:$0xf]
      %v2682 = vld [vmem:[%s2680 + $0x4] sm:$0xf]
      %v2683 = vld [vmem:[%s2680 + $0x8] sm:$0xf]
      %v2684 = vld [vmem:[%s2680 + $0xc] sm:$0xf]
      %v2685 = vld [vmem:[%s2680 + $0x10] sm:$0xf]
      %v2686 = vld [vmem:[%s2680 + $0x14] sm:$0xf]
      %v2687 = vld [vmem:[%s2680 + $0x18] sm:$0xf]
      %v2688 = vld [vmem:[%s2680 + $0x1c] sm:$0xf]
      %v2697 = vunpack.c.l.b16 %v2681
      %v2698 = vunpack.c.l.b16 %v2682
      %v2699 = vunpack.c.l.b16 %v2683
      %v2700 = vunpack.c.l.b16 %v2684
      %v2701 = vunpack.c.l.b16 %v2685
      %v2702 = vunpack.c.l.b16 %v2686
      %v2703 = vunpack.c.l.b16 %v2687
      %v2704 = vunpack.c.l.b16 %v2688
      %v2705 = vpack.c.b16 %v2698, %v2697
      %v2706 = vpack.c.b16 %v2700, %v2699
      %v2707 = vpack.c.b16 %v2702, %v2701
      %v2708 = vpack.c.b16 %v2704, %v2703
      %2713 = vmatprep.subr.bf16.mxu0 0
      %2714 = vmatpush1.bf16.msra.mxu0 0
      %2715 = vmatprep.subr.bf16.mxu0 0
      %2716 = vmatpush1.bf16.msra.mxu0 0
      %2717 = vmatprep.subr.bf16.mxu0 0
      %2718 = vmatpush1.bf16.msra.mxu0 0
      %2719 = vmatprep.subr.bf16.mxu0 0
      %2720 = vmatpush1.bf16.msra.mxu0 0
      %2721 = vmatprep.subr.bf16.mxu0 0
      %2722 = vmatpush1.bf16.msra.mxu0 %v2708
      %2723 = vmatprep.subr.bf16.mxu0 0
      %2724 = vmatpush1.bf16.msra.mxu0 %v2707
      %2725 = vmatprep.subr.bf16.mxu0 0
      %2726 = vmatpush1.bf16.msra.mxu0 %v2706
      %2727 = vmatprep.subr.bf16.mxu0 0
      %2728 = vmatpush1.bf16.msra.mxu0 %v2705
      %2729 = vmatprep.subr.bf16.mxu0 0
      %2730 = vmatpush2.bf16.msra.mxu0 0
      %2731 = vmatprep.subr.bf16.mxu0 0
      %2732 = vmatpush2.bf16.msra.mxu0 0
      %2733 = vmatprep.subr.bf16.mxu0 0
      %2734 = vmatpush2.bf16.msra.mxu0 0
      %2735 = vmatprep.subr.bf16.mxu0 0
      %2736 = vmatpush2.bf16.msra.mxu0 0
      %2737 = vmatprep.subr.bf16.mxu0 0
      %2738 = vmatpush2.bf16.msra.mxu0 0
      %2739 = vmatprep.subr.bf16.mxu0 0
      %2740 = vmatpush2.bf16.msra.mxu0 0
      %2741 = vmatprep.subr.bf16.mxu0 0
      %2742 = vmatpush2.bf16.msra.mxu0 0
      %2743 = vmatprep.subr.bf16.mxu0 0
      %2744 = vmatpush2.bf16.msra.mxu0 0
      %2745 = vmatprep.mubr.bf16.mxu0 0
      %2746 = vmatmul.mubr.bf16.gmra.mxu0 %v1889
      %v2747 = vpop.f32.mrf.mxu0
      %v2748 = vadd.f32 0.0, %v2747
      %v2749 = vpop.f32.mrf.mxu0
      %v2750 = vpop.f32.mrf.mxu0
      %v2751 = vadd.f32 0.0, %v2750
      %v2752 = vpop.f32.mrf.mxu0
      %2753 = vmatprep.mubr.bf16.mxu0 0
      %2754 = vmatmul.mubr.bf16.gmra.mxu0 %v1892
      %v2755 = vpop.f32.mrf.mxu0
      %v2756 = vadd.f32 0.0, %v2755
      %v2757 = vpop.f32.mrf.mxu0
      %v2758 = vpop.f32.mrf.mxu0
      %v2759 = vadd.f32 0.0, %v2758
      %v2760 = vpop.f32.mrf.mxu0
      %2761 = vmatprep.mubr.bf16.mxu0 0
      %2762 = vmatmul.mubr.bf16.gmra.mxu0 %v1895
      %v2763 = vpop.f32.mrf.mxu0
      %v2764 = vadd.f32 0.0, %v2763
      %v2765 = vpop.f32.mrf.mxu0
      %v2766 = vpop.f32.mrf.mxu0
      %v2767 = vadd.f32 0.0, %v2766
      %v2768 = vpop.f32.mrf.mxu0
      %2769 = vmatprep.mubr.bf16.mxu0 0
      %2770 = vmatmul.mubr.bf16.gmra.mxu0 %v1898
      %v2771 = vpop.f32.mrf.mxu0
      %v2772 = vadd.f32 0.0, %v2771
      %v2773 = vpop.f32.mrf.mxu0
      %v2774 = vpop.f32.mrf.mxu0
      %v2775 = vadd.f32 0.0, %v2774
      %v2776 = vpop.f32.mrf.mxu0
      %2777 = vmatprep.mubr.bf16.mxu0 0
      %2778 = vmatmul.mubr.bf16.gmra.mxu0 %v1901
      %v2779 = vpop.f32.mrf.mxu0
      %v2780 = vadd.f32 0.0, %v2779
      %v2781 = vpop.f32.mrf.mxu0
      %v2782 = vpop.f32.mrf.mxu0
      %v2783 = vadd.f32 0.0, %v2782
      %v2784 = vpop.f32.mrf.mxu0
      %2785 = vmatprep.mubr.bf16.mxu0 0
      %2786 = vmatmul.mubr.bf16.gmra.mxu0 %v1904
      %v2787 = vpop.f32.mrf.mxu0
      %v2788 = vadd.f32 0.0, %v2787
      %v2789 = vpop.f32.mrf.mxu0
      %v2790 = vpop.f32.mrf.mxu0
      %v2791 = vadd.f32 0.0, %v2790
      %v2792 = vpop.f32.mrf.mxu0
      %2793 = vmatprep.mubr.bf16.mxu0 0
      %2794 = vmatmul.mubr.bf16.gmra.mxu0 %v1907
      %v2795 = vpop.f32.mrf.mxu0
      %v2796 = vadd.f32 0.0, %v2795
      %v2797 = vpop.f32.mrf.mxu0
      %v2798 = vpop.f32.mrf.mxu0
      %v2799 = vpop.f32.mrf.mxu0
      %2800 = vdwg.mxu0
      %2801 = vst.msk [vmem:[%s1312] sm:$0xff] %vm598, %v2748
      %2802 = vst.msk [vmem:[%s1312 + $0x8] sm:$0xff] %vm598, %v2751
      %2803 = vst.msk [vmem:[%s1312 + $0x10] sm:$0xff] %vm598, %v2756
      %2804 = vst.msk [vmem:[%s1312 + $0x18] sm:$0xff] %vm598, %v2759
      %2805 = vst.msk [vmem:[%s1312 + $0x20] sm:$0xff] %vm598, %v2764
      %2806 = vst.msk [vmem:[%s1312 + $0x28] sm:$0xff] %vm598, %v2767
      %2807 = vst.msk [vmem:[%s1312 + $0x30] sm:$0xff] %vm598, %v2772
      %2808 = vst.msk [vmem:[%s1312 + $0x38] sm:$0xff] %vm598, %v2775
      %2809 = vst.msk [vmem:[%s1312 + $0x40] sm:$0xff] %vm598, %v2780
      %2810 = vst.msk [vmem:[%s1312 + $0x48] sm:$0xff] %vm598, %v2783
      %2811 = vst.msk [vmem:[%s1312 + $0x50] sm:$0xff] %vm598, %v2788
      %2812 = vst.msk [vmem:[%s1312 + $0x58] sm:$0xff] %vm598, %v2791
      %2813 = vst.msk [vmem:[%s1312 + $0x60] sm:$0xff] %vm598, %v2796
      %s2814 = scalar_lea.vmem %s2, 224
      %v2815 = vld [vmem:[%s2814] sm:$0xf]
      %v2816 = vld [vmem:[%s2814 + $0x4] sm:$0xf]
      %v2817 = vld [vmem:[%s2814 + $0x8] sm:$0xf]
      %v2818 = vld [vmem:[%s2814 + $0xc] sm:$0xf]
      %v2819 = vld [vmem:[%s2814 + $0x10] sm:$0xf]
      %v2820 = vld [vmem:[%s2814 + $0x14] sm:$0xf]
      %v2821 = vld [vmem:[%s2814 + $0x18] sm:$0xf]
      %v2822 = vld [vmem:[%s2814 + $0x1c] sm:$0xf]
      %v2831 = vunpack.c.l.b16 %v2815
      %v2832 = vunpack.c.l.b16 %v2816
      %v2833 = vunpack.c.l.b16 %v2817
      %v2834 = vunpack.c.l.b16 %v2818
      %v2835 = vunpack.c.l.b16 %v2819
      %v2836 = vunpack.c.l.b16 %v2820
      %v2837 = vunpack.c.l.b16 %v2821
      %v2838 = vunpack.c.l.b16 %v2822
      %v2839 = vpack.c.b16 %v2832, %v2831
      %v2840 = vpack.c.b16 %v2834, %v2833
      %v2841 = vpack.c.b16 %v2836, %v2835
      %v2842 = vpack.c.b16 %v2838, %v2837
      %2847 = vmatprep.subr.bf16.mxu0 0
      %2848 = vmatpush1.bf16.msra.mxu0 0
      %2849 = vmatprep.subr.bf16.mxu0 0
      %2850 = vmatpush1.bf16.msra.mxu0 0
      %2851 = vmatprep.subr.bf16.mxu0 0
      %2852 = vmatpush1.bf16.msra.mxu0 0
      %2853 = vmatprep.subr.bf16.mxu0 0
      %2854 = vmatpush1.bf16.msra.mxu0 0
      %2855 = vmatprep.subr.bf16.mxu0 0
      %2856 = vmatpush1.bf16.msra.mxu0 %v2842
      %2857 = vmatprep.subr.bf16.mxu0 0
      %2858 = vmatpush1.bf16.msra.mxu0 %v2841
      %2859 = vmatprep.subr.bf16.mxu0 0
      %2860 = vmatpush1.bf16.msra.mxu0 %v2840
      %2861 = vmatprep.subr.bf16.mxu0 0
      %2862 = vmatpush1.bf16.msra.mxu0 %v2839
      %2863 = vmatprep.subr.bf16.mxu0 0
      %2864 = vmatpush2.bf16.msra.mxu0 0
      %2865 = vmatprep.subr.bf16.mxu0 0
      %2866 = vmatpush2.bf16.msra.mxu0 0
      %2867 = vmatprep.subr.bf16.mxu0 0
      %2868 = vmatpush2.bf16.msra.mxu0 0
      %2869 = vmatprep.subr.bf16.mxu0 0
      %2870 = vmatpush2.bf16.msra.mxu0 0
      %2871 = vmatprep.subr.bf16.mxu0 0
      %2872 = vmatpush2.bf16.msra.mxu0 0
      %2873 = vmatprep.subr.bf16.mxu0 0
      %2874 = vmatpush2.bf16.msra.mxu0 0
      %2875 = vmatprep.subr.bf16.mxu0 0
      %2876 = vmatpush2.bf16.msra.mxu0 0
      %2877 = vmatprep.subr.bf16.mxu0 0
      %2878 = vmatpush2.bf16.msra.mxu0 0
      %2879 = vmatprep.mubr.bf16.mxu0 0
      %2880 = vmatmul.mubr.bf16.gmra.mxu0 %v1889
      %v2881 = vpop.f32.mrf.mxu0
      %v2882 = vadd.f32 0.0, %v2881
      %v2883 = vpop.f32.mrf.mxu0
      %v2884 = vpop.f32.mrf.mxu0
      %v2885 = vadd.f32 0.0, %v2884
      %v2886 = vpop.f32.mrf.mxu0
      %2887 = vmatprep.mubr.bf16.mxu0 0
      %2888 = vmatmul.mubr.bf16.gmra.mxu0 %v1892
      %v2889 = vpop.f32.mrf.mxu0
      %v2890 = vadd.f32 0.0, %v2889
      %v2891 = vpop.f32.mrf.mxu0
      %v2892 = vpop.f32.mrf.mxu0
      %v2893 = vadd.f32 0.0, %v2892
      %v2894 = vpop.f32.mrf.mxu0
      %2895 = vmatprep.mubr.bf16.mxu0 0
      %2896 = vmatmul.mubr.bf16.gmra.mxu0 %v1895
      %v2897 = vpop.f32.mrf.mxu0
      %v2898 = vadd.f32 0.0, %v2897
      %v2899 = vpop.f32.mrf.mxu0
      %v2900 = vpop.f32.mrf.mxu0
      %v2901 = vadd.f32 0.0, %v2900
      %v2902 = vpop.f32.mrf.mxu0
      %2903 = vmatprep.mubr.bf16.mxu0 0
      %2904 = vmatmul.mubr.bf16.gmra.mxu0 %v1898
      %v2905 = vpop.f32.mrf.mxu0
      %v2906 = vadd.f32 0.0, %v2905
      %v2907 = vpop.f32.mrf.mxu0
      %v2908 = vpop.f32.mrf.mxu0
      %v2909 = vadd.f32 0.0, %v2908
      %v2910 = vpop.f32.mrf.mxu0
      %2911 = vmatprep.mubr.bf16.mxu0 0
      %2912 = vmatmul.mubr.bf16.gmra.mxu0 %v1901
      %v2913 = vpop.f32.mrf.mxu0
      %v2914 = vadd.f32 0.0, %v2913
      %v2915 = vpop.f32.mrf.mxu0
      %v2916 = vpop.f32.mrf.mxu0
      %v2917 = vadd.f32 0.0, %v2916
      %v2918 = vpop.f32.mrf.mxu0
      %2919 = vmatprep.mubr.bf16.mxu0 0
      %2920 = vmatmul.mubr.bf16.gmra.mxu0 %v1904
      %v2921 = vpop.f32.mrf.mxu0
      %v2922 = vadd.f32 0.0, %v2921
      %v2923 = vpop.f32.mrf.mxu0
      %v2924 = vpop.f32.mrf.mxu0
      %v2925 = vadd.f32 0.0, %v2924
      %v2926 = vpop.f32.mrf.mxu0
      %2927 = vmatprep.mubr.bf16.mxu0 0
      %2928 = vmatmul.mubr.bf16.gmra.mxu0 %v1907
      %v2929 = vpop.f32.mrf.mxu0
      %v2930 = vadd.f32 0.0, %v2929
      %v2931 = vpop.f32.mrf.mxu0
      %v2932 = vpop.f32.mrf.mxu0
      %v2933 = vpop.f32.mrf.mxu0
      %2934 = vdwg.mxu0
      %2935 = vst.msk [vmem:[%s1431] sm:$0xff] %vm598, %v2882
      %2936 = vst.msk [vmem:[%s1431 + $0x8] sm:$0xff] %vm598, %v2885
      %2937 = vst.msk [vmem:[%s1431 + $0x10] sm:$0xff] %vm598, %v2890
      %2938 = vst.msk [vmem:[%s1431 + $0x18] sm:$0xff] %vm598, %v2893
      %2939 = vst.msk [vmem:[%s1431 + $0x20] sm:$0xff] %vm598, %v2898
      %2940 = vst.msk [vmem:[%s1431 + $0x28] sm:$0xff] %vm598, %v2901
      %2941 = vst.msk [vmem:[%s1431 + $0x30] sm:$0xff] %vm598, %v2906
      %2942 = vst.msk [vmem:[%s1431 + $0x38] sm:$0xff] %vm598, %v2909
      %2943 = vst.msk [vmem:[%s1431 + $0x40] sm:$0xff] %vm598, %v2914
      %2944 = vst.msk [vmem:[%s1431 + $0x48] sm:$0xff] %vm598, %v2917
      %2945 = vst.msk [vmem:[%s1431 + $0x50] sm:$0xff] %vm598, %v2922
      %2946 = vst.msk [vmem:[%s1431 + $0x58] sm:$0xff] %vm598, %v2925
      %2947 = vst.msk [vmem:[%s1431 + $0x60] sm:$0xff] %vm598, %v2930
      %s2948 = scalar_lea.vmem %s2, 256
      %v2949 = vld [vmem:[%s2948] sm:$0xf]
      %v2950 = vld [vmem:[%s2948 + $0x4] sm:$0xf]
      %v2951 = vld [vmem:[%s2948 + $0x8] sm:$0xf]
      %v2952 = vld [vmem:[%s2948 + $0xc] sm:$0xf]
      %v2953 = vld [vmem:[%s2948 + $0x10] sm:$0xf]
      %v2954 = vld [vmem:[%s2948 + $0x14] sm:$0xf]
      %v2955 = vld [vmem:[%s2948 + $0x18] sm:$0xf]
      %v2956 = vld [vmem:[%s2948 + $0x1c] sm:$0xf]
      %v2965 = vunpack.c.l.b16 %v2949
      %v2966 = vunpack.c.l.b16 %v2950
      %v2967 = vunpack.c.l.b16 %v2951
      %v2968 = vunpack.c.l.b16 %v2952
      %v2969 = vunpack.c.l.b16 %v2953
      %v2970 = vunpack.c.l.b16 %v2954
      %v2971 = vunpack.c.l.b16 %v2955
      %v2972 = vunpack.c.l.b16 %v2956
      %v2973 = vpack.c.b16 %v2966, %v2965
      %v2974 = vpack.c.b16 %v2968, %v2967
      %v2975 = vpack.c.b16 %v2970, %v2969
      %v2976 = vpack.c.b16 %v2972, %v2971
      %2981 = vmatprep.subr.bf16.mxu0 0
      %2982 = vmatpush1.bf16.msra.mxu0 0
      %2983 = vmatprep.subr.bf16.mxu0 0
      %2984 = vmatpush1.bf16.msra.mxu0 0
      %2985 = vmatprep.subr.bf16.mxu0 0
      %2986 = vmatpush1.bf16.msra.mxu0 0
      %2987 = vmatprep.subr.bf16.mxu0 0
      %2988 = vmatpush1.bf16.msra.mxu0 0
      %2989 = vmatprep.subr.bf16.mxu0 0
      %2990 = vmatpush1.bf16.msra.mxu0 %v2976
      %2991 = vmatprep.subr.bf16.mxu0 0
      %2992 = vmatpush1.bf16.msra.mxu0 %v2975
      %2993 = vmatprep.subr.bf16.mxu0 0
      %2994 = vmatpush1.bf16.msra.mxu0 %v2974
      %2995 = vmatprep.subr.bf16.mxu0 0
      %2996 = vmatpush1.bf16.msra.mxu0 %v2973
      %2997 = vmatprep.subr.bf16.mxu0 0
      %2998 = vmatpush2.bf16.msra.mxu0 0
      %2999 = vmatprep.subr.bf16.mxu0 0
      %3000 = vmatpush2.bf16.msra.mxu0 0
      %3001 = vmatprep.subr.bf16.mxu0 0
      %3002 = vmatpush2.bf16.msra.mxu0 0
      %3003 = vmatprep.subr.bf16.mxu0 0
      %3004 = vmatpush2.bf16.msra.mxu0 0
      %3005 = vmatprep.subr.bf16.mxu0 0
      %3006 = vmatpush2.bf16.msra.mxu0 0
      %3007 = vmatprep.subr.bf16.mxu0 0
      %3008 = vmatpush2.bf16.msra.mxu0 0
      %3009 = vmatprep.subr.bf16.mxu0 0
      %3010 = vmatpush2.bf16.msra.mxu0 0
      %3011 = vmatprep.subr.bf16.mxu0 0
      %3012 = vmatpush2.bf16.msra.mxu0 0
      %3013 = vmatprep.mubr.bf16.mxu0 0
      %3014 = vmatmul.mubr.bf16.gmra.mxu0 %v1889
      %v3015 = vpop.f32.mrf.mxu0
      %v3016 = vadd.f32 0.0, %v3015
      %v3017 = vpop.f32.mrf.mxu0
      %v3018 = vpop.f32.mrf.mxu0
      %v3019 = vadd.f32 0.0, %v3018
      %v3020 = vpop.f32.mrf.mxu0
      %3021 = vmatprep.mubr.bf16.mxu0 0
      %3022 = vmatmul.mubr.bf16.gmra.mxu0 %v1892
      %v3023 = vpop.f32.mrf.mxu0
      %v3024 = vadd.f32 0.0, %v3023
      %v3025 = vpop.f32.mrf.mxu0
      %v3026 = vpop.f32.mrf.mxu0
      %v3027 = vadd.f32 0.0, %v3026
      %v3028 = vpop.f32.mrf.mxu0
      %3029 = vmatprep.mubr.bf16.mxu0 0
      %3030 = vmatmul.mubr.bf16.gmra.mxu0 %v1895
      %v3031 = vpop.f32.mrf.mxu0
      %v3032 = vadd.f32 0.0, %v3031
      %v3033 = vpop.f32.mrf.mxu0
      %v3034 = vpop.f32.mrf.mxu0
      %v3035 = vadd.f32 0.0, %v3034
      %v3036 = vpop.f32.mrf.mxu0
      %3037 = vmatprep.mubr.bf16.mxu0 0
      %3038 = vmatmul.mubr.bf16.gmra.mxu0 %v1898
      %v3039 = vpop.f32.mrf.mxu0
      %v3040 = vadd.f32 0.0, %v3039
      %v3041 = vpop.f32.mrf.mxu0
      %v3042 = vpop.f32.mrf.mxu0
      %v3043 = vadd.f32 0.0, %v3042
      %v3044 = vpop.f32.mrf.mxu0
      %3045 = vmatprep.mubr.bf16.mxu0 0
      %3046 = vmatmul.mubr.bf16.gmra.mxu0 %v1901
      %v3047 = vpop.f32.mrf.mxu0
      %v3048 = vadd.f32 0.0, %v3047
      %v3049 = vpop.f32.mrf.mxu0
      %v3050 = vpop.f32.mrf.mxu0
      %v3051 = vadd.f32 0.0, %v3050
      %v3052 = vpop.f32.mrf.mxu0
      %3053 = vmatprep.mubr.bf16.mxu0 0
      %3054 = vmatmul.mubr.bf16.gmra.mxu0 %v1904
      %v3055 = vpop.f32.mrf.mxu0
      %v3056 = vadd.f32 0.0, %v3055
      %v3057 = vpop.f32.mrf.mxu0
      %v3058 = vpop.f32.mrf.mxu0
      %v3059 = vadd.f32 0.0, %v3058
      %v3060 = vpop.f32.mrf.mxu0
      %3061 = vmatprep.mubr.bf16.mxu0 0
      %3062 = vmatmul.mubr.bf16.gmra.mxu0 %v1907
      %v3063 = vpop.f32.mrf.mxu0
      %v3064 = vadd.f32 0.0, %v3063
      %v3065 = vpop.f32.mrf.mxu0
      %v3066 = vpop.f32.mrf.mxu0
      %v3067 = vpop.f32.mrf.mxu0
      %3068 = vdwg.mxu0
      %3069 = vst.msk [vmem:[%s1550] sm:$0xff] %vm598, %v3016
      %3070 = vst.msk [vmem:[%s1550 + $0x8] sm:$0xff] %vm598, %v3019
      %3071 = vst.msk [vmem:[%s1550 + $0x10] sm:$0xff] %vm598, %v3024
      %3072 = vst.msk [vmem:[%s1550 + $0x18] sm:$0xff] %vm598, %v3027
      %3073 = vst.msk [vmem:[%s1550 + $0x20] sm:$0xff] %vm598, %v3032
      %3074 = vst.msk [vmem:[%s1550 + $0x28] sm:$0xff] %vm598, %v3035
      %3075 = vst.msk [vmem:[%s1550 + $0x30] sm:$0xff] %vm598, %v3040
      %3076 = vst.msk [vmem:[%s1550 + $0x38] sm:$0xff] %vm598, %v3043
      %3077 = vst.msk [vmem:[%s1550 + $0x40] sm:$0xff] %vm598, %v3048
      %3078 = vst.msk [vmem:[%s1550 + $0x48] sm:$0xff] %vm598, %v3051
      %3079 = vst.msk [vmem:[%s1550 + $0x50] sm:$0xff] %vm598, %v3056
      %3080 = vst.msk [vmem:[%s1550 + $0x58] sm:$0xff] %vm598, %v3059
      %3081 = vst.msk [vmem:[%s1550 + $0x60] sm:$0xff] %vm598, %v3064
      loop: start=0, step=1, limit=8
      $region63: #{double_conv_forward.1} parent=47 // loop_pre_header
        _
      $region64: #{double_conv_forward.1} parent=47 // loop_header
        %s3083 = sphi 0, %s3087
        %p3084 = scmp.ge.s32.totalorder %s3083, 8
        %v3088 = vphi 0.0, %v3139
        %v3089 = vphi 0.0, %v3141
      $region65: #{double_conv_forward.1} parent=47 // loop_header_branch
        %3086 = sbr.rel (%p3084) target = $region69
      $region66: #{double_conv_forward.1} parent=47 // loop_body
        %s3090 = smul.u32 %s3083, 10
        %s3091 = scalar_lea.vmem [#allocation3], %s3090
        %v3092 = vld [vmem:[%s3091] sm:$0xff]
        %v3093 = vadd.f32 %v3092, 0.0
        %s3094 = sadd.s32 %s3090, 1
        %s3095 = sadd.s32 %s3094, 104
        %s3096 = scalar_lea.vmem [#allocation3], %s3095
        %v3097 = vld [vmem:[%s3096] sm:$0xff]
        %v3098 = vadd.f32 %v3093, %v3097
        %s3099 = sadd.s32 %s3090, 2
        %s3100 = sadd.s32 %s3099, 208
        %s3101 = scalar_lea.vmem [#allocation3], %s3100
        %v3102 = vld [vmem:[%s3101] sm:$0xff]
        %v3103 = vadd.f32 %v3098, %v3102
        %s3104 = sadd.s32 %s3083, 1
        %s3105 = smul.u32 %s3104, 10
        %s3106 = sadd.s32 %s3105, 312
        %s3107 = scalar_lea.vmem [#allocation3], %s3106
        %v3108 = vld [vmem:[%s3107] sm:$0xff]
        %v3109 = vadd.f32 %v3103, %v3108
        %s3110 = sadd.s32 %s3105, 1
        %s3111 = sadd.s32 %s3110, 416
        %s3112 = scalar_lea.vmem [#allocation3], %s3111
        %v3113 = vld [vmem:[%s3112] sm:$0xff]
        %v3114 = vadd.f32 %v3109, %v3113
        %s3115 = sadd.s32 %s3105, 2
        %s3116 = sadd.s32 %s3115, 520
        %s3117 = scalar_lea.vmem [#allocation3], %s3116
        %v3118 = vld [vmem:[%s3117] sm:$0xff]
        %v3119 = vadd.f32 %v3114, %v3118
        %s3120 = sadd.s32 %s3083, 2
        %s3121 = smul.u32 %s3120, 10
        %s3122 = sadd.s32 %s3121, 624
        %s3123 = scalar_lea.vmem [#allocation3], %s3122
        %v3124 = vld [vmem:[%s3123] sm:$0xff]
        %v3125 = vadd.f32 %v3119, %v3124
        %s3126 = sadd.s32 %s3121, 1
        %s3127 = sadd.s32 %s3126, 728
        %s3128 = scalar_lea.vmem [#allocation3], %s3127
        %v3129 = vld [vmem:[%s3128] sm:$0xff]
        %v3130 = vadd.f32 %v3125, %v3129
        %s3131 = sadd.s32 %s3121, 2
        %s3132 = sadd.s32 %s3131, 832
        %s3133 = scalar_lea.vmem [#allocation3], %s3132
        %v3134 = vld [vmem:[%s3133] sm:$0xff]
        %v3135 = vadd.f32 %v3130, %v3134
        %s3136 = smul.u32 %s3083, 8
        %s3137 = scalar_lea.vmem %s280, %s3136
        %3138 = vst.msk [vmem:[%s3137] sm:$0xff] %vm598, %v3135
        %v3139 = vadd.f32 %v3088, %v3135
        %v3140 = vmul.f32 %v3135, %v3135
        %v3141 = vadd.f32 %v3089, %v3140
      $region67: #{double_conv_forward.1} parent=47 // loop_footer
        %s3087 = sadd.s32 1, %s3083
      $region68: #{double_conv_forward.1} parent=47 // loop_footer_branch
        %3082 = sbr.rel target = $region64
      $region69: #{double_conv_forward.1} parent=47 // loop_exit
        _
      %v3142 = vld [vmem:[%s5] sm:$0x1]
      %v3143 = vld [vmem:[%s6] sm:$0x1]
      %v3145 = vsel %vm598, %v3088, 0
      %3147 = vmatprep.subr.mxu0 0.0
      %3148 = vmatpush1.msra.mxu0 0.0
      %3149 = vmatprep.subr.mxu0 0.0
      %3150 = vmatpush1.msra.mxu0 0.0
      %3151 = vmatprep.subr.mxu0 0.0
      %3152 = vmatpush1.msra.mxu0 0.0
      %3153 = vmatprep.subr.mxu0 0.0
      %3154 = vmatpush1.msra.mxu0 0.0
      %3155 = vmatprep.subr.mxu0 0.0
      %3156 = vmatpush1.msra.mxu0 0.0
      %3157 = vmatprep.subr.mxu0 0.0
      %3158 = vmatpush1.msra.mxu0 0.0
      %3159 = vmatprep.subr.mxu0 0.0
      %3160 = vmatpush1.msra.mxu0 0.0
      %3161 = vmatprep.subr.mxu0 0.0
      %3162 = vmatpush1.msra.mxu0 0.0
      %3163 = vmatprep.subr.mxu0 0.0
      %3164 = vmatpush1.msra.mxu0 %v425
      %3165 = vmatprep.subr.mxu0 0.0
      %3166 = vmatpush1.msra.mxu0 %v424
      %3167 = vmatprep.subr.mxu0 0.0
      %3168 = vmatpush1.msra.mxu0 %v423
      %3169 = vmatprep.subr.mxu0 0.0
      %3170 = vmatpush1.msra.mxu0 %v422
      %3171 = vmatprep.subr.mxu0 0.0
      %3172 = vmatpush1.msra.mxu0 %v421
      %3173 = vmatprep.subr.mxu0 0.0
      %3174 = vmatpush1.msra.mxu0 %v420
      %3175 = vmatprep.subr.mxu0 0.0
      %3176 = vmatpush1.msra.mxu0 %v419
      %3177 = vmatprep.subr.mxu0 0.0
      %3178 = vmatpush1.msra.mxu0 %v418
      %3179 = vmatprep.subr.mxu0 0.0
      %3180 = vmatpush2.msra.mxu0 0.0
      %3181 = vmatprep.subr.mxu0 0.0
      %3182 = vmatpush2.msra.mxu0 0.0
      %3183 = vmatprep.subr.mxu0 0.0
      %3184 = vmatpush2.msra.mxu0 0.0
      %3185 = vmatprep.subr.mxu0 0.0
      %3186 = vmatpush2.msra.mxu0 0.0
      %3187 = vmatprep.subr.mxu0 0.0
      %3188 = vmatpush2.msra.mxu0 0.0
      %3189 = vmatprep.subr.mxu0 0.0
      %3190 = vmatpush2.msra.mxu0 0.0
      %3191 = vmatprep.subr.mxu0 0.0
      %3192 = vmatpush2.msra.mxu0 0.0
      %3193 = vmatprep.subr.mxu0 0.0
      %3194 = vmatpush2.msra.mxu0 0.0
      %3195 = vmatprep.subr.mxu0 0.0
      %3196 = vmatpush2.msra.mxu0 0.0
      %3197 = vmatprep.subr.mxu0 0.0
      %3198 = vmatpush2.msra.mxu0 0.0
      %3199 = vmatprep.subr.mxu0 0.0
      %3200 = vmatpush2.msra.mxu0 0.0
      %3201 = vmatprep.subr.mxu0 0.0
      %3202 = vmatpush2.msra.mxu0 0.0
      %3203 = vmatprep.subr.mxu0 0.0
      %3204 = vmatpush2.msra.mxu0 0.0
      %3205 = vmatprep.subr.mxu0 0.0
      %3206 = vmatpush2.msra.mxu0 0.0
      %3207 = vmatprep.subr.mxu0 0.0
      %3208 = vmatpush2.msra.mxu0 0.0
      %3209 = vmatprep.subr.mxu0 0.0
      %3210 = vmatpush2.msra.mxu0 0.0
      %3211 = vmatprep.mubr.f32.mxu0 0.0
      %3212 = vmatmul.mubr.f32.gmra.mxu0 %v3145
      %v3213 = vpop.f32.mrf.mxu0
      %v3214 = vadd.f32 0.0, %v3213
      %v3215 = vpop.f32.mrf.mxu0
      %3216 = vdwg.mxu0
      %v3217 = vsel %vm598, %v3214, 0.0
      %v3218 = vrot.slane %v3217, 4
      %v3219 = vadd.f32 %v3217, %v3218
      %v3220 = vrot.slane %v3219, 2
      %v3221 = vadd.f32 %v3219, %v3220
      %v3222 = vrot.slane %v3221, 1
      %v3223 = vadd.f32 %v3221, %v3222
      %v3224 = vmul.f32 %v3223, 0.001953125
      %v3226 = vsel %vm598, %v3089, 0
      %3228 = vmatprep.subr.mxu0 0.0
      %3229 = vmatpush1.msra.mxu0 0.0
      %3230 = vmatprep.subr.mxu0 0.0
      %3231 = vmatpush1.msra.mxu0 0.0
      %3232 = vmatprep.subr.mxu0 0.0
      %3233 = vmatpush1.msra.mxu0 0.0
      %3234 = vmatprep.subr.mxu0 0.0
      %3235 = vmatpush1.msra.mxu0 0.0
      %3236 = vmatprep.subr.mxu0 0.0
      %3237 = vmatpush1.msra.mxu0 0.0
      %3238 = vmatprep.subr.mxu0 0.0
      %3239 = vmatpush1.msra.mxu0 0.0
      %3240 = vmatprep.subr.mxu0 0.0
      %3241 = vmatpush1.msra.mxu0 0.0
      %3242 = vmatprep.subr.mxu0 0.0
      %3243 = vmatpush1.msra.mxu0 0.0
      %3244 = vmatprep.subr.mxu0 0.0
      %3245 = vmatpush1.msra.mxu0 %v425
      %3246 = vmatprep.subr.mxu0 0.0
      %3247 = vmatpush1.msra.mxu0 %v424
      %3248 = vmatprep.subr.mxu0 0.0
      %3249 = vmatpush1.msra.mxu0 %v423
      %3250 = vmatprep.subr.mxu0 0.0
      %3251 = vmatpush1.msra.mxu0 %v422
      %3252 = vmatprep.subr.mxu0 0.0
      %3253 = vmatpush1.msra.mxu0 %v421
      %3254 = vmatprep.subr.mxu0 0.0
      %3255 = vmatpush1.msra.mxu0 %v420
      %3256 = vmatprep.subr.mxu0 0.0
      %3257 = vmatpush1.msra.mxu0 %v419
      %3258 = vmatprep.subr.mxu0 0.0
      %3259 = vmatpush1.msra.mxu0 %v418
      %3260 = vmatprep.subr.mxu0 0.0
      %3261 = vmatpush2.msra.mxu0 0.0
      %3262 = vmatprep.subr.mxu0 0.0
      %3263 = vmatpush2.msra.mxu0 0.0
      %3264 = vmatprep.subr.mxu0 0.0
      %3265 = vmatpush2.msra.mxu0 0.0
      %3266 = vmatprep.subr.mxu0 0.0
      %3267 = vmatpush2.msra.mxu0 0.0
      %3268 = vmatprep.subr.mxu0 0.0
      %3269 = vmatpush2.msra.mxu0 0.0
      %3270 = vmatprep.subr.mxu0 0.0
      %3271 = vmatpush2.msra.mxu0 0.0
      %3272 = vmatprep.subr.mxu0 0.0
      %3273 = vmatpush2.msra.mxu0 0.0
      %3274 = vmatprep.subr.mxu0 0.0
      %3275 = vmatpush2.msra.mxu0 0.0
      %3276 = vmatprep.subr.mxu0 0.0
      %3277 = vmatpush2.msra.mxu0 0.0
      %3278 = vmatprep.subr.mxu0 0.0
      %3279 = vmatpush2.msra.mxu0 0.0
      %3280 = vmatprep.subr.mxu0 0.0
      %3281 = vmatpush2.msra.mxu0 0.0
      %3282 = vmatprep.subr.mxu0 0.0
      %3283 = vmatpush2.msra.mxu0 0.0
      %3284 = vmatprep.subr.mxu0 0.0
      %3285 = vmatpush2.msra.mxu0 0.0
      %3286 = vmatprep.subr.mxu0 0.0
      %3287 = vmatpush2.msra.mxu0 0.0
      %3288 = vmatprep.subr.mxu0 0.0
      %3289 = vmatpush2.msra.mxu0 0.0
      %3290 = vmatprep.subr.mxu0 0.0
      %3291 = vmatpush2.msra.mxu0 0.0
      %3292 = vmatprep.mubr.f32.mxu0 0.0
      %3293 = vmatmul.mubr.f32.gmra.mxu0 %v3226
      %v3294 = vpop.f32.mrf.mxu0
      %v3295 = vadd.f32 0.0, %v3294
      %v3296 = vpop.f32.mrf.mxu0
      %3297 = vdwg.mxu0
      %v3298 = vsel %vm598, %v3295, 0.0
      %v3299 = vrot.slane %v3298, 4
      %v3300 = vadd.f32 %v3298, %v3299
      %v3301 = vrot.slane %v3300, 2
      %v3302 = vadd.f32 %v3300, %v3301
      %v3303 = vrot.slane %v3302, 1
      %v3304 = vadd.f32 %v3302, %v3303
      %v3305 = vmul.f32 %v3304, 0.001953125
      %v3306 = vmul.f32 %v3224, %v3224
      %v3307 = vsub.f32 %v3305, %v3306
      %v3308 = vadd.f32 %v3307, 1e-05
      %v3309 = vrsqrt.pop %v3308
      %v3310 = vmul.f32 %v3142, %v3309
      %v3311 = vmul.f32 %v3224, %v3310
      %v3312 = vsub.f32 %v3143, %v3311
      loop: start=0, step=1, limit=8
      $region70: #{double_conv_forward.1} parent=47 // loop_pre_header
        _
      $region71: #{double_conv_forward.1} parent=47 // loop_header
        %s3314 = sphi 0, %s3318
        %p3315 = scmp.ge.s32.totalorder %s3314, 8
      $region72: #{double_conv_forward.1} parent=47 // loop_header_branch
        %3317 = sbr.rel (%p3315) target = $region76
      $region73: #{double_conv_forward.1} parent=47 // loop_body
        %s3319 = smul.u32 %s3314, 8
        %s3320 = scalar_lea.vmem %s280, %s3319
        %v3321 = vld [vmem:[%s3320] sm:$0xff]
        %v3323 = vlaneseq
        %v3324 = vshrl.u32 %v3323, 7
        %v3325 = vsub.s32 0, %v3324
        %v3326 = vrot.slane %v3310, %v3325
        %v3328 = vmul.f32 %v3321, %v3326
        %v3330 = vlaneseq
        %v3331 = vshrl.u32 %v3330, 7
        %v3332 = vsub.s32 0, %v3331
        %v3333 = vrot.slane %v3312, %v3332
        %v3335 = vadd.f32 %v3328, %v3333
        %3336 = vst.msk [vmem:[%s3320] sm:$0xff] %vm598, %v3335
      $region74: #{double_conv_forward.1} parent=47 // loop_footer
        %s3318 = sadd.s32 1, %s3314
      $region75: #{double_conv_forward.1} parent=47 // loop_footer_branch
        %3313 = sbr.rel target = $region71
      $region76: #{double_conv_forward.1} parent=47 // loop_exit
        _
      %s3337 = smul.u32 8, %s18
      %p3338 = scmp.lt.s32.totalorder %s3337, 15
      %s3339 = scalar_select %p3338, %s3337, 15
      %s3340 = smul.addr %s3339, 8
      %s3341 = scalar_lea.vmem %s7, %s3340
      // Predicated region
      $region77: #{double_conv_forward.1} parent=47 // pred_check
        %p3342 = pneg %p188
      $region78: #{double_conv_forward.1} parent=47 // pred_check_branch
        %3344 = sbr.rel (%p3342) target = $region80
      $region79: #{double_conv_forward.1} parent=47 // pred_region
        %s3345 = smul.u32 8, %s18
      $region80: #{double_conv_forward.1} parent=47 // pred_fallthru
        _
    $region48: #{double_conv_forward.1} parent=5 // pred_fallthru
      _
    %p3346 = scmp.le.s32.totalorder 2, %s13
    // Predicated region
    $region81: #{double_conv_forward.1} parent=5 // pred_check
      %p3347 = pneg %p3346
    $region82: #{double_conv_forward.1} parent=5 // pred_check_branch
      %3349 = sbr.rel (%p3347) target = $region84
    $region83: #{double_conv_forward.1} parent=5 // pred_region
      %s3350 = ssub.s32 %s13, 2
      // Predicated region
      $region85: #{double_conv_forward.1} parent=83 // pred_check
        %p3351 = pneg %p194
      $region86: #{double_conv_forward.1} parent=83 // pred_check_branch
        %3353 = sbr.rel (%p3351) target = $region88
      $region87: #{double_conv_forward.1} parent=83 // pred_region
        %s3354 = smul.u32 8, %s19
        %p3355 = scmp.lt.s32.totalorder %s3354, 15
        %s3356 = scalar_select %p3355, %s3354, 15
        %s3357 = smul.addr %s3356, 8
        %s3358 = scalar_lea.vmem %s7, %s3357
      $region88: #{double_conv_forward.1} parent=83 // pred_fallthru
        _
    $region84: #{double_conv_forward.1} parent=5 // pred_fallthru
      _
  $region6: #{double_conv_forward.1} parent=0 // loop_footer
    %s17 = sadd.s32 1, %s13
  $region7: #{double_conv_forward.1} parent=0 // loop_footer_branch
    %12 = sbr.rel target = $region3
  $region8: #{double_conv_forward.1} parent=0 // loop_exit
    _

</llo_original>
